<compile_context>
chip_gen: v7x
topology: tpu7x:2x2x1
jax: 0.10.0
libtpu: 0.0.40
codegen_flags: <defaults>
</compile_context>

<pallas_src>
import functools
import math

import jax
import jax.numpy as jnp
from jax.experimental import pallas as pl
from jax.experimental.pallas import tpu as pltpu


# ----------------------------- Pallas kernel ------------------------------ #

def _layernorm(x, gamma, beta, eps=1e-5):
    mu = jnp.mean(x, axis=-1, keepdims=True)
    var = jnp.mean((x - mu) ** 2, axis=-1, keepdims=True)
    return (x - mu) * jax.lax.rsqrt(var + eps) * gamma + beta


def mha_kernel(num_heads, block_b, use_ln, use_gate,
               # inputs
               q_ref, k_ref,               # (Bb*S_Q, D_Q), (Bb*S_K, D_K)
               wq_ref, bq_ref,             # (D_Q, 3*D_V), (1, 3*D_V)   [wq | scale*wq@wqi | wg]
               wk_ref, bk_ref,             # (D_K, 2*D_V), (1, 2*D_V)   [wk@wki | wv@wvi]
               wo_ref,                     # (D_V, 2*D_V)               [wao | wfo]
               misc_ref,                   # (8, D_V)  rows: bao,bfo,g0,b0,g1,b1,0,0
               # outputs
               o_ref, attn_ref):           # (Bb*S_Q, D_V), (Bb*S_Q, S_K)
    Bb = block_b
    H = num_heads
    rows_q, _ = q_ref.shape
    rows_k, _ = k_ref.shape
    S_Q = rows_q // Bb
    S_K = rows_k // Bb
    D_V = o_ref.shape[-1]
    dh = D_V // H
    wdt = wq_ref.dtype          # bf16 (default) or f32 compute dtype for MXU inputs

    # Activations arrive f32; cast to the weight dtype for the projection matmuls
    # (bf16 x bf16 MXU inputs, f32 accumulation).
    Qf = q_ref[...].astype(wdt)
    Kf = k_ref[...].astype(wdt)

    # One wide matmul per side for every projection (biases stay f32).
    qpack = jnp.dot(Qf, wq_ref[...], preferred_element_type=jnp.float32) + bq_ref[...]
    kpack = jnp.dot(Kf, wk_ref[...], preferred_element_type=jnp.float32) + bk_ref[...]
    q = qpack[:, :D_V]                    # fc_q(Q)            (residual path)
    qi = qpack[:, D_V:2 * D_V]            # in-proj q * scale  (attention path)
    ki = kpack[:, :D_V]
    vi = kpack[:, D_V:]

    # Head-block lane mask, built once per grid step (hoisted out of the batch loop).
    # mask[r, d] = 1 iff column d belongs to the head of row-block r.  Built without
    # vector integer division (compare+sum instead of //) so it lowers to plain VPU ops.
    if H == 1:
        head_mask = jnp.ones((S_Q, D_V), jnp.float32)
    else:
        col = jax.lax.broadcasted_iota(jnp.int32, (H * S_Q, D_V), 1)
        row = jax.lax.broadcasted_iota(jnp.int32, (H * S_Q, D_V), 0)
        col_head = sum((col >= (h * dh)).astype(jnp.int32) for h in range(1, H))
        row_head = sum((row >= (h * S_Q)).astype(jnp.int32) for h in range(1, H))
        head_mask = (col_head == row_head).astype(jnp.float32)

    # ---- scores for ALL heads of a batch row in ONE matmul --------------------------
    # q_big row-block h = qi_b lane-masked to head h's columns; contracting against the
    # full ki gives exactly the per-head scores (masked columns contribute 0).
    score_blocks = []
    for b in range(Bb):                                   # static unroll, Bb <= 8
        qi_b = qi[b * S_Q:(b + 1) * S_Q, :]               # sublane slice
        ki_b = ki[b * S_K:(b + 1) * S_K, :]
        q_big = jnp.tile(qi_b, (H, 1)) * head_mask        # (H*S_Q, D_V)
        s = jax.lax.dot_general(q_big, ki_b,
                                (((1,), (1,)), ((), ())),
                                preferred_element_type=jnp.float32)   # (H*S_Q, S_K)
        score_blocks.append(s)
    s_all = score_blocks[0] if Bb == 1 else jnp.concatenate(score_blocks, axis=0)

    # ---- ONE batched softmax across all (batch, head, query) rows -------------------
    s_all = s_all - jnp.max(s_all, axis=-1, keepdims=True)
    e_all = jnp.exp(s_all)
    p_all = e_all / jnp.sum(e_all, axis=-1, keepdims=True)   # exact: rows sum to 1

    # ---- PV (one matmul per batch row) + head gather + averaged weights -------------
    inv_h = jnp.float32(1.0 / H)
    attn_blocks = []
    ctx_blocks = []
    for b in range(Bb):
        p_b = p_all[b * H * S_Q:(b + 1) * H * S_Q, :]         # (H*S_Q, S_K) sublane slice
        vi_b = vi[b * S_K:(b + 1) * S_K, :]
        c_big = jnp.dot(p_b, vi_b,
                        preferred_element_type=jnp.float32) * head_mask   # (H*S_Q, D_V)
        ctx_b = c_big[0:S_Q, :]
        a_b = p_b[0:S_Q, :]
        for h in range(1, H):                                  # cheap sublane adds
            ctx_b = ctx_b + c_big[h * S_Q:(h + 1) * S_Q, :]
            a_b = a_b + p_b[h * S_Q:(h + 1) * S_Q, :]
        ctx_blocks.append(ctx_b)
        attn_blocks.append(a_b * inv_h)                        # average_attn_weights=True

    ctx = ctx_blocks[0] if Bb == 1 else jnp.concatenate(ctx_blocks, axis=0)   # (Bb*S_Q, D_V)
    attn = attn_blocks[0] if Bb == 1 else jnp.concatenate(attn_blocks, axis=0)
    attn_ref[...] = attn                                       # single whole-block store

    # ---- out-projection, residual, LN, FFN, gate -------------------------------------
    wao = wo_ref[:, :D_V]
    wfo = wo_ref[:, D_V:]
    bao = misc_ref[0:1, :]
    bfo = misc_ref[1:2, :]

    a_out = jnp.dot(ctx.astype(wdt), wao, preferred_element_type=jnp.float32) + bao
    o = q + a_out
    if use_ln:
        o = _layernorm(o, misc_ref[2:3, :], misc_ref[3:4, :])
    o = o + jax.nn.relu(
        jnp.dot(o.astype(wdt), wfo, preferred_element_type=jnp.float32) + bfo)
    if use_ln:
        o = _layernorm(o, misc_ref[4:5, :], misc_ref[5:6, :])
    if use_gate:
        g = qpack[:, 2 * D_V:]            # gate pre-activation from the wide Q matmul
        o = o * (g * jax.nn.sigmoid(g))

    o_ref[...] = o.astype(o_ref.dtype)    # single whole-block store


# ------------------------------- wrapper ----------------------------------- #

def pack_params(params, *, num_heads, compute_dtype=jnp.float32):
    """Fold the projection chain, fold the 1/sqrt(dh) scale, pack into 6 slabs.

    The folds are done in f32; only the big weight slabs are cast to `compute_dtype`
    (biases / LN params stay f32).
    """
    wq, bq = params["wq"], params["bq"]
    wqi, bqi = params["wqi"], params["bqi"]
    wk, bk = params["wk"], params["bk"]
    wki, bki = params["wki"], params["bki"]
    wv, bv = params["wv"], params["bv"]
    wvi, bvi = params["wvi"], params["bvi"]
    wg, bg = params["wg"], params["bg"]
    dim_V = wq.shape[1]
    scale = 1.0 / math.sqrt(dim_V // num_heads)

    wq_qi = (wq @ wqi) * scale            # attention-path q projection, scale folded
    bq_qi = (bq @ wqi + bqi) * scale
    wk_ki = wk @ wki
    bk_ki = bk @ wki + bki
    wv_vi = wv @ wvi
    bv_vi = bv @ wvi + bvi

    WQ = jnp.concatenate([wq, wq_qi, wg], axis=1).astype(compute_dtype)   # (D_Q, 3*D_V)
    BQ = jnp.concatenate([bq, bq_qi, bg], axis=1)                         # (1, 3*D_V) f32
    WK = jnp.concatenate([wk_ki, wv_vi], axis=1).astype(compute_dtype)    # (D_K, 2*D_V)
    BK = jnp.concatenate([bk_ki, bv_vi], axis=1)                          # (1, 2*D_V) f32
    WO = jnp.concatenate([params["wao"], params["wfo"]],
                         axis=1).astype(compute_dtype)                    # (D_V, 2*D_V)
    MISC = jnp.concatenate([params["bao"], params["bfo"],
                            params["g0"], params["b0"],
                            params["g1"], params["b1"],
                            jnp.zeros((2, dim_V), jnp.float32)], axis=0)  # (8, D_V) f32
    return {"WQ": WQ, "BQ": BQ, "WK": WK, "BK": BK, "WO": WO, "MISC": MISC}


def _num_tensorcores_per_chip():
    """TensorCores the Pallas grid can be sharded across (dimension_semantics)."""
    try:
        kind = jax.devices()[0].device_kind.lower()
    except Exception:
        return 1
    # v7x (and v4 megacore) expose 2 TensorCores per device; v5e/v6e have 1.
    if ("v7" in kind) or ("v4" in kind):
        return 2
    return 1


def _pick_block_b(B, num_tc, cap=8):
    """Generation-aware batch blocking.

    Largest divisor of B (capped to bound the static unroll) that still leaves at
    least `num_tc` grid steps: single grid step on v5e/v6e, >= 2 steps on v7x so both
    TensorCores get work and weights are fetched once per core.
    """
    best = 1
    for bb in range(1, min(B, cap) + 1):
        if B % bb == 0 and (B // bb) >= num_tc:
            best = bb
    return best


def multihead_attention_forward(Q, K, packed, *, num_heads, use_ln=True,
                                use_gate=True, return_attention=True,
                                block_b=None):
    B, S_Q, D_Q = Q.shape
    _, S_K, D_K = K.shape
    D_V = packed["WQ"].shape[1] // 3

    if block_b is None:
        block_b = _pick_block_b(B, _num_tensorcores_per_chip())
    assert B % block_b == 0
    grid = (B // block_b,)

    # Pre-flattened 2-D activations: no in-kernel reshape, blocks trivially layout-legal.
    Q2 = Q.reshape(B * S_Q, D_Q)
    K2 = K.reshape(B * S_K, D_K)

    weights = [packed["WQ"], packed["BQ"], packed["WK"], packed["BK"],
               packed["WO"], packed["MISC"]]

    kernel = functools.partial(mha_kernel, num_heads, block_b, use_ln, use_gate)

    out_shape = (jax.ShapeDtypeStruct((B * S_Q, D_V), jnp.float32),
                 jax.ShapeDtypeStruct((B * S_Q, S_K), jnp.float32))
    out_specs = (pl.BlockSpec((block_b * S_Q, D_V), lambda i: (i, 0)),
                 pl.BlockSpec((block_b * S_Q, S_K), lambda i: (i, 0)))

    def run(buffered_weights):
        def wspec(arr):
            nd = arr.ndim
            idx = lambda i, _nd=nd: (0,) * _nd
            if buffered_weights:
                # Grid-invariant weight slabs: no double buffering (halves their VMEM
                # footprint — matters under the 64 MiB/TC budget on v7x).
                return pl.BlockSpec(arr.shape, idx, pipeline_mode=pl.Buffered(1))
            return pl.BlockSpec(arr.shape, idx)

        in_specs = ([pl.BlockSpec((block_b * S_Q, D_Q), lambda i: (i, 0)),
                     pl.BlockSpec((block_b * S_K, D_K), lambda i: (i, 0))]
                    + [wspec(w) for w in weights])

        return pl.pallas_call(
            kernel,
            out_shape=out_shape,
            grid_spec=pltpu.PrefetchScalarGridSpec(
                num_scalar_prefetch=0,
                grid=grid,
                in_specs=in_specs,
                out_specs=out_specs),
            compiler_params=pltpu.CompilerParams(
                dimension_semantics=("parallel",),
                vmem_limit_bytes=32 * 1024 * 1024),
        )(Q2, K2, *weights)

    try:
        O2, W2 = run(True)
        jax.block_until_ready((O2, W2))
    except Exception:
        # Fallback for jax builds where pipeline_mode / Buffered(1) is unsupported.
        O2, W2 = run(False)

    O = O2.reshape(B, S_Q, D_V)
    W = W2.reshape(B, S_Q, S_K)
    # PyTorch: attention_weights.transpose(0, 1) -> (S_Q, B, S_K)
    # TODO(synk): fold this transpose into the out_spec (block (S_Q, block_b, S_K),
    # index_map lambda i: (0, i, 0)) once block_b % 8 == 0 at production batch sizes.
    A = jnp.transpose(W, (1, 0, 2)) if return_attention else None
    return O, A


# ------------------------ pure-JAX reference (check) ----------------------- #

def reference_forward(Q, K, params, *, num_heads, use_ln=True, use_gate=True):
    q = Q @ params["wq"] + params["bq"]
    k = K @ params["wk"] + params["bk"]
    v = K @ params["wv"] + params["bv"]
    qi = q @ params["wqi"] + params["bqi"]
    ki = k @ params["wki"] + params["bki"]
    vi = v @ params["wvi"] + params["bvi"]
    B, S_Q, D_V = qi.shape
    S_K = ki.shape[1]
    dh = D_V // num_heads
    qh = qi.reshape(B, S_Q, num_heads, dh).transpose(0, 2, 1, 3)
    kh = ki.reshape(B, S_K, num_heads, dh).transpose(0, 2, 1, 3)
    vh = vi.reshape(B, S_K, num_heads, dh).transpose(0, 2, 1, 3)
    s = jnp.einsum("bhqd,bhkd->bhqk", qh, kh) / math.sqrt(dh)
    p = jax.nn.softmax(s, axis=-1)
    ctx = jnp.einsum("bhqk,bhkd->bhqd", p, vh).transpose(0, 2, 1, 3).reshape(B, S_Q, D_V)
    a = ctx @ params["wao"] + params["bao"]
    o = q + a
    if use_ln:
        o = _layernorm(o, params["g0"], params["b0"])
    o = o + jax.nn.relu(o @ params["wfo"] + params["bfo"])
    if use_ln:
        o = _layernorm(o, params["g1"], params["b1"])
    if use_gate:
        g = Q @ params["wg"] + params["bg"]
        o = o * (g * jax.nn.sigmoid(g))
    attn = jnp.mean(p, axis=1)                  # (B, S_Q, S_K)
    return o, jnp.transpose(attn, (1, 0, 2))    # (S_Q, B, S_K)


# --------------------------------- main ------------------------------------ #

def make_params(key, dim_Q, dim_K, dim_V):
    ks = jax.random.split(key, 16)

    def lin(k, din, dout):
        bound = 1.0 / math.sqrt(din)
        kw, kb = jax.random.split(k)
        w = jax.random.uniform(kw, (din, dout), jnp.float32, -bound, bound)
        b = jax.random.uniform(kb, (1, dout), jnp.float32, -bound, bound)
        return w, b

    p = {}
    p["wq"], p["bq"] = lin(ks[0], dim_Q, dim_V)
    p["wk"], p["bk"] = lin(ks[1], dim_K, dim_V)
    p["wv"], p["bv"] = lin(ks[2], dim_K, dim_V)
    p["wqi"], p["bqi"] = lin(ks[3], dim_V, dim_V)   # in_proj q
    p["wki"], p["bki"] = lin(ks[4], dim_V, dim_V)   # in_proj k
    p["wvi"], p["bvi"] = lin(ks[5], dim_V, dim_V)   # in_proj v
    p["wao"], p["bao"] = lin(ks[6], dim_V, dim_V)   # out_proj
    p["wfo"], p["bfo"] = lin(ks[7], dim_V, dim_V)   # fc_o
    p["wg"], p["bg"] = lin(ks[8], dim_Q, dim_V)     # gate linear
    # LayerNorm affine params (PyTorch default init: ones / zeros)
    p["g0"] = jnp.ones((1, dim_V), jnp.float32)
    p["b0"] = jnp.zeros((1, dim_V), jnp.float32)
    p["g1"] = jnp.ones((1, dim_V), jnp.float32)
    p["b1"] = jnp.zeros((1, dim_V), jnp.float32)
    return p


if __name__ == "__main__":
    B, S_Q, S_K = 2, 8, 16
    dim_Q, dim_K, dim_V, num_heads = 24, 16, 32, 4

    key = jax.random.PRNGKey(0)
    kq, kk, kp = jax.random.split(key, 3)
    Q = jax.random.normal(kq, (B, S_Q, dim_Q), jnp.float32)
    K = jax.random.normal(kk, (B, S_K, dim_K), jnp.float32)
    params = make_params(kp, dim_Q, dim_K, dim_V)

    # ---- f32 slabs: tight correctness checks -------------------------------------
    packed_f32 = pack_params(params, num_heads=num_heads, compute_dtype=jnp.float32)
    # Generation-aware default blocking (1 step on v5e/v6e, 2 steps on v7x).
    O_a, A_a = multihead_attention_forward(Q, K, packed_f32, num_heads=num_heads)
    O_a = jax.block_until_ready(O_a); A_a = jax.block_until_ready(A_a)
    # Explicit multi-step grid (block_b=1) to exercise the pipelined path everywhere.
    O_b, A_b = multihead_attention_forward(Q, K, packed_f32, num_heads=num_heads,
                                           block_b=1)
    O_b = jax.block_until_ready(O_b); A_b = jax.block_until_ready(A_b)

    # ---- bf16 slabs (production default): single step, unrolled batch loop ------
    packed_bf16 = pack_params(params, num_heads=num_heads, compute_dtype=jnp.bfloat16)
    O_c, A_c = multihead_attention_forward(Q, K, packed_bf16, num_heads=num_heads,
                                           block_b=B)
    O_c = jax.block_until_ready(O_c); A_c = jax.block_until_ready(A_c)

    O_ref, A_ref = reference_forward(Q, K, params, num_heads=num_heads)
    assert O_a.shape == (B, S_Q, dim_V) and A_a.shape == (S_Q, B, S_K)

    # f32 paths: tight (only difference vs. reference is the folded-weight summation
    # order; softmax normalization is now exact).
    assert jnp.allclose(O_a, O_ref, atol=2e-3, rtol=2e-3), "output mismatch (f32, default)"
    assert jnp.allclose(A_a, A_ref, atol=2e-3, rtol=2e-3), "attention mismatch (f32, default)"
    assert jnp.allclose(O_b, O_ref, atol=2e-3, rtol=2e-3), "output mismatch (f32, block_b=1)"
    assert jnp.allclose(A_b, A_ref, atol=2e-3, rtol=2e-3), "attention mismatch (f32, block_b=1)"
    # bf16 weight slabs: loose tolerance purely from the bf16 mantissa of the
    # projection weights (the f32 runs above are the tight functional check).
    assert jnp.allclose(O_c, O_ref, atol=5e-2, rtol=5e-2), "output mismatch (bf16)"
    assert jnp.allclose(A_c, A_ref, atol=2e-2, rtol=1e-1), "attention mismatch (bf16)"

    print("KERNEL_OK")
</pallas_src>

<mosaic_0001>
module attributes {stable_mosaic.version = 11 : i64} {
  func.func @mha_kernel(%arg0: i32, %arg1: memref<16x24xf32, #tpu.memory_space<vmem>>, %arg2: memref<32x16xf32, #tpu.memory_space<vmem>>, %arg3: memref<24x96xf32, #tpu.memory_space<vmem>>, %arg4: memref<1x96xf32, #tpu.memory_space<vmem>>, %arg5: memref<16x64xf32, #tpu.memory_space<vmem>>, %arg6: memref<1x64xf32, #tpu.memory_space<vmem>>, %arg7: memref<32x64xf32, #tpu.memory_space<vmem>>, %arg8: memref<8x32xf32, #tpu.memory_space<vmem>>, %arg9: memref<16x32xf32, #tpu.memory_space<vmem>>, %arg10: memref<16x16xf32, #tpu.memory_space<vmem>>) attributes {dimension_semantics = [#tpu.dimension_semantics<parallel>], iteration_bounds = array<i64: 1>, scalar_prefetch = 0 : i64, scratch_operands = 0 : i64, tpu.core_type = #tpu.core_type<tc>, window_params = [{transform_indices = @transform_0, window_bounds = array<i64: 16, 24>}, {transform_indices = @transform_1, window_bounds = array<i64: 32, 16>}, {pipeline_mode = #tpu.pipeline_mode<synchronous>, transform_indices = @transform_2, window_bounds = array<i64: 24, 96>}, {pipeline_mode = #tpu.pipeline_mode<synchronous>, transform_indices = @transform_3, window_bounds = array<i64: 1, 96>}, {pipeline_mode = #tpu.pipeline_mode<synchronous>, transform_indices = @transform_4, window_bounds = array<i64: 16, 64>}, {pipeline_mode = #tpu.pipeline_mode<synchronous>, transform_indices = @transform_5, window_bounds = array<i64: 1, 64>}, {pipeline_mode = #tpu.pipeline_mode<synchronous>, transform_indices = @transform_6, window_bounds = array<i64: 32, 64>}, {pipeline_mode = #tpu.pipeline_mode<synchronous>, transform_indices = @transform_7, window_bounds = array<i64: 8, 32>}, {transform_indices = @transform_8, window_bounds = array<i64: 16, 32>}, {transform_indices = @transform_9, window_bounds = array<i64: 16, 16>}]} {
    %c0 = arith.constant 0 : index
    %c0_0 = arith.constant 0 : index
    %0 = vector.load %arg1[%c0, %c0_0] : memref<16x24xf32, #tpu.memory_space<vmem>>, vector<16x24xf32>
    %c0_1 = arith.constant 0 : index
    %c0_2 = arith.constant 0 : index
    %1 = vector.load %arg2[%c0_1, %c0_2] : memref<32x16xf32, #tpu.memory_space<vmem>>, vector<32x16xf32>
    %c0_3 = arith.constant 0 : index
    %c0_4 = arith.constant 0 : index
    %2 = vector.load %arg3[%c0_3, %c0_4] : memref<24x96xf32, #tpu.memory_space<vmem>>, vector<24x96xf32>
    %cst = arith.constant dense<0.000000e+00> : vector<16x96xf32>
    %3 = tpu.matmul %0, %2, %cst {dimension_numbers = #tpu.dot_dimension_numbers<[1], [0], [0], [1], [0, 0, 1, 1], [], []>} : vector<16x24xf32>, vector<24x96xf32>, vector<16x96xf32> -> vector<16x96xf32>
    %c0_5 = arith.constant 0 : index
    %c0_6 = arith.constant 0 : index
    %4 = vector.load %arg4[%c0_5, %c0_6] : memref<1x96xf32, #tpu.memory_space<vmem>>, vector<1x96xf32>
    %5 = vector.broadcast %4 : vector<1x96xf32> to vector<16x96xf32>
    %6 = arith.addf %3, %5 : vector<16x96xf32>
    %c0_7 = arith.constant 0 : index
    %c0_8 = arith.constant 0 : index
    %7 = vector.load %arg5[%c0_7, %c0_8] : memref<16x64xf32, #tpu.memory_space<vmem>>, vector<16x64xf32>
    %cst_9 = arith.constant dense<0.000000e+00> : vector<32x64xf32>
    %8 = tpu.matmul %1, %7, %cst_9 {dimension_numbers = #tpu.dot_dimension_numbers<[1], [0], [0], [1], [0, 0, 1, 1], [], []>} : vector<32x16xf32>, vector<16x64xf32>, vector<32x64xf32> -> vector<32x64xf32>
    %c0_10 = arith.constant 0 : index
    %c0_11 = arith.constant 0 : index
    %9 = vector.load %arg6[%c0_10, %c0_11] : memref<1x64xf32, #tpu.memory_space<vmem>>, vector<1x64xf32>
    %10 = vector.broadcast %9 : vector<1x64xf32> to vector<32x64xf32>
    %11 = arith.addf %8, %10 : vector<32x64xf32>
    %12 = vector.extract_strided_slice %6 {offsets = [0, 0], sizes = [16, 32], strides = [1, 1]} : vector<16x96xf32> to vector<16x32xf32>
    %13 = vector.extract_strided_slice %6 {offsets = [0, 32], sizes = [16, 32], strides = [1, 1]} : vector<16x96xf32> to vector<16x32xf32>
    %14 = vector.extract_strided_slice %11 {offsets = [0, 0], sizes = [32, 32], strides = [1, 1]} : vector<32x64xf32> to vector<32x32xf32>
    %15 = vector.extract_strided_slice %11 {offsets = [0, 32], sizes = [32, 32], strides = [1, 1]} : vector<32x64xf32> to vector<32x32xf32>
    %16 = tpu.iota {dimensions = array<i32: 1>} : vector<32x32xi32>
    %17 = tpu.iota {dimensions = array<i32: 0>} : vector<32x32xi32>
    %c8_i32 = arith.constant 8 : i32
    %18 = vector.broadcast %c8_i32 : i32 to vector<32x32xi32>
    %19 = arith.cmpi sge, %16, %18 : vector<32x32xi32>
    %20 = arith.extui %19 : vector<32x32xi1> to vector<32x32xi32>
    %c0_i32 = arith.constant 0 : i32
    %21 = vector.broadcast %c0_i32 : i32 to vector<32x32xi32>
    %22 = arith.addi %21, %20 : vector<32x32xi32>
    %c16_i32 = arith.constant 16 : i32
    %23 = vector.broadcast %c16_i32 : i32 to vector<32x32xi32>
    %24 = arith.cmpi sge, %16, %23 : vector<32x32xi32>
    %25 = arith.extui %24 : vector<32x32xi1> to vector<32x32xi32>
    %26 = arith.addi %22, %25 : vector<32x32xi32>
    %c24_i32 = arith.constant 24 : i32
    %27 = vector.broadcast %c24_i32 : i32 to vector<32x32xi32>
    %28 = arith.cmpi sge, %16, %27 : vector<32x32xi32>
    %29 = arith.extui %28 : vector<32x32xi1> to vector<32x32xi32>
    %30 = arith.addi %26, %29 : vector<32x32xi32>
    %c8_i32_12 = arith.constant 8 : i32
    %31 = vector.broadcast %c8_i32_12 : i32 to vector<32x32xi32>
    %32 = arith.cmpi sge, %17, %31 : vector<32x32xi32>
    %33 = arith.extui %32 : vector<32x32xi1> to vector<32x32xi32>
    %c0_i32_13 = arith.constant 0 : i32
    %34 = vector.broadcast %c0_i32_13 : i32 to vector<32x32xi32>
    %35 = arith.addi %34, %33 : vector<32x32xi32>
    %c16_i32_14 = arith.constant 16 : i32
    %36 = vector.broadcast %c16_i32_14 : i32 to vector<32x32xi32>
    %37 = arith.cmpi sge, %17, %36 : vector<32x32xi32>
    %38 = arith.extui %37 : vector<32x32xi1> to vector<32x32xi32>
    %39 = arith.addi %35, %38 : vector<32x32xi32>
    %c24_i32_15 = arith.constant 24 : i32
    %40 = vector.broadcast %c24_i32_15 : i32 to vector<32x32xi32>
    %41 = arith.cmpi sge, %17, %40 : vector<32x32xi32>
    %42 = arith.extui %41 : vector<32x32xi1> to vector<32x32xi32>
    %43 = arith.addi %39, %42 : vector<32x32xi32>
    %44 = arith.cmpi eq, %30, %43 : vector<32x32xi32>
    %45 = arith.extui %44 : vector<32x32xi1> to vector<32x32xi32>
    %46 = arith.sitofp %45 : vector<32x32xi32> to vector<32x32xf32>
    %47 = vector.extract_strided_slice %13 {offsets = [0, 0], sizes = [8, 32], strides = [1, 1]} : vector<16x32xf32> to vector<8x32xf32>
    %48 = vector.extract_strided_slice %14 {offsets = [0, 0], sizes = [16, 32], strides = [1, 1]} : vector<32x32xf32> to vector<16x32xf32>
    %49 = tpu.concatenate %47, %47, %47, %47 in 0 : vector<8x32xf32>, vector<8x32xf32>, vector<8x32xf32>, vector<8x32xf32> -> vector<32x32xf32>
    %50 = arith.mulf %49, %46 : vector<32x32xf32>
    %cst_16 = arith.constant dense<0.000000e+00> : vector<32x16xf32>
    %51 = tpu.matmul %50, %48, %cst_16 {dimension_numbers = #tpu.dot_dimension_numbers<[1], [1], [0], [0], [0, 0, 1, 0], [], []>} : vector<32x32xf32>, vector<16x32xf32>, vector<32x16xf32> -> vector<32x16xf32>
    %52 = vector.extract_strided_slice %13 {offsets = [8, 0], sizes = [8, 32], strides = [1, 1]} : vector<16x32xf32> to vector<8x32xf32>
    %53 = vector.extract_strided_slice %14 {offsets = [16, 0], sizes = [16, 32], strides = [1, 1]} : vector<32x32xf32> to vector<16x32xf32>
    %54 = tpu.concatenate %52, %52, %52, %52 in 0 : vector<8x32xf32>, vector<8x32xf32>, vector<8x32xf32>, vector<8x32xf32> -> vector<32x32xf32>
    %55 = arith.mulf %54, %46 : vector<32x32xf32>
    %cst_17 = arith.constant dense<0.000000e+00> : vector<32x16xf32>
    %56 = tpu.matmul %55, %53, %cst_17 {dimension_numbers = #tpu.dot_dimension_numbers<[1], [1], [0], [0], [0, 0, 1, 0], [], []>} : vector<32x32xf32>, vector<16x32xf32>, vector<32x16xf32> -> vector<32x16xf32>
    %57 = tpu.concatenate %51, %56 in 0 : vector<32x16xf32>, vector<32x16xf32> -> vector<64x16xf32>
    %cst_18 = arith.constant dense<0xFF800000> : vector<64xf32>
    %58 = vector.multi_reduction <maximumf>, %57, %cst_18 [1] : vector<64x16xf32> to vector<64xf32>
    %59 = vector.shape_cast %58 : vector<64xf32> to vector<64x1xf32>
    %60 = vector.broadcast %59 : vector<64x1xf32> to vector<64x16xf32>
    %61 = arith.subf %57, %60 : vector<64x16xf32>
    %62 = math.exp %61 : vector<64x16xf32>
    %cst_19 = arith.constant dense<0.000000e+00> : vector<64xf32>
    %63 = vector.multi_reduction <add>, %62, %cst_19 [1] : vector<64x16xf32> to vector<64xf32>
    %64 = vector.shape_cast %63 : vector<64xf32> to vector<64x1xf32>
    %65 = vector.broadcast %64 : vector<64x1xf32> to vector<64x16xf32>
    %66 = arith.divf %62, %65 : vector<64x16xf32>
    %67 = vector.extract_strided_slice %66 {offsets = [0, 0], sizes = [32, 16], strides = [1, 1]} : vector<64x16xf32> to vector<32x16xf32>
    %68 = vector.extract_strided_slice %15 {offsets = [0, 0], sizes = [16, 32], strides = [1, 1]} : vector<32x32xf32> to vector<16x32xf32>
    %cst_20 = arith.constant dense<0.000000e+00> : vector<32x32xf32>
    %69 = tpu.matmul %67, %68, %cst_20 {dimension_numbers = #tpu.dot_dimension_numbers<[1], [0], [0], [1], [0, 0, 1, 1], [], []>} : vector<32x16xf32>, vector<16x32xf32>, vector<32x32xf32> -> vector<32x32xf32>
    %70 = arith.mulf %69, %46 : vector<32x32xf32>
    %71 = vector.extract_strided_slice %70 {offsets = [0, 0], sizes = [8, 32], strides = [1, 1]} : vector<32x32xf32> to vector<8x32xf32>
    %72 = vector.extract_strided_slice %67 {offsets = [0, 0], sizes = [8, 16], strides = [1, 1]} : vector<32x16xf32> to vector<8x16xf32>
    %73 = vector.extract_strided_slice %70 {offsets = [8, 0], sizes = [8, 32], strides = [1, 1]} : vector<32x32xf32> to vector<8x32xf32>
    %74 = arith.addf %71, %73 : vector<8x32xf32>
    %75 = vector.extract_strided_slice %67 {offsets = [8, 0], sizes = [8, 16], strides = [1, 1]} : vector<32x16xf32> to vector<8x16xf32>
    %76 = arith.addf %72, %75 : vector<8x16xf32>
    %77 = vector.extract_strided_slice %70 {offsets = [16, 0], sizes = [8, 32], strides = [1, 1]} : vector<32x32xf32> to vector<8x32xf32>
    %78 = arith.addf %74, %77 : vector<8x32xf32>
    %79 = vector.extract_strided_slice %67 {offsets = [16, 0], sizes = [8, 16], strides = [1, 1]} : vector<32x16xf32> to vector<8x16xf32>
    %80 = arith.addf %76, %79 : vector<8x16xf32>
    %81 = vector.extract_strided_slice %70 {offsets = [24, 0], sizes = [8, 32], strides = [1, 1]} : vector<32x32xf32> to vector<8x32xf32>
    %82 = arith.addf %78, %81 : vector<8x32xf32>
    %83 = vector.extract_strided_slice %67 {offsets = [24, 0], sizes = [8, 16], strides = [1, 1]} : vector<32x16xf32> to vector<8x16xf32>
    %84 = arith.addf %80, %83 : vector<8x16xf32>
    %cst_21 = arith.constant 2.500000e-01 : f32
    %85 = vector.broadcast %cst_21 : f32 to vector<8x16xf32>
    %86 = arith.mulf %84, %85 : vector<8x16xf32>
    %87 = vector.extract_strided_slice %66 {offsets = [32, 0], sizes = [32, 16], strides = [1, 1]} : vector<64x16xf32> to vector<32x16xf32>
    %88 = vector.extract_strided_slice %15 {offsets = [16, 0], sizes = [16, 32], strides = [1, 1]} : vector<32x32xf32> to vector<16x32xf32>
    %cst_22 = arith.constant dense<0.000000e+00> : vector<32x32xf32>
    %89 = tpu.matmul %87, %88, %cst_22 {dimension_numbers = #tpu.dot_dimension_numbers<[1], [0], [0], [1], [0, 0, 1, 1], [], []>} : vector<32x16xf32>, vector<16x32xf32>, vector<32x32xf32> -> vector<32x32xf32>
    %90 = arith.mulf %89, %46 : vector<32x32xf32>
    %91 = vector.extract_strided_slice %90 {offsets = [0, 0], sizes = [8, 32], strides = [1, 1]} : vector<32x32xf32> to vector<8x32xf32>
    %92 = vector.extract_strided_slice %87 {offsets = [0, 0], sizes = [8, 16], strides = [1, 1]} : vector<32x16xf32> to vector<8x16xf32>
    %93 = vector.extract_strided_slice %90 {offsets = [8, 0], sizes = [8, 32], strides = [1, 1]} : vector<32x32xf32> to vector<8x32xf32>
    %94 = arith.addf %91, %93 : vector<8x32xf32>
    %95 = vector.extract_strided_slice %87 {offsets = [8, 0], sizes = [8, 16], strides = [1, 1]} : vector<32x16xf32> to vector<8x16xf32>
    %96 = arith.addf %92, %95 : vector<8x16xf32>
    %97 = vector.extract_strided_slice %90 {offsets = [16, 0], sizes = [8, 32], strides = [1, 1]} : vector<32x32xf32> to vector<8x32xf32>
    %98 = arith.addf %94, %97 : vector<8x32xf32>
    %99 = vector.extract_strided_slice %87 {offsets = [16, 0], sizes = [8, 16], strides = [1, 1]} : vector<32x16xf32> to vector<8x16xf32>
    %100 = arith.addf %96, %99 : vector<8x16xf32>
    %101 = vector.extract_strided_slice %90 {offsets = [24, 0], sizes = [8, 32], strides = [1, 1]} : vector<32x32xf32> to vector<8x32xf32>
    %102 = arith.addf %98, %101 : vector<8x32xf32>
    %103 = vector.extract_strided_slice %87 {offsets = [24, 0], sizes = [8, 16], strides = [1, 1]} : vector<32x16xf32> to vector<8x16xf32>
    %104 = arith.addf %100, %103 : vector<8x16xf32>
    %cst_23 = arith.constant 2.500000e-01 : f32
    %105 = vector.broadcast %cst_23 : f32 to vector<8x16xf32>
    %106 = arith.mulf %104, %105 : vector<8x16xf32>
    %107 = tpu.concatenate %82, %102 in 0 : vector<8x32xf32>, vector<8x32xf32> -> vector<16x32xf32>
    %108 = tpu.concatenate %86, %106 in 0 : vector<8x16xf32>, vector<8x16xf32> -> vector<16x16xf32>
    %c0_24 = arith.constant 0 : index
    %c0_25 = arith.constant 0 : index
    %109 = vector.load %arg10[%c0_24, %c0_25] : memref<16x16xf32, #tpu.memory_space<vmem>>, vector<16x16xf32>
    tpu.vector_store %arg10[%c0_24, %c0_25], %108 {strides = array<i32>} : memref<16x16xf32, #tpu.memory_space<vmem>>, vector<16x16xf32>,
    %c0_26 = arith.constant 0 : index
    %c0_27 = arith.constant 0 : index
    %110 = vector.load %arg7[%c0_26, %c0_27] : memref<32x64xf32, #tpu.memory_space<vmem>>, vector<32x32xf32>
    %c0_28 = arith.constant 0 : index
    %c32 = arith.constant 32 : index
    %111 = vector.load %arg7[%c0_28, %c32] : memref<32x64xf32, #tpu.memory_space<vmem>>, vector<32x32xf32>
    %c0_29 = arith.constant 0 : index
    %c0_30 = arith.constant 0 : index
    %112 = vector.load %arg8[%c0_29, %c0_30] : memref<8x32xf32, #tpu.memory_space<vmem>>, vector<1x32xf32>
    %c1 = arith.constant 1 : index
    %c0_31 = arith.constant 0 : index
    %113 = vector.load %arg8[%c1, %c0_31] : memref<8x32xf32, #tpu.memory_space<vmem>>, vector<1x32xf32>
    %cst_32 = arith.constant dense<0.000000e+00> : vector<16x32xf32>
    %114 = tpu.matmul %107, %110, %cst_32 {dimension_numbers = #tpu.dot_dimension_numbers<[1], [0], [0], [1], [0, 0, 1, 1], [], []>} : vector<16x32xf32>, vector<32x32xf32>, vector<16x32xf32> -> vector<16x32xf32>
    %115 = vector.broadcast %112 : vector<1x32xf32> to vector<16x32xf32>
    %116 = arith.addf %114, %115 : vector<16x32xf32>
    %117 = arith.addf %12, %116 : vector<16x32xf32>
    %c2 = arith.constant 2 : index
    %c0_33 = arith.constant 0 : index
    %118 = vector.load %arg8[%c2, %c0_33] : memref<8x32xf32, #tpu.memory_space<vmem>>, vector<1x32xf32>
    %c3 = arith.constant 3 : index
    %c0_34 = arith.constant 0 : index
    %119 = vector.load %arg8[%c3, %c0_34] : memref<8x32xf32, #tpu.memory_space<vmem>>, vector<1x32xf32>
    %cst_35 = arith.constant dense<0.000000e+00> : vector<16xf32>
    %120 = vector.multi_reduction <add>, %117, %cst_35 [1] : vector<16x32xf32> to vector<16xf32>
    %121 = vector.shape_cast %120 : vector<16xf32> to vector<16x1xf32>
    %cst_36 = arith.constant 3.200000e+01 : f32
    %122 = vector.broadcast %cst_36 : f32 to vector<16x1xf32>
    %123 = arith.divf %121, %122 : vector<16x1xf32>
    %124 = vector.broadcast %123 : vector<16x1xf32> to vector<16x32xf32>
    %125 = arith.subf %117, %124 : vector<16x32xf32>
    %126 = arith.mulf %125, %125 : vector<16x32xf32>
    %cst_37 = arith.constant dense<0.000000e+00> : vector<16xf32>
    %127 = vector.multi_reduction <add>, %126, %cst_37 [1] : vector<16x32xf32> to vector<16xf32>
    %128 = vector.shape_cast %127 : vector<16xf32> to vector<16x1xf32>
    %cst_38 = arith.constant 3.200000e+01 : f32
    %129 = vector.broadcast %cst_38 : f32 to vector<16x1xf32>
    %130 = arith.divf %128, %129 : vector<16x1xf32>
    %131 = vector.broadcast %123 : vector<16x1xf32> to vector<16x32xf32>
    %132 = arith.subf %117, %131 : vector<16x32xf32>
    %cst_39 = arith.constant 9.99999974E-6 : f32
    %133 = vector.broadcast %cst_39 : f32 to vector<16x1xf32>
    %134 = arith.addf %130, %133 : vector<16x1xf32>
    %135 = math.rsqrt %134 : vector<16x1xf32>
    %136 = vector.broadcast %135 : vector<16x1xf32> to vector<16x32xf32>
    %137 = arith.mulf %132, %136 : vector<16x32xf32>
    %138 = vector.broadcast %118 : vector<1x32xf32> to vector<16x32xf32>
    %139 = arith.mulf %137, %138 : vector<16x32xf32>
    %140 = vector.broadcast %119 : vector<1x32xf32> to vector<16x32xf32>
    %141 = arith.addf %139, %140 : vector<16x32xf32>
    %cst_40 = arith.constant dense<0.000000e+00> : vector<16x32xf32>
    %142 = tpu.matmul %141, %111, %cst_40 {dimension_numbers = #tpu.dot_dimension_numbers<[1], [0], [0], [1], [0, 0, 1, 1], [], []>} : vector<16x32xf32>, vector<32x32xf32>, vector<16x32xf32> -> vector<16x32xf32>
    %143 = vector.broadcast %113 : vector<1x32xf32> to vector<16x32xf32>
    %144 = arith.addf %142, %143 : vector<16x32xf32>
    %cst_41 = arith.constant 0.000000e+00 : f32
    %145 = vector.broadcast %cst_41 : f32 to vector<16x32xf32>
    %146 = arith.maximumf %144, %145 : vector<16x32xf32>
    %147 = arith.addf %141, %146 : vector<16x32xf32>
    %c4 = arith.constant 4 : index
    %c0_42 = arith.constant 0 : index
    %148 = vector.load %arg8[%c4, %c0_42] : memref<8x32xf32, #tpu.memory_space<vmem>>, vector<1x32xf32>
    %c5 = arith.constant 5 : index
    %c0_43 = arith.constant 0 : index
    %149 = vector.load %arg8[%c5, %c0_43] : memref<8x32xf32, #tpu.memory_space<vmem>>, vector<1x32xf32>
    %cst_44 = arith.constant dense<0.000000e+00> : vector<16xf32>
    %150 = vector.multi_reduction <add>, %147, %cst_44 [1] : vector<16x32xf32> to vector<16xf32>
    %151 = vector.shape_cast %150 : vector<16xf32> to vector<16x1xf32>
    %cst_45 = arith.constant 3.200000e+01 : f32
    %152 = vector.broadcast %cst_45 : f32 to vector<16x1xf32>
    %153 = arith.divf %151, %152 : vector<16x1xf32>
    %154 = vector.broadcast %153 : vector<16x1xf32> to vector<16x32xf32>
    %155 = arith.subf %147, %154 : vector<16x32xf32>
    %156 = arith.mulf %155, %155 : vector<16x32xf32>
    %cst_46 = arith.constant dense<0.000000e+00> : vector<16xf32>
    %157 = vector.multi_reduction <add>, %156, %cst_46 [1] : vector<16x32xf32> to vector<16xf32>
    %158 = vector.shape_cast %157 : vector<16xf32> to vector<16x1xf32>
    %cst_47 = arith.constant 3.200000e+01 : f32
    %159 = vector.broadcast %cst_47 : f32 to vector<16x1xf32>
    %160 = arith.divf %158, %159 : vector<16x1xf32>
    %161 = vector.broadcast %153 : vector<16x1xf32> to vector<16x32xf32>
    %162 = arith.subf %147, %161 : vector<16x32xf32>
    %cst_48 = arith.constant 9.99999974E-6 : f32
    %163 = vector.broadcast %cst_48 : f32 to vector<16x1xf32>
    %164 = arith.addf %160, %163 : vector<16x1xf32>
    %165 = math.rsqrt %164 : vector<16x1xf32>
    %166 = vector.broadcast %165 : vector<16x1xf32> to vector<16x32xf32>
    %167 = arith.mulf %162, %166 : vector<16x32xf32>
    %168 = vector.broadcast %148 : vector<1x32xf32> to vector<16x32xf32>
    %169 = arith.mulf %167, %168 : vector<16x32xf32>
    %170 = vector.broadcast %149 : vector<1x32xf32> to vector<16x32xf32>
    %171 = arith.addf %169, %170 : vector<16x32xf32>
    %172 = vector.extract_strided_slice %6 {offsets = [0, 64], sizes = [16, 32], strides = [1, 1]} : vector<16x96xf32> to vector<16x32xf32>
    %173 = arith.negf %172 : vector<16x32xf32>
    %174 = math.exp %173 : vector<16x32xf32>
    %cst_49 = arith.constant 1.000000e+00 : f32
    %175 = vector.broadcast %cst_49 : f32 to vector<16x32xf32>
    %176 = arith.addf %175, %174 : vector<16x32xf32>
    %177 = arith.divf %175, %176 : vector<16x32xf32>
    %178 = arith.mulf %172, %177 : vector<16x32xf32>
    %179 = arith.mulf %171, %178 : vector<16x32xf32>
    %c0_50 = arith.constant 0 : index
    %c0_51 = arith.constant 0 : index
    %180 = vector.load %arg9[%c0_50, %c0_51] : memref<16x32xf32, #tpu.memory_space<vmem>>, vector<16x32xf32>
    tpu.vector_store %arg9[%c0_50, %c0_51], %179 {strides = array<i32>} : memref<16x32xf32, #tpu.memory_space<vmem>>, vector<16x32xf32>,
    return
  }
  func.func @transform_0(%arg0: i32) -> (i32, i32) {
    %c0_i32 = arith.constant 0 : i32
    %c0_i32_0 = arith.constant 0 : i32
    return %arg0, %c0_i32 : i32, i32
  }
  func.func @transform_1(%arg0: i32) -> (i32, i32) {
    %c0_i32 = arith.constant 0 : i32
    %c0_i32_0 = arith.constant 0 : i32
    return %arg0, %c0_i32 : i32, i32
  }
  func.func @transform_2(%arg0: i32) -> (i32, i32) {
    %c0_i32 = arith.constant 0 : i32
    %c0_i32_0 = arith.constant 0 : i32
    %c0_i32_1 = arith.constant 0 : i32
    return %c0_i32, %c0_i32_0 : i32, i32
  }
  func.func @transform_3(%arg0: i32) -> (i32, i32) {
    %c0_i32 = arith.constant 0 : i32
    %c0_i32_0 = arith.constant 0 : i32
    %c0_i32_1 = arith.constant 0 : i32
    return %c0_i32, %c0_i32_0 : i32, i32
  }
  func.func @transform_4(%arg0: i32) -> (i32, i32) {
    %c0_i32 = arith.constant 0 : i32
    %c0_i32_0 = arith.constant 0 : i32
    %c0_i32_1 = arith.constant 0 : i32
    return %c0_i32, %c0_i32_0 : i32, i32
  }
  func.func @transform_5(%arg0: i32) -> (i32, i32) {
    %c0_i32 = arith.constant 0 : i32
    %c0_i32_0 = arith.constant 0 : i32
    %c0_i32_1 = arith.constant 0 : i32
    return %c0_i32, %c0_i32_0 : i32, i32
  }
  func.func @transform_6(%arg0: i32) -> (i32, i32) {
    %c0_i32 = arith.constant 0 : i32
    %c0_i32_0 = arith.constant 0 : i32
    %c0_i32_1 = arith.constant 0 : i32
    return %c0_i32, %c0_i32_0 : i32, i32
  }
  func.func @transform_7(%arg0: i32) -> (i32, i32) {
    %c0_i32 = arith.constant 0 : i32
    %c0_i32_0 = arith.constant 0 : i32
    %c0_i32_1 = arith.constant 0 : i32
    return %c0_i32, %c0_i32_0 : i32, i32
  }
  func.func @transform_8(%arg0: i32) -> (i32, i32) {
    %c0_i32 = arith.constant 0 : i32
    %c0_i32_0 = arith.constant 0 : i32
    return %arg0, %c0_i32 : i32, i32
  }
  func.func @transform_9(%arg0: i32) -> (i32, i32) {
    %c0_i32 = arith.constant 0 : i32
    %c0_i32_0 = arith.constant 0 : i32
    return %arg0, %c0_i32 : i32, i32
  }
}

module attributes {stable_mosaic.version = 11 : i64} {
  func.func @mha_kernel(%arg0: i32, %arg1: memref<16x24xf32, #tpu.memory_space<vmem>>, %arg2: memref<32x16xf32, #tpu.memory_space<vmem>>, %arg3: memref<24x96xf32, #tpu.memory_space<vmem>>, %arg4: memref<1x96xf32, #tpu.memory_space<vmem>>, %arg5: memref<16x64xf32, #tpu.memory_space<vmem>>, %arg6: memref<1x64xf32, #tpu.memory_space<vmem>>, %arg7: memref<32x64xf32, #tpu.memory_space<vmem>>, %arg8: memref<8x32xf32, #tpu.memory_space<vmem>>, %arg9: memref<16x32xf32, #tpu.memory_space<vmem>>, %arg10: memref<16x16xf32, #tpu.memory_space<vmem>>) attributes {dimension_semantics = [#tpu.dimension_semantics<parallel>], iteration_bounds = array<i64: 1>, scalar_prefetch = 0 : i64, scratch_operands = 0 : i64, tpu.core_type = #tpu.core_type<tc>, window_params = [{transform_indices = @transform_0, window_bounds = array<i64: 16, 24>}, {transform_indices = @transform_1, window_bounds = array<i64: 32, 16>}, {pipeline_mode = #tpu.pipeline_mode<synchronous>, transform_indices = @transform_2, window_bounds = array<i64: 24, 96>}, {pipeline_mode = #tpu.pipeline_mode<synchronous>, transform_indices = @transform_3, window_bounds = array<i64: 1, 96>}, {pipeline_mode = #tpu.pipeline_mode<synchronous>, transform_indices = @transform_4, window_bounds = array<i64: 16, 64>}, {pipeline_mode = #tpu.pipeline_mode<synchronous>, transform_indices = @transform_5, window_bounds = array<i64: 1, 64>}, {pipeline_mode = #tpu.pipeline_mode<synchronous>, transform_indices = @transform_6, window_bounds = array<i64: 32, 64>}, {pipeline_mode = #tpu.pipeline_mode<synchronous>, transform_indices = @transform_7, window_bounds = array<i64: 8, 32>}, {transform_indices = @transform_8, window_bounds = array<i64: 16, 32>}, {transform_indices = @transform_9, window_bounds = array<i64: 16, 16>}]} {
    %c0 = arith.constant 0 : index
    %c0_0 = arith.constant 0 : index
    %0 = vector.load %arg1[%c0, %c0_0] : memref<16x24xf32, #tpu.memory_space<vmem>>, vector<16x24xf32>
    %c0_1 = arith.constant 0 : index
    %c0_2 = arith.constant 0 : index
    %1 = vector.load %arg2[%c0_1, %c0_2] : memref<32x16xf32, #tpu.memory_space<vmem>>, vector<32x16xf32>
    %c0_3 = arith.constant 0 : index
    %c0_4 = arith.constant 0 : index
    %2 = vector.load %arg3[%c0_3, %c0_4] : memref<24x96xf32, #tpu.memory_space<vmem>>, vector<24x96xf32>
    %cst = arith.constant dense<0.000000e+00> : vector<16x96xf32>
    %3 = tpu.matmul %0, %2, %cst {dimension_numbers = #tpu.dot_dimension_numbers<[1], [0], [0], [1], [0, 0, 1, 1], [], []>} : vector<16x24xf32>, vector<24x96xf32>, vector<16x96xf32> -> vector<16x96xf32>
    %c0_5 = arith.constant 0 : index
    %c0_6 = arith.constant 0 : index
    %4 = vector.load %arg4[%c0_5, %c0_6] : memref<1x96xf32, #tpu.memory_space<vmem>>, vector<1x96xf32>
    %5 = vector.broadcast %4 : vector<1x96xf32> to vector<16x96xf32>
    %6 = arith.addf %3, %5 : vector<16x96xf32>
    %c0_7 = arith.constant 0 : index
    %c0_8 = arith.constant 0 : index
    %7 = vector.load %arg5[%c0_7, %c0_8] : memref<16x64xf32, #tpu.memory_space<vmem>>, vector<16x64xf32>
    %cst_9 = arith.constant dense<0.000000e+00> : vector<32x64xf32>
    %8 = tpu.matmul %1, %7, %cst_9 {dimension_numbers = #tpu.dot_dimension_numbers<[1], [0], [0], [1], [0, 0, 1, 1], [], []>} : vector<32x16xf32>, vector<16x64xf32>, vector<32x64xf32> -> vector<32x64xf32>
    %c0_10 = arith.constant 0 : index
    %c0_11 = arith.constant 0 : index
    %9 = vector.load %arg6[%c0_10, %c0_11] : memref<1x64xf32, #tpu.memory_space<vmem>>, vector<1x64xf32>
    %10 = vector.broadcast %9 : vector<1x64xf32> to vector<32x64xf32>
    %11 = arith.addf %8, %10 : vector<32x64xf32>
    %12 = vector.extract_strided_slice %6 {offsets = [0, 0], sizes = [16, 32], strides = [1, 1]} : vector<16x96xf32> to vector<16x32xf32>
    %13 = vector.extract_strided_slice %6 {offsets = [0, 32], sizes = [16, 32], strides = [1, 1]} : vector<16x96xf32> to vector<16x32xf32>
    %14 = vector.extract_strided_slice %11 {offsets = [0, 0], sizes = [32, 32], strides = [1, 1]} : vector<32x64xf32> to vector<32x32xf32>
    %15 = vector.extract_strided_slice %11 {offsets = [0, 32], sizes = [32, 32], strides = [1, 1]} : vector<32x64xf32> to vector<32x32xf32>
    %16 = tpu.iota {dimensions = array<i32: 1>} : vector<32x32xi32>
    %17 = tpu.iota {dimensions = array<i32: 0>} : vector<32x32xi32>
    %c8_i32 = arith.constant 8 : i32
    %18 = vector.broadcast %c8_i32 : i32 to vector<32x32xi32>
    %19 = arith.cmpi sge, %16, %18 : vector<32x32xi32>
    %20 = arith.extui %19 : vector<32x32xi1> to vector<32x32xi32>
    %c0_i32 = arith.constant 0 : i32
    %21 = vector.broadcast %c0_i32 : i32 to vector<32x32xi32>
    %22 = arith.addi %21, %20 : vector<32x32xi32>
    %c16_i32 = arith.constant 16 : i32
    %23 = vector.broadcast %c16_i32 : i32 to vector<32x32xi32>
    %24 = arith.cmpi sge, %16, %23 : vector<32x32xi32>
    %25 = arith.extui %24 : vector<32x32xi1> to vector<32x32xi32>
    %26 = arith.addi %22, %25 : vector<32x32xi32>
    %c24_i32 = arith.constant 24 : i32
    %27 = vector.broadcast %c24_i32 : i32 to vector<32x32xi32>
    %28 = arith.cmpi sge, %16, %27 : vector<32x32xi32>
    %29 = arith.extui %28 : vector<32x32xi1> to vector<32x32xi32>
    %30 = arith.addi %26, %29 : vector<32x32xi32>
    %c8_i32_12 = arith.constant 8 : i32
    %31 = vector.broadcast %c8_i32_12 : i32 to vector<32x32xi32>
    %32 = arith.cmpi sge, %17, %31 : vector<32x32xi32>
    %33 = arith.extui %32 : vector<32x32xi1> to vector<32x32xi32>
    %c0_i32_13 = arith.constant 0 : i32
    %34 = vector.broadcast %c0_i32_13 : i32 to vector<32x32xi32>
    %35 = arith.addi %34, %33 : vector<32x32xi32>
    %c16_i32_14 = arith.constant 16 : i32
    %36 = vector.broadcast %c16_i32_14 : i32 to vector<32x32xi32>
    %37 = arith.cmpi sge, %17, %36 : vector<32x32xi32>
    %38 = arith.extui %37 : vector<32x32xi1> to vector<32x32xi32>
    %39 = arith.addi %35, %38 : vector<32x32xi32>
    %c24_i32_15 = arith.constant 24 : i32
    %40 = vector.broadcast %c24_i32_15 : i32 to vector<32x32xi32>
    %41 = arith.cmpi sge, %17, %40 : vector<32x32xi32>
    %42 = arith.extui %41 : vector<32x32xi1> to vector<32x32xi32>
    %43 = arith.addi %39, %42 : vector<32x32xi32>
    %44 = arith.cmpi eq, %30, %43 : vector<32x32xi32>
    %45 = arith.extui %44 : vector<32x32xi1> to vector<32x32xi32>
    %46 = arith.sitofp %45 : vector<32x32xi32> to vector<32x32xf32>
    %47 = vector.extract_strided_slice %13 {offsets = [0, 0], sizes = [8, 32], strides = [1, 1]} : vector<16x32xf32> to vector<8x32xf32>
    %48 = vector.extract_strided_slice %14 {offsets = [0, 0], sizes = [16, 32], strides = [1, 1]} : vector<32x32xf32> to vector<16x32xf32>
    %49 = tpu.concatenate %47, %47, %47, %47 in 0 : vector<8x32xf32>, vector<8x32xf32>, vector<8x32xf32>, vector<8x32xf32> -> vector<32x32xf32>
    %50 = arith.mulf %49, %46 : vector<32x32xf32>
    %cst_16 = arith.constant dense<0.000000e+00> : vector<32x16xf32>
    %51 = tpu.matmul %50, %48, %cst_16 {dimension_numbers = #tpu.dot_dimension_numbers<[1], [1], [0], [0], [0, 0, 1, 0], [], []>} : vector<32x32xf32>, vector<16x32xf32>, vector<32x16xf32> -> vector<32x16xf32>
    %52 = vector.extract_strided_slice %13 {offsets = [8, 0], sizes = [8, 32], strides = [1, 1]} : vector<16x32xf32> to vector<8x32xf32>
    %53 = vector.extract_strided_slice %14 {offsets = [16, 0], sizes = [16, 32], strides = [1, 1]} : vector<32x32xf32> to vector<16x32xf32>
    %54 = tpu.concatenate %52, %52, %52, %52 in 0 : vector<8x32xf32>, vector<8x32xf32>, vector<8x32xf32>, vector<8x32xf32> -> vector<32x32xf32>
    %55 = arith.mulf %54, %46 : vector<32x32xf32>
    %cst_17 = arith.constant dense<0.000000e+00> : vector<32x16xf32>
    %56 = tpu.matmul %55, %53, %cst_17 {dimension_numbers = #tpu.dot_dimension_numbers<[1], [1], [0], [0], [0, 0, 1, 0], [], []>} : vector<32x32xf32>, vector<16x32xf32>, vector<32x16xf32> -> vector<32x16xf32>
    %57 = tpu.concatenate %51, %56 in 0 : vector<32x16xf32>, vector<32x16xf32> -> vector<64x16xf32>
    %cst_18 = arith.constant dense<0xFF800000> : vector<64xf32>
    %58 = vector.multi_reduction <maximumf>, %57, %cst_18 [1] : vector<64x16xf32> to vector<64xf32>
    %59 = vector.shape_cast %58 : vector<64xf32> to vector<64x1xf32>
    %60 = vector.broadcast %59 : vector<64x1xf32> to vector<64x16xf32>
    %61 = arith.subf %57, %60 : vector<64x16xf32>
    %62 = math.exp %61 : vector<64x16xf32>
    %cst_19 = arith.constant dense<0.000000e+00> : vector<64xf32>
    %63 = vector.multi_reduction <add>, %62, %cst_19 [1] : vector<64x16xf32> to vector<64xf32>
    %64 = vector.shape_cast %63 : vector<64xf32> to vector<64x1xf32>
    %65 = vector.broadcast %64 : vector<64x1xf32> to vector<64x16xf32>
    %66 = arith.divf %62, %65 : vector<64x16xf32>
    %67 = vector.extract_strided_slice %66 {offsets = [0, 0], sizes = [32, 16], strides = [1, 1]} : vector<64x16xf32> to vector<32x16xf32>
    %68 = vector.extract_strided_slice %15 {offsets = [0, 0], sizes = [16, 32], strides = [1, 1]} : vector<32x32xf32> to vector<16x32xf32>
    %cst_20 = arith.constant dense<0.000000e+00> : vector<32x32xf32>
    %69 = tpu.matmul %67, %68, %cst_20 {dimension_numbers = #tpu.dot_dimension_numbers<[1], [0], [0], [1], [0, 0, 1, 1], [], []>} : vector<32x16xf32>, vector<16x32xf32>, vector<32x32xf32> -> vector<32x32xf32>
    %70 = arith.mulf %69, %46 : vector<32x32xf32>
    %71 = vector.extract_strided_slice %70 {offsets = [0, 0], sizes = [8, 32], strides = [1, 1]} : vector<32x32xf32> to vector<8x32xf32>
    %72 = vector.extract_strided_slice %67 {offsets = [0, 0], sizes = [8, 16], strides = [1, 1]} : vector<32x16xf32> to vector<8x16xf32>
    %73 = vector.extract_strided_slice %70 {offsets = [8, 0], sizes = [8, 32], strides = [1, 1]} : vector<32x32xf32> to vector<8x32xf32>
    %74 = arith.addf %71, %73 : vector<8x32xf32>
    %75 = vector.extract_strided_slice %67 {offsets = [8, 0], sizes = [8, 16], strides = [1, 1]} : vector<32x16xf32> to vector<8x16xf32>
    %76 = arith.addf %72, %75 : vector<8x16xf32>
    %77 = vector.extract_strided_slice %70 {offsets = [16, 0], sizes = [8, 32], strides = [1, 1]} : vector<32x32xf32> to vector<8x32xf32>
    %78 = arith.addf %74, %77 : vector<8x32xf32>
    %79 = vector.extract_strided_slice %67 {offsets = [16, 0], sizes = [8, 16], strides = [1, 1]} : vector<32x16xf32> to vector<8x16xf32>
    %80 = arith.addf %76, %79 : vector<8x16xf32>
    %81 = vector.extract_strided_slice %70 {offsets = [24, 0], sizes = [8, 32], strides = [1, 1]} : vector<32x32xf32> to vector<8x32xf32>
    %82 = arith.addf %78, %81 : vector<8x32xf32>
    %83 = vector.extract_strided_slice %67 {offsets = [24, 0], sizes = [8, 16], strides = [1, 1]} : vector<32x16xf32> to vector<8x16xf32>
    %84 = arith.addf %80, %83 : vector<8x16xf32>
    %cst_21 = arith.constant 2.500000e-01 : f32
    %85 = vector.broadcast %cst_21 : f32 to vector<8x16xf32>
    %86 = arith.mulf %84, %85 : vector<8x16xf32>
    %87 = vector.extract_strided_slice %66 {offsets = [32, 0], sizes = [32, 16], strides = [1, 1]} : vector<64x16xf32> to vector<32x16xf32>
    %88 = vector.extract_strided_slice %15 {offsets = [16, 0], sizes = [16, 32], strides = [1, 1]} : vector<32x32xf32> to vector<16x32xf32>
    %cst_22 = arith.constant dense<0.000000e+00> : vector<32x32xf32>
    %89 = tpu.matmul %87, %88, %cst_22 {dimension_numbers = #tpu.dot_dimension_numbers<[1], [0], [0], [1], [0, 0, 1, 1], [], []>} : vector<32x16xf32>, vector<16x32xf32>, vector<32x32xf32> -> vector<32x32xf32>
    %90 = arith.mulf %89, %46 : vector<32x32xf32>
    %91 = vector.extract_strided_slice %90 {offsets = [0, 0], sizes = [8, 32], strides = [1, 1]} : vector<32x32xf32> to vector<8x32xf32>
    %92 = vector.extract_strided_slice %87 {offsets = [0, 0], sizes = [8, 16], strides = [1, 1]} : vector<32x16xf32> to vector<8x16xf32>
    %93 = vector.extract_strided_slice %90 {offsets = [8, 0], sizes = [8, 32], strides = [1, 1]} : vector<32x32xf32> to vector<8x32xf32>
    %94 = arith.addf %91, %93 : vector<8x32xf32>
    %95 = vector.extract_strided_slice %87 {offsets = [8, 0], sizes = [8, 16], strides = [1, 1]} : vector<32x16xf32> to vector<8x16xf32>
    %96 = arith.addf %92, %95 : vector<8x16xf32>
    %97 = vector.extract_strided_slice %90 {offsets = [16, 0], sizes = [8, 32], strides = [1, 1]} : vector<32x32xf32> to vector<8x32xf32>
    %98 = arith.addf %94, %97 : vector<8x32xf32>
    %99 = vector.extract_strided_slice %87 {offsets = [16, 0], sizes = [8, 16], strides = [1, 1]} : vector<32x16xf32> to vector<8x16xf32>
    %100 = arith.addf %96, %99 : vector<8x16xf32>
    %101 = vector.extract_strided_slice %90 {offsets = [24, 0], sizes = [8, 32], strides = [1, 1]} : vector<32x32xf32> to vector<8x32xf32>
    %102 = arith.addf %98, %101 : vector<8x32xf32>
    %103 = vector.extract_strided_slice %87 {offsets = [24, 0], sizes = [8, 16], strides = [1, 1]} : vector<32x16xf32> to vector<8x16xf32>
    %104 = arith.addf %100, %103 : vector<8x16xf32>
    %cst_23 = arith.constant 2.500000e-01 : f32
    %105 = vector.broadcast %cst_23 : f32 to vector<8x16xf32>
    %106 = arith.mulf %104, %105 : vector<8x16xf32>
    %107 = tpu.concatenate %82, %102 in 0 : vector<8x32xf32>, vector<8x32xf32> -> vector<16x32xf32>
    %108 = tpu.concatenate %86, %106 in 0 : vector<8x16xf32>, vector<8x16xf32> -> vector<16x16xf32>
    %c0_24 = arith.constant 0 : index
    %c0_25 = arith.constant 0 : index
    %109 = vector.load %arg10[%c0_24, %c0_25] : memref<16x16xf32, #tpu.memory_space<vmem>>, vector<16x16xf32>
    tpu.vector_store %arg10[%c0_24, %c0_25], %108 {strides = array<i32>} : memref<16x16xf32, #tpu.memory_space<vmem>>, vector<16x16xf32>,
    %c0_26 = arith.constant 0 : index
    %c0_27 = arith.constant 0 : index
    %110 = vector.load %arg7[%c0_26, %c0_27] : memref<32x64xf32, #tpu.memory_space<vmem>>, vector<32x32xf32>
    %c0_28 = arith.constant 0 : index
    %c32 = arith.constant 32 : index
    %111 = vector.load %arg7[%c0_28, %c32] : memref<32x64xf32, #tpu.memory_space<vmem>>, vector<32x32xf32>
    %c0_29 = arith.constant 0 : index
    %c0_30 = arith.constant 0 : index
    %112 = vector.load %arg8[%c0_29, %c0_30] : memref<8x32xf32, #tpu.memory_space<vmem>>, vector<1x32xf32>
    %c1 = arith.constant 1 : index
    %c0_31 = arith.constant 0 : index
    %113 = vector.load %arg8[%c1, %c0_31] : memref<8x32xf32, #tpu.memory_space<vmem>>, vector<1x32xf32>
    %cst_32 = arith.constant dense<0.000000e+00> : vector<16x32xf32>
    %114 = tpu.matmul %107, %110, %cst_32 {dimension_numbers = #tpu.dot_dimension_numbers<[1], [0], [0], [1], [0, 0, 1, 1], [], []>} : vector<16x32xf32>, vector<32x32xf32>, vector<16x32xf32> -> vector<16x32xf32>
    %115 = vector.broadcast %112 : vector<1x32xf32> to vector<16x32xf32>
    %116 = arith.addf %114, %115 : vector<16x32xf32>
    %117 = arith.addf %12, %116 : vector<16x32xf32>
    %c2 = arith.constant 2 : index
    %c0_33 = arith.constant 0 : index
    %118 = vector.load %arg8[%c2, %c0_33] : memref<8x32xf32, #tpu.memory_space<vmem>>, vector<1x32xf32>
    %c3 = arith.constant 3 : index
    %c0_34 = arith.constant 0 : index
    %119 = vector.load %arg8[%c3, %c0_34] : memref<8x32xf32, #tpu.memory_space<vmem>>, vector<1x32xf32>
    %cst_35 = arith.constant dense<0.000000e+00> : vector<16xf32>
    %120 = vector.multi_reduction <add>, %117, %cst_35 [1] : vector<16x32xf32> to vector<16xf32>
    %121 = vector.shape_cast %120 : vector<16xf32> to vector<16x1xf32>
    %cst_36 = arith.constant 3.200000e+01 : f32
    %122 = vector.broadcast %cst_36 : f32 to vector<16x1xf32>
    %123 = arith.divf %121, %122 : vector<16x1xf32>
    %124 = vector.broadcast %123 : vector<16x1xf32> to vector<16x32xf32>
    %125 = arith.subf %117, %124 : vector<16x32xf32>
    %126 = arith.mulf %125, %125 : vector<16x32xf32>
    %cst_37 = arith.constant dense<0.000000e+00> : vector<16xf32>
    %127 = vector.multi_reduction <add>, %126, %cst_37 [1] : vector<16x32xf32> to vector<16xf32>
    %128 = vector.shape_cast %127 : vector<16xf32> to vector<16x1xf32>
    %cst_38 = arith.constant 3.200000e+01 : f32
    %129 = vector.broadcast %cst_38 : f32 to vector<16x1xf32>
    %130 = arith.divf %128, %129 : vector<16x1xf32>
    %131 = vector.broadcast %123 : vector<16x1xf32> to vector<16x32xf32>
    %132 = arith.subf %117, %131 : vector<16x32xf32>
    %cst_39 = arith.constant 9.99999974E-6 : f32
    %133 = vector.broadcast %cst_39 : f32 to vector<16x1xf32>
    %134 = arith.addf %130, %133 : vector<16x1xf32>
    %135 = math.rsqrt %134 : vector<16x1xf32>
    %136 = vector.broadcast %135 : vector<16x1xf32> to vector<16x32xf32>
    %137 = arith.mulf %132, %136 : vector<16x32xf32>
    %138 = vector.broadcast %118 : vector<1x32xf32> to vector<16x32xf32>
    %139 = arith.mulf %137, %138 : vector<16x32xf32>
    %140 = vector.broadcast %119 : vector<1x32xf32> to vector<16x32xf32>
    %141 = arith.addf %139, %140 : vector<16x32xf32>
    %cst_40 = arith.constant dense<0.000000e+00> : vector<16x32xf32>
    %142 = tpu.matmul %141, %111, %cst_40 {dimension_numbers = #tpu.dot_dimension_numbers<[1], [0], [0], [1], [0, 0, 1, 1], [], []>} : vector<16x32xf32>, vector<32x32xf32>, vector<16x32xf32> -> vector<16x32xf32>
    %143 = vector.broadcast %113 : vector<1x32xf32> to vector<16x32xf32>
    %144 = arith.addf %142, %143 : vector<16x32xf32>
    %cst_41 = arith.constant 0.000000e+00 : f32
    %145 = vector.broadcast %cst_41 : f32 to vector<16x32xf32>
    %146 = arith.maximumf %144, %145 : vector<16x32xf32>
    %147 = arith.addf %141, %146 : vector<16x32xf32>
    %c4 = arith.constant 4 : index
    %c0_42 = arith.constant 0 : index
    %148 = vector.load %arg8[%c4, %c0_42] : memref<8x32xf32, #tpu.memory_space<vmem>>, vector<1x32xf32>
    %c5 = arith.constant 5 : index
    %c0_43 = arith.constant 0 : index
    %149 = vector.load %arg8[%c5, %c0_43] : memref<8x32xf32, #tpu.memory_space<vmem>>, vector<1x32xf32>
    %cst_44 = arith.constant dense<0.000000e+00> : vector<16xf32>
    %150 = vector.multi_reduction <add>, %147, %cst_44 [1] : vector<16x32xf32> to vector<16xf32>
    %151 = vector.shape_cast %150 : vector<16xf32> to vector<16x1xf32>
    %cst_45 = arith.constant 3.200000e+01 : f32
    %152 = vector.broadcast %cst_45 : f32 to vector<16x1xf32>
    %153 = arith.divf %151, %152 : vector<16x1xf32>
    %154 = vector.broadcast %153 : vector<16x1xf32> to vector<16x32xf32>
    %155 = arith.subf %147, %154 : vector<16x32xf32>
    %156 = arith.mulf %155, %155 : vector<16x32xf32>
    %cst_46 = arith.constant dense<0.000000e+00> : vector<16xf32>
    %157 = vector.multi_reduction <add>, %156, %cst_46 [1] : vector<16x32xf32> to vector<16xf32>
    %158 = vector.shape_cast %157 : vector<16xf32> to vector<16x1xf32>
    %cst_47 = arith.constant 3.200000e+01 : f32
    %159 = vector.broadcast %cst_47 : f32 to vector<16x1xf32>
    %160 = arith.divf %158, %159 : vector<16x1xf32>
    %161 = vector.broadcast %153 : vector<16x1xf32> to vector<16x32xf32>
    %162 = arith.subf %147, %161 : vector<16x32xf32>
    %cst_48 = arith.constant 9.99999974E-6 : f32
    %163 = vector.broadcast %cst_48 : f32 to vector<16x1xf32>
    %164 = arith.addf %160, %163 : vector<16x1xf32>
    %165 = math.rsqrt %164 : vector<16x1xf32>
    %166 = vector.broadcast %165 : vector<16x1xf32> to vector<16x32xf32>
    %167 = arith.mulf %162, %166 : vector<16x32xf32>
    %168 = vector.broadcast %148 : vector<1x32xf32> to vector<16x32xf32>
    %169 = arith.mulf %167, %168 : vector<16x32xf32>
    %170 = vector.broadcast %149 : vector<1x32xf32> to vector<16x32xf32>
    %171 = arith.addf %169, %170 : vector<16x32xf32>
    %172 = vector.extract_strided_slice %6 {offsets = [0, 64], sizes = [16, 32], strides = [1, 1]} : vector<16x96xf32> to vector<16x32xf32>
    %173 = arith.negf %172 : vector<16x32xf32>
    %174 = math.exp %173 : vector<16x32xf32>
    %cst_49 = arith.constant 1.000000e+00 : f32
    %175 = vector.broadcast %cst_49 : f32 to vector<16x32xf32>
    %176 = arith.addf %175, %174 : vector<16x32xf32>
    %177 = arith.divf %175, %176 : vector<16x32xf32>
    %178 = arith.mulf %172, %177 : vector<16x32xf32>
    %179 = arith.mulf %171, %178 : vector<16x32xf32>
    %c0_50 = arith.constant 0 : index
    %c0_51 = arith.constant 0 : index
    %180 = vector.load %arg9[%c0_50, %c0_51] : memref<16x32xf32, #tpu.memory_space<vmem>>, vector<16x32xf32>
    tpu.vector_store %arg9[%c0_50, %c0_51], %179 {strides = array<i32>} : memref<16x32xf32, #tpu.memory_space<vmem>>, vector<16x32xf32>,
    return
  }
  func.func @transform_0(%arg0: i32) -> (i32, i32) {
    %c0_i32 = arith.constant 0 : i32
    %c0_i32_0 = arith.constant 0 : i32
    return %arg0, %c0_i32 : i32, i32
  }
  func.func @transform_1(%arg0: i32) -> (i32, i32) {
    %c0_i32 = arith.constant 0 : i32
    %c0_i32_0 = arith.constant 0 : i32
    return %arg0, %c0_i32 : i32, i32
  }
  func.func @transform_2(%arg0: i32) -> (i32, i32) {
    %c0_i32 = arith.constant 0 : i32
    %c0_i32_0 = arith.constant 0 : i32
    %c0_i32_1 = arith.constant 0 : i32
    return %c0_i32, %c0_i32_0 : i32, i32
  }
  func.func @transform_3(%arg0: i32) -> (i32, i32) {
    %c0_i32 = arith.constant 0 : i32
    %c0_i32_0 = arith.constant 0 : i32
    %c0_i32_1 = arith.constant 0 : i32
    return %c0_i32, %c0_i32_0 : i32, i32
  }
  func.func @transform_4(%arg0: i32) -> (i32, i32) {
    %c0_i32 = arith.constant 0 : i32
    %c0_i32_0 = arith.constant 0 : i32
    %c0_i32_1 = arith.constant 0 : i32
    return %c0_i32, %c0_i32_0 : i32, i32
  }
  func.func @transform_5(%arg0: i32) -> (i32, i32) {
    %c0_i32 = arith.constant 0 : i32
    %c0_i32_0 = arith.constant 0 : i32
    %c0_i32_1 = arith.constant 0 : i32
    return %c0_i32, %c0_i32_0 : i32, i32
  }
  func.func @transform_6(%arg0: i32) -> (i32, i32) {
    %c0_i32 = arith.constant 0 : i32
    %c0_i32_0 = arith.constant 0 : i32
    %c0_i32_1 = arith.constant 0 : i32
    return %c0_i32, %c0_i32_0 : i32, i32
  }
  func.func @transform_7(%arg0: i32) -> (i32, i32) {
    %c0_i32 = arith.constant 0 : i32
    %c0_i32_0 = arith.constant 0 : i32
    %c0_i32_1 = arith.constant 0 : i32
    return %c0_i32, %c0_i32_0 : i32, i32
  }
  func.func @transform_8(%arg0: i32) -> (i32, i32) {
    %c0_i32 = arith.constant 0 : i32
    %c0_i32_0 = arith.constant 0 : i32
    return %arg0, %c0_i32 : i32, i32
  }
  func.func @transform_9(%arg0: i32) -> (i32, i32) {
    %c0_i32 = arith.constant 0 : i32
    %c0_i32_0 = arith.constant 0 : i32
    return %arg0, %c0_i32 : i32, i32
  }
}

</mosaic_0001>

<llo_original>
// kernel: tpu_custom_call.1
$region0: #{tpu_custom_call.1}
  #allocation0 [shape = 'u32[]', space=smem, size = 0x4, offset = 0x4, fixed_abs, tag = 'smem constant byte address 0x4 - core index']
  #allocation1 [shape = 'u32[144,128]{1,0:T(1,128)}', space=vmem, size = 0x12000, scoped, tag = 'internal scratch']
  %s0 = inlined_call_operand.hbm [shape: f32[16,24], index: 0, kind: input, shape index: {}]
  %s1 = inlined_call_operand.vmem [shape: f32[32,16], index: 1, kind: input, shape index: {}]
  %s2 = inlined_call_operand.vmem [shape: f32[24,96], index: 2, kind: input, shape index: {}]
  %s3 = inlined_call_operand.vmem [shape: f32[1,96], index: 3, kind: input, shape index: {}]
  %s4 = inlined_call_operand.hbm [shape: f32[16,64], index: 4, kind: input, shape index: {}]
  %s5 = inlined_call_operand.vmem [shape: f32[1,64], index: 5, kind: input, shape index: {}]
  %s6 = inlined_call_operand.vmem [shape: f32[32,64], index: 6, kind: input, shape index: {}]
  %s7 = inlined_call_operand.vmem [shape: f32[8,32], index: 7, kind: input, shape index: {}]
  %s8 = inlined_call_operand.hbm [shape: f32[16,32], index: 8, kind: output, shape index: {0}]
  %s9 = inlined_call_operand.hbm [shape: f32[16,16], index: 9, kind: output, shape index: {1}]
  %10 = xla_tuple %s8, %s9
  %s11 = sld [smem:[#allocation0]]
  $region58: #{tpu_custom_call.1} parent=0
    _
  %s13 = ssub.s32 1, %s11
  %s14 = scalar_select 0, %s13, %s11
  $region1: #{tpu_custom_call.1} parent=0
    #allocation2 [shape = 'u8[8192]{0}', space=vmem, size = 0x2000, scoped, tag = 'input window, operand 0, single buffered']
    #allocation3 [shape = 's32[1]{0}', space=sflag, size = 0x4, scoped, tag = 'scoped memory for tpu_custom_call.1']
    #allocation4 [shape = 's32[1]{0}', space=sflag, size = 0x4, scoped, tag = 'scoped memory for tpu_custom_call.1']
    #allocation5 [shape = 'u8[8192]{0}', space=vmem, size = 0x2000, scoped, tag = 'input window, operand 4, single buffered']
    #allocation6 [shape = 's32[1]{0}', space=sflag, size = 0x4, scoped, tag = 'scoped memory for tpu_custom_call.1']
    #allocation7 [shape = 'u8[8192]{0}', space=vmem, size = 0x2000, scoped, tag = 'output window, operand 0, single buffered']
    #allocation8 [shape = 'u8[8192]{0}', space=vmem, size = 0x2000, scoped, tag = 'output window, operand 1, single buffered']
    #allocation9 [shape = 's32[1]{0}', space=sflag, size = 0x4, scoped, tag = 'scoped memory for tpu_custom_call.1']
    %15 = vsyncpa [#allocation3], 0
    %16 = vsyncpa [#allocation6], 0
    %17 = vsyncpa [#allocation4], 0
    %18 = vsyncpa [#allocation9], 0
    // Predicated region
    $region2: #{tpu_custom_call.1} parent=1 // pred_check
      _
    $region3: #{tpu_custom_call.1} parent=1 // pred_check_branch
      %20 = sbr.rel (0) target = $region5
    $region4: #{tpu_custom_call.1} parent=1 // pred_region
      %s22 = ssub.s32 256, 256
      %23 = vsyncadd [#allocation3], %s22
      %s24 = sshll.u32 [#allocation2], 4
      %s25 = int_to_ptr.vmem [resolvable:$true] %s24
      %30 = dma.hbm_to_vmem [thread:$0]  %s0, 256, %s25, [#allocation3], 128, 128, 8
    $region5: #{tpu_custom_call.1} parent=1 // pred_fallthru
      _
    // Predicated region
    $region6: #{tpu_custom_call.1} parent=1 // pred_check
      _
    $region7: #{tpu_custom_call.1} parent=1 // pred_check_branch
      %32 = sbr.rel (0) target = $region9
    $region8: #{tpu_custom_call.1} parent=1 // pred_region
      _
    $region9: #{tpu_custom_call.1} parent=1 // pred_fallthru
      _
    // Predicated region
    $region10: #{tpu_custom_call.1} parent=1 // pred_check
      _
    $region11: #{tpu_custom_call.1} parent=1 // pred_check_branch
      %34 = sbr.rel (0) target = $region13
    $region12: #{tpu_custom_call.1} parent=1 // pred_region
      _
    $region13: #{tpu_custom_call.1} parent=1 // pred_fallthru
      _
    // Predicated region
    $region14: #{tpu_custom_call.1} parent=1 // pred_check
      _
    $region15: #{tpu_custom_call.1} parent=1 // pred_check_branch
      %36 = sbr.rel (0) target = $region17
    $region16: #{tpu_custom_call.1} parent=1 // pred_region
      _
    $region17: #{tpu_custom_call.1} parent=1 // pred_fallthru
      _
    // Predicated region
    $region18: #{tpu_custom_call.1} parent=1 // pred_check
      _
    $region19: #{tpu_custom_call.1} parent=1 // pred_check_branch
      %38 = sbr.rel (0) target = $region21
    $region20: #{tpu_custom_call.1} parent=1 // pred_region
      %s40 = ssub.s32 256, 256
      %41 = vsyncadd [#allocation6], %s40
      %s42 = sshll.u32 [#allocation5], 4
      %s43 = int_to_ptr.vmem [resolvable:$true] %s42
      %48 = dma.hbm_to_vmem [thread:$0]  %s4, 256, %s43, [#allocation6], 128, 128, 8
    $region21: #{tpu_custom_call.1} parent=1 // pred_fallthru
      _
    // Predicated region
    $region22: #{tpu_custom_call.1} parent=1 // pred_check
      _
    $region23: #{tpu_custom_call.1} parent=1 // pred_check_branch
      %50 = sbr.rel (0) target = $region25
    $region24: #{tpu_custom_call.1} parent=1 // pred_region
      _
    $region25: #{tpu_custom_call.1} parent=1 // pred_fallthru
      _
    // Predicated region
    $region26: #{tpu_custom_call.1} parent=1 // pred_check
      _
    $region27: #{tpu_custom_call.1} parent=1 // pred_check_branch
      %52 = sbr.rel (0) target = $region29
    $region28: #{tpu_custom_call.1} parent=1 // pred_region
      _
    $region29: #{tpu_custom_call.1} parent=1 // pred_fallthru
      _
    // Predicated region
    $region30: #{tpu_custom_call.1} parent=1 // pred_check
      _
    $region31: #{tpu_custom_call.1} parent=1 // pred_check_branch
      %54 = sbr.rel (0) target = $region33
    $region32: #{tpu_custom_call.1} parent=1 // pred_region
      _
    $region33: #{tpu_custom_call.1} parent=1 // pred_fallthru
      _
    // Predicated region
    $region34: #{tpu_custom_call.1} parent=1 // pred_check
      _
    $region35: #{tpu_custom_call.1} parent=1 // pred_check_branch
      %56 = sbr.rel (0) target = $region37
    $region36: #{tpu_custom_call.1} parent=1 // pred_region
      %57 = dma.done [#allocation3], 256
    $region37: #{tpu_custom_call.1} parent=1 // pred_fallthru
      _
    // Predicated region
    $region38: #{tpu_custom_call.1} parent=1 // pred_check
      _
    $region39: #{tpu_custom_call.1} parent=1 // pred_check_branch
      %59 = sbr.rel (0) target = $region41
    $region40: #{tpu_custom_call.1} parent=1 // pred_region
      %60 = dma.done [#allocation6], 256
    $region41: #{tpu_custom_call.1} parent=1 // pred_fallthru
      _
    %v61 = vld [vmem:[#allocation2] sm:$0xff]
    %v62 = vld [vmem:[#allocation2 + $0x8] sm:$0xff]
    %v63 = vld [vmem:[%s1] sm:$0xff]
    %v64 = vld [vmem:[%s1 + $0x8] sm:$0xff]
    %v65 = vld [vmem:[%s1 + $0x10] sm:$0xff]
    %v66 = vld [vmem:[%s1 + $0x18] sm:$0xff]
    %v67 = vld [vmem:[%s2] sm:$0xff]
    %v68 = vld [vmem:[%s2 + $0x8] sm:$0xff]
    %v69 = vld [vmem:[%s2 + $0x10] sm:$0xff]
    %v70 = vld [vmem:[%s3] sm:$0x1]
    %v72 = vlaneseq
    %v73 = vshrl.u32 %v72, 7
    %v74 = vsub.s32 0, %v73
    %v75 = vrot.slane %v70, %v74
    %vm77 = vcmask 195584
    %v79 = vsel %vm77, %v61, 0
    %v82 = vsel %vm77, %v62, 0
    %84 = vmatprep.subr.mxu0 0.0
    %85 = vmatpush1.msra.mxu0 %v67
    %86 = vmatprep.subr.mxu0 0.0
    %87 = vmatpush1.msra.mxu0 %v68
    %88 = vmatprep.subr.mxu0 0.0
    %89 = vmatpush1.msra.mxu0 %v69
    %90 = vmatprep.subr.mxu0 0.0
    %91 = vmatpush1.msra.mxu0 0.0
    %92 = vmatprep.subr.mxu0 0.0
    %93 = vmatpush1.msra.mxu0 0.0
    %94 = vmatprep.subr.mxu0 0.0
    %95 = vmatpush1.msra.mxu0 0.0
    %96 = vmatprep.subr.mxu0 0.0
    %97 = vmatpush1.msra.mxu0 0.0
    %98 = vmatprep.subr.mxu0 0.0
    %99 = vmatpush1.msra.mxu0 0.0
    %100 = vmatprep.subr.mxu0 0.0
    %101 = vmatpush1.msra.mxu0 0.0
    %102 = vmatprep.subr.mxu0 0.0
    %103 = vmatpush1.msra.mxu0 0.0
    %104 = vmatprep.subr.mxu0 0.0
    %105 = vmatpush1.msra.mxu0 0.0
    %106 = vmatprep.subr.mxu0 0.0
    %107 = vmatpush1.msra.mxu0 0.0
    %108 = vmatprep.subr.mxu0 0.0
    %109 = vmatpush1.msra.mxu0 0.0
    %110 = vmatprep.subr.mxu0 0.0
    %111 = vmatpush1.msra.mxu0 0.0
    %112 = vmatprep.subr.mxu0 0.0
    %113 = vmatpush1.msra.mxu0 0.0
    %114 = vmatprep.subr.mxu0 0.0
    %115 = vmatpush1.msra.mxu0 0.0
    %116 = vmatprep.subr.mxu0 0.0
    %117 = vmatpush1.msra.mxu0 0.0
    %118 = vmatprep.subr.mxu0 0.0
    %119 = vmatpush1.msra.mxu0 0.0
    %120 = vmatprep.subr.mxu0 0.0
    %121 = vmatpush1.msra.mxu0 0.0
    %122 = vmatprep.subr.mxu0 0.0
    %123 = vmatpush1.msra.mxu0 0.0
    %124 = vmatprep.subr.mxu0 0.0
    %125 = vmatpush1.msra.mxu0 0.0
    %126 = vmatprep.subr.mxu0 0.0
    %127 = vmatpush1.msra.mxu0 0.0
    %128 = vmatprep.subr.mxu0 0.0
    %129 = vmatpush1.msra.mxu0 0.0
    %130 = vmatprep.subr.mxu0 0.0
    %131 = vmatpush1.msra.mxu0 0.0
    %132 = vmatprep.subr.mxu0 0.0
    %133 = vmatpush1.msra.mxu0 0.0
    %134 = vmatprep.subr.mxu0 0.0
    %135 = vmatpush1.msra.mxu0 0.0
    %136 = vmatprep.subr.mxu0 0.0
    %137 = vmatpush1.msra.mxu0 0.0
    %138 = vmatprep.subr.mxu0 0.0
    %139 = vmatpush1.msra.mxu0 0.0
    %140 = vmatprep.subr.mxu0 0.0
    %141 = vmatpush1.msra.mxu0 0.0
    %142 = vmatprep.subr.mxu0 0.0
    %143 = vmatpush1.msra.mxu0 0.0
    %144 = vmatprep.subr.mxu0 0.0
    %145 = vmatpush1.msra.mxu0 0.0
    %146 = vmatprep.subr.mxu0 0.0
    %147 = vmatpush1.msra.mxu0 0.0
    %148 = vmatprep.mubr.f32.mxu0 0.0
    %149 = vmatmul.mubr.f32.gmra.mrb[0].mxu0 %v79
    %v150 = vpop.f32.mrb[0].mxu0
    %v151 = vadd.f32 %v75, %v150
    %v152 = vpop.f32.mrb[0].mxu0
    %153 = vmatprep.mubr.f32.mxu0 0.0
    %154 = vmatmul.mubr.f32.gmra.mrb[0].mxu0 %v82
    %v155 = vpop.f32.mrb[0].mxu0
    %v156 = vadd.f32 %v75, %v155
    %v157 = vpop.f32.mrb[0].mxu0
    %158 = vdwg.mxu0
    %v159 = vld [vmem:[#allocation5] sm:$0xff]
    %v160 = vld [vmem:[#allocation5 + $0x8] sm:$0xff]
    %v161 = vld [vmem:[%s5] sm:$0x1]
    %v163 = vlaneseq
    %v164 = vshrl.u32 %v163, 7
    %v165 = vsub.s32 0, %v164
    %v166 = vrot.slane %v161, %v165
    %vm168 = vcmask 130048
    %v170 = vsel %vm168, %v63, 0
    %v173 = vsel %vm168, %v64, 0
    %v176 = vsel %vm168, %v65, 0
    %v179 = vsel %vm168, %v66, 0
    %181 = vmatprep.subr.mxu0 0.0
    %182 = vmatpush1.msra.mxu0 %v159
    %183 = vmatprep.subr.mxu0 0.0
    %184 = vmatpush1.msra.mxu0 %v160
    %185 = vmatprep.subr.mxu0 0.0
    %186 = vmatpush1.msra.mxu0 0.0
    %187 = vmatprep.subr.mxu0 0.0
    %188 = vmatpush1.msra.mxu0 0.0
    %189 = vmatprep.subr.mxu0 0.0
    %190 = vmatpush1.msra.mxu0 0.0
    %191 = vmatprep.subr.mxu0 0.0
    %192 = vmatpush1.msra.mxu0 0.0
    %193 = vmatprep.subr.mxu0 0.0
    %194 = vmatpush1.msra.mxu0 0.0
    %195 = vmatprep.subr.mxu0 0.0
    %196 = vmatpush1.msra.mxu0 0.0
    %197 = vmatprep.subr.mxu0 0.0
    %198 = vmatpush1.msra.mxu0 0.0
    %199 = vmatprep.subr.mxu0 0.0
    %200 = vmatpush1.msra.mxu0 0.0
    %201 = vmatprep.subr.mxu0 0.0
    %202 = vmatpush1.msra.mxu0 0.0
    %203 = vmatprep.subr.mxu0 0.0
    %204 = vmatpush1.msra.mxu0 0.0
    %205 = vmatprep.subr.mxu0 0.0
    %206 = vmatpush1.msra.mxu0 0.0
    %207 = vmatprep.subr.mxu0 0.0
    %208 = vmatpush1.msra.mxu0 0.0
    %209 = vmatprep.subr.mxu0 0.0
    %210 = vmatpush1.msra.mxu0 0.0
    %211 = vmatprep.subr.mxu0 0.0
    %212 = vmatpush1.msra.mxu0 0.0
    %213 = vmatprep.subr.mxu0 0.0
    %214 = vmatpush1.msra.mxu0 0.0
    %215 = vmatprep.subr.mxu0 0.0
    %216 = vmatpush1.msra.mxu0 0.0
    %217 = vmatprep.subr.mxu0 0.0
    %218 = vmatpush1.msra.mxu0 0.0
    %219 = vmatprep.subr.mxu0 0.0
    %220 = vmatpush1.msra.mxu0 0.0
    %221 = vmatprep.subr.mxu0 0.0
    %222 = vmatpush1.msra.mxu0 0.0
    %223 = vmatprep.subr.mxu0 0.0
    %224 = vmatpush1.msra.mxu0 0.0
    %225 = vmatprep.subr.mxu0 0.0
    %226 = vmatpush1.msra.mxu0 0.0
    %227 = vmatprep.subr.mxu0 0.0
    %228 = vmatpush1.msra.mxu0 0.0
    %229 = vmatprep.subr.mxu0 0.0
    %230 = vmatpush1.msra.mxu0 0.0
    %231 = vmatprep.subr.mxu0 0.0
    %232 = vmatpush1.msra.mxu0 0.0
    %233 = vmatprep.subr.mxu0 0.0
    %234 = vmatpush1.msra.mxu0 0.0
    %235 = vmatprep.subr.mxu0 0.0
    %236 = vmatpush1.msra.mxu0 0.0
    %237 = vmatprep.subr.mxu0 0.0
    %238 = vmatpush1.msra.mxu0 0.0
    %239 = vmatprep.subr.mxu0 0.0
    %240 = vmatpush1.msra.mxu0 0.0
    %241 = vmatprep.subr.mxu0 0.0
    %242 = vmatpush1.msra.mxu0 0.0
    %243 = vmatprep.subr.mxu0 0.0
    %244 = vmatpush1.msra.mxu0 0.0
    %245 = vmatprep.mubr.f32.mxu0 0.0
    %246 = vmatmul.mubr.f32.gmra.mrb[0].mxu0 %v170
    %v247 = vpop.f32.mrb[0].mxu0
    %v248 = vadd.f32 %v166, %v247
    %v249 = vpop.f32.mrb[0].mxu0
    %250 = vmatprep.mubr.f32.mxu0 0.0
    %251 = vmatmul.mubr.f32.gmra.mrb[0].mxu0 %v173
    %v252 = vpop.f32.mrb[0].mxu0
    %v253 = vadd.f32 %v166, %v252
    %v254 = vpop.f32.mrb[0].mxu0
    %255 = vmatprep.mubr.f32.mxu0 0.0
    %256 = vmatmul.mubr.f32.gmra.mrb[0].mxu0 %v176
    %v257 = vpop.f32.mrb[0].mxu0
    %v258 = vadd.f32 %v166, %v257
    %v259 = vpop.f32.mrb[0].mxu0
    %260 = vmatprep.mubr.f32.mxu0 0.0
    %261 = vmatmul.mubr.f32.gmra.mrb[0].mxu0 %v179
    %v262 = vpop.f32.mrb[0].mxu0
    %v263 = vadd.f32 %v166, %v262
    %v264 = vpop.f32.mrb[0].mxu0
    %265 = vdwg.mxu0
    %v266 = vlaneseq
    %v267 = vand.u32 %v266, 127
    %v268 = vlaneseq
    %v269 = vshrl.u32 %v268, 7
    %v270 = vadd.s32 %v269, 8
    %v271 = vadd.s32 %v269, 16
    %v272 = vadd.s32 %v269, 24
    %vm273 = vcmp.ge.s32.totalorder %v267, 8
    %v274 = vsel %vm273, 1, 0
    %vm275 = vcmp.ge.s32.totalorder %v267, 16
    %v276 = vsel %vm275, 1, 0
    %v277 = vadd.s32 %v274, %v276
    %vm278 = vcmp.ge.s32.totalorder %v267, 24
    %v279 = vsel %vm278, 1, 0
    %v280 = vadd.s32 %v277, %v279
    %vm281 = vcmp.ge.s32.totalorder %v269, 8
    %vm282 = vcmp.ge.s32.totalorder %v270, 8
    %vm283 = vcmp.ge.s32.totalorder %v271, 8
    %vm284 = vcmp.ge.s32.totalorder %v272, 8
    %v285 = vsel %vm281, 1, 0
    %v286 = vsel %vm282, 1, 0
    %v287 = vsel %vm283, 1, 0
    %v288 = vsel %vm284, 1, 0
    %vm289 = vcmp.ge.s32.totalorder %v269, 16
    %vm290 = vcmp.ge.s32.totalorder %v270, 16
    %vm291 = vcmp.ge.s32.totalorder %v271, 16
    %vm292 = vcmp.ge.s32.totalorder %v272, 16
    %v293 = vsel %vm289, 1, 0
    %v294 = vsel %vm290, 1, 0
    %v295 = vsel %vm291, 1, 0
    %v296 = vsel %vm292, 1, 0
    %v297 = vadd.s32 %v285, %v293
    %v298 = vadd.s32 %v286, %v294
    %v299 = vadd.s32 %v287, %v295
    %v300 = vadd.s32 %v288, %v296
    %vm301 = vcmp.ge.s32.totalorder %v269, 24
    %vm302 = vcmp.ge.s32.totalorder %v270, 24
    %vm303 = vcmp.ge.s32.totalorder %v271, 24
    %vm304 = vcmp.ge.s32.totalorder %v272, 24
    %v305 = vsel %vm301, 1, 0
    %v306 = vsel %vm302, 1, 0
    %v307 = vsel %vm303, 1, 0
    %v308 = vsel %vm304, 1, 0
    %v309 = vadd.s32 %v297, %v305
    %v310 = vadd.s32 %v298, %v306
    %v311 = vadd.s32 %v299, %v307
    %v312 = vadd.s32 %v300, %v308
    %vm313 = vcmp.eq.s32.totalorder %v280, %v309
    %vm314 = vcmp.eq.s32.totalorder %v280, %v310
    %vm315 = vcmp.eq.s32.totalorder %v280, %v311
    %vm316 = vcmp.eq.s32.totalorder %v280, %v312
    %v317 = vsel %vm313, 1, 0
    %v318 = vsel %vm314, 1, 0
    %v319 = vsel %vm315, 1, 0
    %v320 = vsel %vm316, 1, 0
    %v321 = vcvt.s32.f32 %v317
    %v322 = vcvt.s32.f32 %v318
    %v323 = vcvt.s32.f32 %v319
    %v324 = vcvt.s32.f32 %v320
    %329 = vrot.lane.b32.xlu0 %v321, 32
    %v330 = vpop.permute.xlu0 %329
    %331 = vrot.lane.b32.xlu0 %v322, 32
    %v332 = vpop.permute.xlu0 %331
    %333 = vrot.lane.b32.xlu0 %v323, 32
    %v334 = vpop.permute.xlu0 %333
    %335 = vrot.lane.b32.xlu0 %v324, 32
    %v336 = vpop.permute.xlu0 %335
    %v341 = vmul.f32 %v151, %v330
    %v342 = vmul.f32 %v151, %v332
    %v343 = vmul.f32 %v151, %v334
    %v344 = vmul.f32 %v151, %v336
    %349 = vrot.lane.b32.xlu0 %v341, 96
    %v350 = vpop.permute.xlu0 %349
    %351 = vrot.lane.b32.xlu0 %v342, 96
    %v352 = vpop.permute.xlu0 %351
    %353 = vrot.lane.b32.xlu0 %v343, 96
    %v354 = vpop.permute.xlu0 %353
    %355 = vrot.lane.b32.xlu0 %v344, 96
    %v356 = vpop.permute.xlu0 %355
    %vm357 = vcmask 261120
    %v358 = vsel %vm357, %v350, 0
    %v360 = vsel %vm357, %v352, 0
    %v362 = vsel %vm357, %v354, 0
    %v364 = vsel %vm357, %v356, 0
    %v367 = vsel %vm357, %v248, 0
    %v370 = vsel %vm357, %v253, 0
    %372 = vmatprep.subr.mxu0 0.0
    %373 = vmatpush1.xpose.msra.mxu0 %v367
    %374 = vmatprep.subr.mxu0 0.0
    %375 = vmatpush1.xpose.msra.mxu0 %v370
    %376 = vmatprep.subr.mxu0 0.0
    %377 = vmatpush1.xpose.msra.mxu0 0.0
    %378 = vmatprep.subr.mxu0 0.0
    %379 = vmatpush1.xpose.msra.mxu0 0.0
    %380 = vmatprep.subr.mxu0 0.0
    %381 = vmatpush1.xpose.msra.mxu0 0.0
    %382 = vmatprep.subr.mxu0 0.0
    %383 = vmatpush1.xpose.msra.mxu0 0.0
    %384 = vmatprep.subr.mxu0 0.0
    %385 = vmatpush1.xpose.msra.mxu0 0.0
    %386 = vmatprep.subr.mxu0 0.0
    %387 = vmatpush1.xpose.msra.mxu0 0.0
    %388 = vmatprep.subr.mxu0 0.0
    %389 = vmatpush1.xpose.msra.mxu0 0.0
    %390 = vmatprep.subr.mxu0 0.0
    %391 = vmatpush1.xpose.msra.mxu0 0.0
    %392 = vmatprep.subr.mxu0 0.0
    %393 = vmatpush1.xpose.msra.mxu0 0.0
    %394 = vmatprep.subr.mxu0 0.0
    %395 = vmatpush1.xpose.msra.mxu0 0.0
    %396 = vmatprep.subr.mxu0 0.0
    %397 = vmatpush1.xpose.msra.mxu0 0.0
    %398 = vmatprep.subr.mxu0 0.0
    %399 = vmatpush1.xpose.msra.mxu0 0.0
    %400 = vmatprep.subr.mxu0 0.0
    %401 = vmatpush1.xpose.msra.mxu0 0.0
    %402 = vmatprep.subr.mxu0 0.0
    %403 = vmatpush1.xpose.msra.mxu0 0.0
    %404 = vmatprep.subr.mxu0 0.0
    %405 = vmatpush1.xpose.msra.mxu0 0.0
    %406 = vmatprep.subr.mxu0 0.0
    %407 = vmatpush1.xpose.msra.mxu0 0.0
    %408 = vmatprep.subr.mxu0 0.0
    %409 = vmatpush1.xpose.msra.mxu0 0.0
    %410 = vmatprep.subr.mxu0 0.0
    %411 = vmatpush1.xpose.msra.mxu0 0.0
    %412 = vmatprep.subr.mxu0 0.0
    %413 = vmatpush1.xpose.msra.mxu0 0.0
    %414 = vmatprep.subr.mxu0 0.0
    %415 = vmatpush1.xpose.msra.mxu0 0.0
    %416 = vmatprep.subr.mxu0 0.0
    %417 = vmatpush1.xpose.msra.mxu0 0.0
    %418 = vmatprep.subr.mxu0 0.0
    %419 = vmatpush1.xpose.msra.mxu0 0.0
    %420 = vmatprep.subr.mxu0 0.0
    %421 = vmatpush1.xpose.msra.mxu0 0.0
    %422 = vmatprep.subr.mxu0 0.0
    %423 = vmatpush1.xpose.msra.mxu0 0.0
    %424 = vmatprep.subr.mxu0 0.0
    %425 = vmatpush1.xpose.msra.mxu0 0.0
    %426 = vmatprep.subr.mxu0 0.0
    %427 = vmatpush1.xpose.msra.mxu0 0.0
    %428 = vmatprep.subr.mxu0 0.0
    %429 = vmatpush1.xpose.msra.mxu0 0.0
    %430 = vmatprep.subr.mxu0 0.0
    %431 = vmatpush1.xpose.msra.mxu0 0.0
    %432 = vmatprep.subr.mxu0 0.0
    %433 = vmatpush1.xpose.msra.mxu0 0.0
    %434 = vmatprep.subr.mxu0 0.0
    %435 = vmatpush1.xpose.msra.mxu0 0.0
    %436 = vmatprep.mubr.f32.mxu0 0.0
    %437 = vmatmul.mubr.f32.gmra.mrb[0].mxu0 %v358
    %v438 = vpop.f32.mrb[0].mxu0
    %v439 = vadd.f32 0.0, %v438
    %v440 = vpop.f32.mrb[0].mxu0
    %441 = vmatprep.mubr.f32.mxu0 0.0
    %442 = vmatmul.mubr.f32.gmra.mrb[0].mxu0 %v360
    %v443 = vpop.f32.mrb[0].mxu0
    %v444 = vadd.f32 0.0, %v443
    %v445 = vpop.f32.mrb[0].mxu0
    %446 = vmatprep.mubr.f32.mxu0 0.0
    %447 = vmatmul.mubr.f32.gmra.mrb[0].mxu0 %v362
    %v448 = vpop.f32.mrb[0].mxu0
    %v449 = vadd.f32 0.0, %v448
    %v450 = vpop.f32.mrb[0].mxu0
    %451 = vmatprep.mubr.f32.mxu0 0.0
    %452 = vmatmul.mubr.f32.gmra.mrb[0].mxu0 %v364
    %v453 = vpop.f32.mrb[0].mxu0
    %v454 = vadd.f32 0.0, %v453
    %v455 = vpop.f32.mrb[0].mxu0
    %456 = vdwg.mxu0
    %v457 = vmul.f32 %v156, %v330
    %v458 = vmul.f32 %v156, %v332
    %v459 = vmul.f32 %v156, %v334
    %v460 = vmul.f32 %v156, %v336
    %465 = vrot.lane.b32.xlu0 %v457, 96
    %v466 = vpop.permute.xlu0 %465
    %467 = vrot.lane.b32.xlu0 %v458, 96
    %v468 = vpop.permute.xlu0 %467
    %469 = vrot.lane.b32.xlu0 %v459, 96
    %v470 = vpop.permute.xlu0 %469
    %471 = vrot.lane.b32.xlu0 %v460, 96
    %v472 = vpop.permute.xlu0 %471
    %v473 = vsel %vm357, %v466, 0
    %v475 = vsel %vm357, %v468, 0
    %v477 = vsel %vm357, %v470, 0
    %v479 = vsel %vm357, %v472, 0
    %v482 = vsel %vm357, %v258, 0
    %v485 = vsel %vm357, %v263, 0
    %487 = vmatprep.subr.mxu0 0.0
    %488 = vmatpush1.xpose.msra.mxu0 %v482
    %489 = vmatprep.subr.mxu0 0.0
    %490 = vmatpush1.xpose.msra.mxu0 %v485
    %491 = vmatprep.subr.mxu0 0.0
    %492 = vmatpush1.xpose.msra.mxu0 0.0
    %493 = vmatprep.subr.mxu0 0.0
    %494 = vmatpush1.xpose.msra.mxu0 0.0
    %495 = vmatprep.subr.mxu0 0.0
    %496 = vmatpush1.xpose.msra.mxu0 0.0
    %497 = vmatprep.subr.mxu0 0.0
    %498 = vmatpush1.xpose.msra.mxu0 0.0
    %499 = vmatprep.subr.mxu0 0.0
    %500 = vmatpush1.xpose.msra.mxu0 0.0
    %501 = vmatprep.subr.mxu0 0.0
    %502 = vmatpush1.xpose.msra.mxu0 0.0
    %503 = vmatprep.subr.mxu0 0.0
    %504 = vmatpush1.xpose.msra.mxu0 0.0
    %505 = vmatprep.subr.mxu0 0.0
    %506 = vmatpush1.xpose.msra.mxu0 0.0
    %507 = vmatprep.subr.mxu0 0.0
    %508 = vmatpush1.xpose.msra.mxu0 0.0
    %509 = vmatprep.subr.mxu0 0.0
    %510 = vmatpush1.xpose.msra.mxu0 0.0
    %511 = vmatprep.subr.mxu0 0.0
    %512 = vmatpush1.xpose.msra.mxu0 0.0
    %513 = vmatprep.subr.mxu0 0.0
    %514 = vmatpush1.xpose.msra.mxu0 0.0
    %515 = vmatprep.subr.mxu0 0.0
    %516 = vmatpush1.xpose.msra.mxu0 0.0
    %517 = vmatprep.subr.mxu0 0.0
    %518 = vmatpush1.xpose.msra.mxu0 0.0
    %519 = vmatprep.subr.mxu0 0.0
    %520 = vmatpush1.xpose.msra.mxu0 0.0
    %521 = vmatprep.subr.mxu0 0.0
    %522 = vmatpush1.xpose.msra.mxu0 0.0
    %523 = vmatprep.subr.mxu0 0.0
    %524 = vmatpush1.xpose.msra.mxu0 0.0
    %525 = vmatprep.subr.mxu0 0.0
    %526 = vmatpush1.xpose.msra.mxu0 0.0
    %527 = vmatprep.subr.mxu0 0.0
    %528 = vmatpush1.xpose.msra.mxu0 0.0
    %529 = vmatprep.subr.mxu0 0.0
    %530 = vmatpush1.xpose.msra.mxu0 0.0
    %531 = vmatprep.subr.mxu0 0.0
    %532 = vmatpush1.xpose.msra.mxu0 0.0
    %533 = vmatprep.subr.mxu0 0.0
    %534 = vmatpush1.xpose.msra.mxu0 0.0
    %535 = vmatprep.subr.mxu0 0.0
    %536 = vmatpush1.xpose.msra.mxu0 0.0
    %537 = vmatprep.subr.mxu0 0.0
    %538 = vmatpush1.xpose.msra.mxu0 0.0
    %539 = vmatprep.subr.mxu0 0.0
    %540 = vmatpush1.xpose.msra.mxu0 0.0
    %541 = vmatprep.subr.mxu0 0.0
    %542 = vmatpush1.xpose.msra.mxu0 0.0
    %543 = vmatprep.subr.mxu0 0.0
    %544 = vmatpush1.xpose.msra.mxu0 0.0
    %545 = vmatprep.subr.mxu0 0.0
    %546 = vmatpush1.xpose.msra.mxu0 0.0
    %547 = vmatprep.subr.mxu0 0.0
    %548 = vmatpush1.xpose.msra.mxu0 0.0
    %549 = vmatprep.subr.mxu0 0.0
    %550 = vmatpush1.xpose.msra.mxu0 0.0
    %551 = vmatprep.mubr.f32.mxu0 0.0
    %552 = vmatmul.mubr.f32.gmra.mrb[0].mxu0 %v473
    %v553 = vpop.f32.mrb[0].mxu0
    %v554 = vadd.f32 0.0, %v553
    %v555 = vpop.f32.mrb[0].mxu0
    %556 = vmatprep.mubr.f32.mxu0 0.0
    %557 = vmatmul.mubr.f32.gmra.mrb[0].mxu0 %v475
    %v558 = vpop.f32.mrb[0].mxu0
    %v559 = vadd.f32 0.0, %v558
    %v560 = vpop.f32.mrb[0].mxu0
    %561 = vmatprep.mubr.f32.mxu0 0.0
    %562 = vmatmul.mubr.f32.gmra.mrb[0].mxu0 %v477
    %v563 = vpop.f32.mrb[0].mxu0
    %v564 = vadd.f32 0.0, %v563
    %v565 = vpop.f32.mrb[0].mxu0
    %566 = vmatprep.mubr.f32.mxu0 0.0
    %567 = vmatmul.mubr.f32.gmra.mrb[0].mxu0 %v479
    %v568 = vpop.f32.mrb[0].mxu0
    %v569 = vadd.f32 0.0, %v568
    %v570 = vpop.f32.mrb[0].mxu0
    %571 = vdwg.mxu0
    %v572 = vsel %vm168, %v439, -inf
    %573 = vmax.xlane.f32.xlu0 %v572
    %v574 = vpop.xlane.xlu0 %573
    %v575 = vsel %vm168, %v444, -inf
    %576 = vmax.xlane.f32.xlu0 %v575
    %v577 = vpop.xlane.xlu0 %576
    %v578 = vsel %vm168, %v449, -inf
    %579 = vmax.xlane.f32.xlu0 %v578
    %v580 = vpop.xlane.xlu0 %579
    %v581 = vsel %vm168, %v454, -inf
    %582 = vmax.xlane.f32.xlu0 %v581
    %v583 = vpop.xlane.xlu0 %582
    %v584 = vsel %vm168, %v554, -inf
    %585 = vmax.xlane.f32.xlu0 %v584
    %v586 = vpop.xlane.xlu0 %585
    %v587 = vsel %vm168, %v559, -inf
    %588 = vmax.xlane.f32.xlu0 %v587
    %v589 = vpop.xlane.xlu0 %588
    %v590 = vsel %vm168, %v564, -inf
    %591 = vmax.xlane.f32.xlu0 %v590
    %v592 = vpop.xlane.xlu0 %591
    %v593 = vsel %vm168, %v569, -inf
    %594 = vmax.xlane.f32.xlu0 %v593
    %v595 = vpop.xlane.xlu0 %594
    %v596 = vsub.f32 %v439, %v574
    %v597 = vsub.f32 %v444, %v577
    %v598 = vsub.f32 %v449, %v580
    %v599 = vsub.f32 %v454, %v583
    %v600 = vsub.f32 %v554, %v586
    %v601 = vsub.f32 %v559, %v589
    %v602 = vsub.f32 %v564, %v592
    %v603 = vsub.f32 %v569, %v595
    %v604 = vmul.f32 %v596, 1.442695
    %v605 = vpow.pop %v604
    %v606 = vmul.f32 %v597, 1.442695
    %v607 = vpow.pop %v606
    %v608 = vmul.f32 %v598, 1.442695
    %v609 = vpow.pop %v608
    %v610 = vmul.f32 %v599, 1.442695
    %v611 = vpow.pop %v610
    %v612 = vmul.f32 %v600, 1.442695
    %v613 = vpow.pop %v612
    %v614 = vmul.f32 %v601, 1.442695
    %v615 = vpow.pop %v614
    %v616 = vmul.f32 %v602, 1.442695
    %v617 = vpow.pop %v616
    %v618 = vmul.f32 %v603, 1.442695
    %v619 = vpow.pop %v618
    %v620 = vsel %vm168, %v605, 0.0
    %621 = vadd.xlane.f32.xlu0 %v620
    %v622 = vpop.xlane.xlu0 %621
    %v623 = vsel %vm168, %v607, 0.0
    %624 = vadd.xlane.f32.xlu0 %v623
    %v625 = vpop.xlane.xlu0 %624
    %v626 = vsel %vm168, %v609, 0.0
    %627 = vadd.xlane.f32.xlu0 %v626
    %v628 = vpop.xlane.xlu0 %627
    %v629 = vsel %vm168, %v611, 0.0
    %630 = vadd.xlane.f32.xlu0 %v629
    %v631 = vpop.xlane.xlu0 %630
    %v632 = vsel %vm168, %v613, 0.0
    %633 = vadd.xlane.f32.xlu0 %v632
    %v634 = vpop.xlane.xlu0 %633
    %v635 = vsel %vm168, %v615, 0.0
    %636 = vadd.xlane.f32.xlu0 %v635
    %v637 = vpop.xlane.xlu0 %636
    %v638 = vsel %vm168, %v617, 0.0
    %639 = vadd.xlane.f32.xlu0 %v638
    %v640 = vpop.xlane.xlu0 %639
    %v641 = vsel %vm168, %v619, 0.0
    %642 = vadd.xlane.f32.xlu0 %v641
    %v643 = vpop.xlane.xlu0 %642
    %v644 = vrcp.pop %v622
    %v645 = vmul.f32 %v605, %v644
    %v646 = vrcp.pop %v625
    %v647 = vmul.f32 %v607, %v646
    %v648 = vrcp.pop %v628
    %v649 = vmul.f32 %v609, %v648
    %v650 = vrcp.pop %v631
    %v651 = vmul.f32 %v611, %v650
    %v652 = vrcp.pop %v634
    %v653 = vmul.f32 %v613, %v652
    %v654 = vrcp.pop %v637
    %v655 = vmul.f32 %v615, %v654
    %v656 = vrcp.pop %v640
    %v657 = vmul.f32 %v617, %v656
    %v658 = vrcp.pop %v643
    %v659 = vmul.f32 %v619, %v658
    %660 = vrot.lane.b32.xlu0 %v248, 96
    %v661 = vpop.permute.xlu0 %660
    %662 = vrot.lane.b32.xlu0 %v253, 96
    %v663 = vpop.permute.xlu0 %662
    %v667 = vsel %vm168, %v645, 0
    %v670 = vsel %vm168, %v647, 0
    %v673 = vsel %vm168, %v649, 0
    %v676 = vsel %vm168, %v651, 0
    %678 = vmatprep.subr.mxu0 0.0
    %679 = vmatpush1.msra.mxu0 %v661
    %680 = vmatprep.subr.mxu0 0.0
    %681 = vmatpush1.msra.mxu0 %v663
    %682 = vmatprep.subr.mxu0 0.0
    %683 = vmatpush1.msra.mxu0 0.0
    %684 = vmatprep.subr.mxu0 0.0
    %685 = vmatpush1.msra.mxu0 0.0
    %686 = vmatprep.subr.mxu0 0.0
    %687 = vmatpush1.msra.mxu0 0.0
    %688 = vmatprep.subr.mxu0 0.0
    %689 = vmatpush1.msra.mxu0 0.0
    %690 = vmatprep.subr.mxu0 0.0
    %691 = vmatpush1.msra.mxu0 0.0
    %692 = vmatprep.subr.mxu0 0.0
    %693 = vmatpush1.msra.mxu0 0.0
    %694 = vmatprep.subr.mxu0 0.0
    %695 = vmatpush1.msra.mxu0 0.0
    %696 = vmatprep.subr.mxu0 0.0
    %697 = vmatpush1.msra.mxu0 0.0
    %698 = vmatprep.subr.mxu0 0.0
    %699 = vmatpush1.msra.mxu0 0.0
    %700 = vmatprep.subr.mxu0 0.0
    %701 = vmatpush1.msra.mxu0 0.0
    %702 = vmatprep.subr.mxu0 0.0
    %703 = vmatpush1.msra.mxu0 0.0
    %704 = vmatprep.subr.mxu0 0.0
    %705 = vmatpush1.msra.mxu0 0.0
    %706 = vmatprep.subr.mxu0 0.0
    %707 = vmatpush1.msra.mxu0 0.0
    %708 = vmatprep.subr.mxu0 0.0
    %709 = vmatpush1.msra.mxu0 0.0
    %710 = vmatprep.subr.mxu0 0.0
    %711 = vmatpush1.msra.mxu0 0.0
    %712 = vmatprep.subr.mxu0 0.0
    %713 = vmatpush1.msra.mxu0 0.0
    %714 = vmatprep.subr.mxu0 0.0
    %715 = vmatpush1.msra.mxu0 0.0
    %716 = vmatprep.subr.mxu0 0.0
    %717 = vmatpush1.msra.mxu0 0.0
    %718 = vmatprep.subr.mxu0 0.0
    %719 = vmatpush1.msra.mxu0 0.0
    %720 = vmatprep.subr.mxu0 0.0
    %721 = vmatpush1.msra.mxu0 0.0
    %722 = vmatprep.subr.mxu0 0.0
    %723 = vmatpush1.msra.mxu0 0.0
    %724 = vmatprep.subr.mxu0 0.0
    %725 = vmatpush1.msra.mxu0 0.0
    %726 = vmatprep.subr.mxu0 0.0
    %727 = vmatpush1.msra.mxu0 0.0
    %728 = vmatprep.subr.mxu0 0.0
    %729 = vmatpush1.msra.mxu0 0.0
    %730 = vmatprep.subr.mxu0 0.0
    %731 = vmatpush1.msra.mxu0 0.0
    %732 = vmatprep.subr.mxu0 0.0
    %733 = vmatpush1.msra.mxu0 0.0
    %734 = vmatprep.subr.mxu0 0.0
    %735 = vmatpush1.msra.mxu0 0.0
    %736 = vmatprep.subr.mxu0 0.0
    %737 = vmatpush1.msra.mxu0 0.0
    %738 = vmatprep.subr.mxu0 0.0
    %739 = vmatpush1.msra.mxu0 0.0
    %740 = vmatprep.subr.mxu0 0.0
    %741 = vmatpush1.msra.mxu0 0.0
    %742 = vmatprep.mubr.f32.mxu0 0.0
    %743 = vmatmul.mubr.f32.gmra.mrb[0].mxu0 %v667
    %v744 = vpop.f32.mrb[0].mxu0
    %v745 = vadd.f32 0.0, %v744
    %v746 = vpop.f32.mrb[0].mxu0
    %747 = vmatprep.mubr.f32.mxu0 0.0
    %748 = vmatmul.mubr.f32.gmra.mrb[0].mxu0 %v670
    %v749 = vpop.f32.mrb[0].mxu0
    %v750 = vadd.f32 0.0, %v749
    %v751 = vpop.f32.mrb[0].mxu0
    %752 = vmatprep.mubr.f32.mxu0 0.0
    %753 = vmatmul.mubr.f32.gmra.mrb[0].mxu0 %v673
    %v754 = vpop.f32.mrb[0].mxu0
    %v755 = vadd.f32 0.0, %v754
    %v756 = vpop.f32.mrb[0].mxu0
    %757 = vmatprep.mubr.f32.mxu0 0.0
    %758 = vmatmul.mubr.f32.gmra.mrb[0].mxu0 %v676
    %v759 = vpop.f32.mrb[0].mxu0
    %v760 = vadd.f32 0.0, %v759
    %v761 = vpop.f32.mrb[0].mxu0
    %762 = vdwg.mxu0
    %v763 = vmul.f32 %v745, %v321
    %v764 = vmul.f32 %v750, %v322
    %v765 = vmul.f32 %v755, %v323
    %v766 = vmul.f32 %v760, %v324
    %v767 = vadd.f32 %v763, %v764
    %v768 = vadd.f32 %v645, %v647
    %v769 = vadd.f32 %v767, %v765
    %v770 = vadd.f32 %v768, %v649
    %v771 = vadd.f32 %v769, %v766
    %v772 = vadd.f32 %v770, %v651
    %v773 = vmul.f32 %v772, 0.25
    %774 = vrot.lane.b32.xlu0 %v258, 96
    %v775 = vpop.permute.xlu0 %774
    %776 = vrot.lane.b32.xlu0 %v263, 96
    %v777 = vpop.permute.xlu0 %776
    %v781 = vsel %vm168, %v653, 0
    %v784 = vsel %vm168, %v655, 0
    %v787 = vsel %vm168, %v657, 0
    %v790 = vsel %vm168, %v659, 0
    %792 = vmatprep.subr.mxu0 0.0
    %793 = vmatpush1.msra.mxu0 %v775
    %794 = vmatprep.subr.mxu0 0.0
    %795 = vmatpush1.msra.mxu0 %v777
    %796 = vmatprep.subr.mxu0 0.0
    %797 = vmatpush1.msra.mxu0 0.0
    %798 = vmatprep.subr.mxu0 0.0
    %799 = vmatpush1.msra.mxu0 0.0
    %800 = vmatprep.subr.mxu0 0.0
    %801 = vmatpush1.msra.mxu0 0.0
    %802 = vmatprep.subr.mxu0 0.0
    %803 = vmatpush1.msra.mxu0 0.0
    %804 = vmatprep.subr.mxu0 0.0
    %805 = vmatpush1.msra.mxu0 0.0
    %806 = vmatprep.subr.mxu0 0.0
    %807 = vmatpush1.msra.mxu0 0.0
    %808 = vmatprep.subr.mxu0 0.0
    %809 = vmatpush1.msra.mxu0 0.0
    %810 = vmatprep.subr.mxu0 0.0
    %811 = vmatpush1.msra.mxu0 0.0
    %812 = vmatprep.subr.mxu0 0.0
    %813 = vmatpush1.msra.mxu0 0.0
    %814 = vmatprep.subr.mxu0 0.0
    %815 = vmatpush1.msra.mxu0 0.0
    %816 = vmatprep.subr.mxu0 0.0
    %817 = vmatpush1.msra.mxu0 0.0
    %818 = vmatprep.subr.mxu0 0.0
    %819 = vmatpush1.msra.mxu0 0.0
    %820 = vmatprep.subr.mxu0 0.0
    %821 = vmatpush1.msra.mxu0 0.0
    %822 = vmatprep.subr.mxu0 0.0
    %823 = vmatpush1.msra.mxu0 0.0
    %824 = vmatprep.subr.mxu0 0.0
    %825 = vmatpush1.msra.mxu0 0.0
    %826 = vmatprep.subr.mxu0 0.0
    %827 = vmatpush1.msra.mxu0 0.0
    %828 = vmatprep.subr.mxu0 0.0
    %829 = vmatpush1.msra.mxu0 0.0
    %830 = vmatprep.subr.mxu0 0.0
    %831 = vmatpush1.msra.mxu0 0.0
    %832 = vmatprep.subr.mxu0 0.0
    %833 = vmatpush1.msra.mxu0 0.0
    %834 = vmatprep.subr.mxu0 0.0
    %835 = vmatpush1.msra.mxu0 0.0
    %836 = vmatprep.subr.mxu0 0.0
    %837 = vmatpush1.msra.mxu0 0.0
    %838 = vmatprep.subr.mxu0 0.0
    %839 = vmatpush1.msra.mxu0 0.0
    %840 = vmatprep.subr.mxu0 0.0
    %841 = vmatpush1.msra.mxu0 0.0
    %842 = vmatprep.subr.mxu0 0.0
    %843 = vmatpush1.msra.mxu0 0.0
    %844 = vmatprep.subr.mxu0 0.0
    %845 = vmatpush1.msra.mxu0 0.0
    %846 = vmatprep.subr.mxu0 0.0
    %847 = vmatpush1.msra.mxu0 0.0
    %848 = vmatprep.subr.mxu0 0.0
    %849 = vmatpush1.msra.mxu0 0.0
    %850 = vmatprep.subr.mxu0 0.0
    %851 = vmatpush1.msra.mxu0 0.0
    %852 = vmatprep.subr.mxu0 0.0
    %853 = vmatpush1.msra.mxu0 0.0
    %854 = vmatprep.subr.mxu0 0.0
    %855 = vmatpush1.msra.mxu0 0.0
    %856 = vmatprep.mubr.f32.mxu0 0.0
    %857 = vmatmul.mubr.f32.gmra.mrb[0].mxu0 %v781
    %v858 = vpop.f32.mrb[0].mxu0
    %v859 = vadd.f32 0.0, %v858
    %v860 = vpop.f32.mrb[0].mxu0
    %861 = vmatprep.mubr.f32.mxu0 0.0
    %862 = vmatmul.mubr.f32.gmra.mrb[0].mxu0 %v784
    %v863 = vpop.f32.mrb[0].mxu0
    %v864 = vadd.f32 0.0, %v863
    %v865 = vpop.f32.mrb[0].mxu0
    %866 = vmatprep.mubr.f32.mxu0 0.0
    %867 = vmatmul.mubr.f32.gmra.mrb[0].mxu0 %v787
    %v868 = vpop.f32.mrb[0].mxu0
    %v869 = vadd.f32 0.0, %v868
    %v870 = vpop.f32.mrb[0].mxu0
    %871 = vmatprep.mubr.f32.mxu0 0.0
    %872 = vmatmul.mubr.f32.gmra.mrb[0].mxu0 %v790
    %v873 = vpop.f32.mrb[0].mxu0
    %v874 = vadd.f32 0.0, %v873
    %v875 = vpop.f32.mrb[0].mxu0
    %876 = vdwg.mxu0
    %v877 = vmul.f32 %v859, %v321
    %v878 = vmul.f32 %v864, %v322
    %v879 = vmul.f32 %v869, %v323
    %v880 = vmul.f32 %v874, %v324
    %v881 = vadd.f32 %v877, %v878
    %v882 = vadd.f32 %v653, %v655
    %v883 = vadd.f32 %v881, %v879
    %v884 = vadd.f32 %v882, %v657
    %v885 = vadd.f32 %v883, %v880
    %v886 = vadd.f32 %v884, %v659
    %v887 = vmul.f32 %v886, 0.25
    %888 = vst.msk [vmem:[#allocation8] sm:$0xff] %vm168, %v773
    %889 = vst.msk [vmem:[#allocation8 + $0x8] sm:$0xff] %vm168, %v887
    %v890 = vld [vmem:[%s6] sm:$0xff]
    %v891 = vld [vmem:[%s6 + $0x8] sm:$0xff]
    %v892 = vld [vmem:[%s6 + $0x10] sm:$0xff]
    %v893 = vld [vmem:[%s6 + $0x18] sm:$0xff]
    %v894 = vld [vmem:[%s7] sm:$0x1]
    %v895 = vld [vmem:[%s7 + $0x1] sm:$0x1]
    %v896 = vlaneseq
    %v897 = vshrl.u32 %v896, 7
    %v898 = vsub.s32 0, %v897
    %v899 = vrot.slane %v894, %v898
    %v901 = vsel %vm357, %v771, 0
    %v904 = vsel %vm357, %v885, 0
    %906 = vmatprep.subr.mxu0 0.0
    %907 = vmatpush1.msra.mxu0 %v890
    %908 = vmatprep.subr.mxu0 0.0
    %909 = vmatpush1.msra.mxu0 %v891
    %910 = vmatprep.subr.mxu0 0.0
    %911 = vmatpush1.msra.mxu0 %v892
    %912 = vmatprep.subr.mxu0 0.0
    %913 = vmatpush1.msra.mxu0 %v893
    %914 = vmatprep.subr.mxu0 0.0
    %915 = vmatpush1.msra.mxu0 0.0
    %916 = vmatprep.subr.mxu0 0.0
    %917 = vmatpush1.msra.mxu0 0.0
    %918 = vmatprep.subr.mxu0 0.0
    %919 = vmatpush1.msra.mxu0 0.0
    %920 = vmatprep.subr.mxu0 0.0
    %921 = vmatpush1.msra.mxu0 0.0
    %922 = vmatprep.subr.mxu0 0.0
    %923 = vmatpush1.msra.mxu0 0.0
    %924 = vmatprep.subr.mxu0 0.0
    %925 = vmatpush1.msra.mxu0 0.0
    %926 = vmatprep.subr.mxu0 0.0
    %927 = vmatpush1.msra.mxu0 0.0
    %928 = vmatprep.subr.mxu0 0.0
    %929 = vmatpush1.msra.mxu0 0.0
    %930 = vmatprep.subr.mxu0 0.0
    %931 = vmatpush1.msra.mxu0 0.0
    %932 = vmatprep.subr.mxu0 0.0
    %933 = vmatpush1.msra.mxu0 0.0
    %934 = vmatprep.subr.mxu0 0.0
    %935 = vmatpush1.msra.mxu0 0.0
    %936 = vmatprep.subr.mxu0 0.0
    %937 = vmatpush1.msra.mxu0 0.0
    %938 = vmatprep.subr.mxu0 0.0
    %939 = vmatpush1.msra.mxu0 0.0
    %940 = vmatprep.subr.mxu0 0.0
    %941 = vmatpush1.msra.mxu0 0.0
    %942 = vmatprep.subr.mxu0 0.0
    %943 = vmatpush1.msra.mxu0 0.0
    %944 = vmatprep.subr.mxu0 0.0
    %945 = vmatpush1.msra.mxu0 0.0
    %946 = vmatprep.subr.mxu0 0.0
    %947 = vmatpush1.msra.mxu0 0.0
    %948 = vmatprep.subr.mxu0 0.0
    %949 = vmatpush1.msra.mxu0 0.0
    %950 = vmatprep.subr.mxu0 0.0
    %951 = vmatpush1.msra.mxu0 0.0
    %952 = vmatprep.subr.mxu0 0.0
    %953 = vmatpush1.msra.mxu0 0.0
    %954 = vmatprep.subr.mxu0 0.0
    %955 = vmatpush1.msra.mxu0 0.0
    %956 = vmatprep.subr.mxu0 0.0
    %957 = vmatpush1.msra.mxu0 0.0
    %958 = vmatprep.subr.mxu0 0.0
    %959 = vmatpush1.msra.mxu0 0.0
    %960 = vmatprep.subr.mxu0 0.0
    %961 = vmatpush1.msra.mxu0 0.0
    %962 = vmatprep.subr.mxu0 0.0
    %963 = vmatpush1.msra.mxu0 0.0
    %964 = vmatprep.subr.mxu0 0.0
    %965 = vmatpush1.msra.mxu0 0.0
    %966 = vmatprep.subr.mxu0 0.0
    %967 = vmatpush1.msra.mxu0 0.0
    %968 = vmatprep.subr.mxu0 0.0
    %969 = vmatpush1.msra.mxu0 0.0
    %970 = vmatprep.mubr.f32.mxu0 0.0
    %971 = vmatmul.mubr.f32.gmra.mrb[0].mxu0 %v901
    %v972 = vpop.f32.mrb[0].mxu0
    %v973 = vadd.f32 %v899, %v972
    %v974 = vpop.f32.mrb[0].mxu0
    %975 = vmatprep.mubr.f32.mxu0 0.0
    %976 = vmatmul.mubr.f32.gmra.mrb[0].mxu0 %v904
    %v977 = vpop.f32.mrb[0].mxu0
    %v978 = vadd.f32 %v899, %v977
    %v979 = vpop.f32.mrb[0].mxu0
    %980 = vdwg.mxu0
    %v981 = vadd.f32 %v151, %v973
    %v982 = vadd.f32 %v156, %v978
    %v983 = vld [vmem:[%s7 + $0x2] sm:$0x1]
    %v984 = vld [vmem:[%s7 + $0x3] sm:$0x1]
    %v985 = vsel %vm357, %v981, 0.0
    %986 = vadd.xlane.f32.xlu0 %v985
    %v987 = vpop.xlane.xlu0 %986
    %v988 = vsel %vm357, %v982, 0.0
    %989 = vadd.xlane.f32.xlu0 %v988
    %v990 = vpop.xlane.xlu0 %989
    %v991 = vrcp.pop 32.0
    %v992 = vmul.f32 %v987, %v991
    %v993 = vmul.f32 %v990, %v991
    %v994 = vsub.f32 %v981, %v992
    %v995 = vsub.f32 %v982, %v993
    %v996 = vmul.f32 %v994, %v994
    %v997 = vmul.f32 %v995, %v995
    %v998 = vsel %vm357, %v996, 0.0
    %999 = vadd.xlane.f32.xlu0 %v998
    %v1000 = vpop.xlane.xlu0 %999
    %v1001 = vsel %vm357, %v997, 0.0
    %1002 = vadd.xlane.f32.xlu0 %v1001
    %v1003 = vpop.xlane.xlu0 %1002
    %v1004 = vmul.f32 %v1000, %v991
    %v1005 = vmul.f32 %v1003, %v991
    %v1006 = vadd.f32 %v1004, 1e-05
    %v1007 = vadd.f32 %v1005, 1e-05
    %v1008 = vrsqrt.pop %v1006
    %v1009 = vrsqrt.pop %v1007
    %v1010 = vmul.f32 %v994, %v1008
    %v1011 = vmul.f32 %v995, %v1009
    %v1012 = vlaneseq
    %v1013 = vshrl.u32 %v1012, 7
    %v1014 = vsub.s32 0, %v1013
    %v1015 = vrot.slane %v983, %v1014
    %v1016 = vmul.f32 %v1010, %v1015
    %v1017 = vmul.f32 %v1011, %v1015
    %v1018 = vlaneseq
    %v1019 = vshrl.u32 %v1018, 7
    %v1020 = vsub.s32 0, %v1019
    %v1021 = vrot.slane %v984, %v1020
    %v1022 = vadd.f32 %v1016, %v1021
    %v1023 = vadd.f32 %v1017, %v1021
    %v1024 = vlaneseq
    %v1025 = vshrl.u32 %v1024, 7
    %v1026 = vsub.s32 0, %v1025
    %v1027 = vrot.slane %v895, %v1026
    %1032 = vrot.lane.b32.xlu0 %v890, 96
    %v1033 = vpop.permute.xlu0 %1032
    %1034 = vrot.lane.b32.xlu0 %v891, 96
    %v1035 = vpop.permute.xlu0 %1034
    %1036 = vrot.lane.b32.xlu0 %v892, 96
    %v1037 = vpop.permute.xlu0 %1036
    %1038 = vrot.lane.b32.xlu0 %v893, 96
    %v1039 = vpop.permute.xlu0 %1038
    %v1045 = vsel %vm357, %v1022, 0
    %v1048 = vsel %vm357, %v1023, 0
    %1050 = vmatprep.subr.mxu0 0.0
    %1051 = vmatpush1.msra.mxu0 %v1033
    %1052 = vmatprep.subr.mxu0 0.0
    %1053 = vmatpush1.msra.mxu0 %v1035
    %1054 = vmatprep.subr.mxu0 0.0
    %1055 = vmatpush1.msra.mxu0 %v1037
    %1056 = vmatprep.subr.mxu0 0.0
    %1057 = vmatpush1.msra.mxu0 %v1039
    %1058 = vmatprep.subr.mxu0 0.0
    %1059 = vmatpush1.msra.mxu0 0.0
    %1060 = vmatprep.subr.mxu0 0.0
    %1061 = vmatpush1.msra.mxu0 0.0
    %1062 = vmatprep.subr.mxu0 0.0
    %1063 = vmatpush1.msra.mxu0 0.0
    %1064 = vmatprep.subr.mxu0 0.0
    %1065 = vmatpush1.msra.mxu0 0.0
    %1066 = vmatprep.subr.mxu0 0.0
    %1067 = vmatpush1.msra.mxu0 0.0
    %1068 = vmatprep.subr.mxu0 0.0
    %1069 = vmatpush1.msra.mxu0 0.0
    %1070 = vmatprep.subr.mxu0 0.0
    %1071 = vmatpush1.msra.mxu0 0.0
    %1072 = vmatprep.subr.mxu0 0.0
    %1073 = vmatpush1.msra.mxu0 0.0
    %1074 = vmatprep.subr.mxu0 0.0
    %1075 = vmatpush1.msra.mxu0 0.0
    %1076 = vmatprep.subr.mxu0 0.0
    %1077 = vmatpush1.msra.mxu0 0.0
    %1078 = vmatprep.subr.mxu0 0.0
    %1079 = vmatpush1.msra.mxu0 0.0
    %1080 = vmatprep.subr.mxu0 0.0
    %1081 = vmatpush1.msra.mxu0 0.0
    %1082 = vmatprep.subr.mxu0 0.0
    %1083 = vmatpush1.msra.mxu0 0.0
    %1084 = vmatprep.subr.mxu0 0.0
    %1085 = vmatpush1.msra.mxu0 0.0
    %1086 = vmatprep.subr.mxu0 0.0
    %1087 = vmatpush1.msra.mxu0 0.0
    %1088 = vmatprep.subr.mxu0 0.0
    %1089 = vmatpush1.msra.mxu0 0.0
    %1090 = vmatprep.subr.mxu0 0.0
    %1091 = vmatpush1.msra.mxu0 0.0
    %1092 = vmatprep.subr.mxu0 0.0
    %1093 = vmatpush1.msra.mxu0 0.0
    %1094 = vmatprep.subr.mxu0 0.0
    %1095 = vmatpush1.msra.mxu0 0.0
    %1096 = vmatprep.subr.mxu0 0.0
    %1097 = vmatpush1.msra.mxu0 0.0
    %1098 = vmatprep.subr.mxu0 0.0
    %1099 = vmatpush1.msra.mxu0 0.0
    %1100 = vmatprep.subr.mxu0 0.0
    %1101 = vmatpush1.msra.mxu0 0.0
    %1102 = vmatprep.subr.mxu0 0.0
    %1103 = vmatpush1.msra.mxu0 0.0
    %1104 = vmatprep.subr.mxu0 0.0
    %1105 = vmatpush1.msra.mxu0 0.0
    %1106 = vmatprep.subr.mxu0 0.0
    %1107 = vmatpush1.msra.mxu0 0.0
    %1108 = vmatprep.subr.mxu0 0.0
    %1109 = vmatpush1.msra.mxu0 0.0
    %1110 = vmatprep.subr.mxu0 0.0
    %1111 = vmatpush1.msra.mxu0 0.0
    %1112 = vmatprep.subr.mxu0 0.0
    %1113 = vmatpush1.msra.mxu0 0.0
    %1114 = vmatprep.mubr.f32.mxu0 0.0
    %1115 = vmatmul.mubr.f32.gmra.mrb[0].mxu0 %v1045
    %v1116 = vpop.f32.mrb[0].mxu0
    %v1117 = vadd.f32 %v1027, %v1116
    %v1118 = vpop.f32.mrb[0].mxu0
    %1119 = vmatprep.mubr.f32.mxu0 0.0
    %1120 = vmatmul.mubr.f32.gmra.mrb[0].mxu0 %v1048
    %v1121 = vpop.f32.mrb[0].mxu0
    %v1122 = vadd.f32 %v1027, %v1121
    %v1123 = vpop.f32.mrb[0].mxu0
    %1124 = vdwg.mxu0
    %v1125 = vmax.f32 %v1117, 0.0
    %v1126 = vmax.f32 %v1122, 0.0
    %v1127 = vadd.f32 %v1022, %v1125
    %v1128 = vadd.f32 %v1023, %v1126
    %v1129 = vld [vmem:[%s7 + $0x4] sm:$0x1]
    %v1130 = vld [vmem:[%s7 + $0x5] sm:$0x1]
    %v1131 = vsel %vm357, %v1127, 0.0
    %1132 = vadd.xlane.f32.xlu0 %v1131
    %v1133 = vpop.xlane.xlu0 %1132
    %v1134 = vsel %vm357, %v1128, 0.0
    %1135 = vadd.xlane.f32.xlu0 %v1134
    %v1136 = vpop.xlane.xlu0 %1135
    %v1137 = vmul.f32 %v1133, %v991
    %v1138 = vmul.f32 %v1136, %v991
    %v1139 = vsub.f32 %v1127, %v1137
    %v1140 = vsub.f32 %v1128, %v1138
    %v1141 = vmul.f32 %v1139, %v1139
    %v1142 = vmul.f32 %v1140, %v1140
    %v1143 = vsel %vm357, %v1141, 0.0
    %1144 = vadd.xlane.f32.xlu0 %v1143
    %v1145 = vpop.xlane.xlu0 %1144
    %v1146 = vsel %vm357, %v1142, 0.0
    %1147 = vadd.xlane.f32.xlu0 %v1146
    %v1148 = vpop.xlane.xlu0 %1147
    %v1149 = vmul.f32 %v1145, %v991
    %v1150 = vmul.f32 %v1148, %v991
    %v1151 = vadd.f32 %v1149, 1e-05
    %v1152 = vadd.f32 %v1150, 1e-05
    %v1153 = vrsqrt.pop %v1151
    %v1154 = vrsqrt.pop %v1152
    %v1155 = vmul.f32 %v1139, %v1153
    %v1156 = vmul.f32 %v1140, %v1154
    %v1157 = vlaneseq
    %v1158 = vshrl.u32 %v1157, 7
    %v1159 = vsub.s32 0, %v1158
    %v1160 = vrot.slane %v1129, %v1159
    %v1161 = vmul.f32 %v1155, %v1160
    %v1162 = vmul.f32 %v1156, %v1160
    %v1163 = vlaneseq
    %v1164 = vshrl.u32 %v1163, 7
    %v1165 = vsub.s32 0, %v1164
    %v1166 = vrot.slane %v1130, %v1165
    %v1167 = vadd.f32 %v1161, %v1166
    %v1168 = vadd.f32 %v1162, %v1166
    %v1169 = vxor.u32 %v151, 2147483648
    %v1170 = vxor.u32 %v156, 2147483648
    %v1171 = vmul.f32 %v1169, 1.442695
    %v1172 = vpow.pop %v1171
    %v1173 = vmul.f32 %v1170, 1.442695
    %v1174 = vpow.pop %v1173
    %v1175 = vadd.f32 %v1172, 1.0
    %v1176 = vadd.f32 %v1174, 1.0
    %v1177 = vrcp.pop %v1175
    %v1178 = vmul.f32 1.0, %v1177
    %v1179 = vrcp.pop %v1176
    %v1180 = vmul.f32 1.0, %v1179
    %v1181 = vmul.f32 %v151, %v1178
    %v1182 = vmul.f32 %v156, %v1180
    %1185 = vrot.lane.b32.xlu0 %v1181, 64
    %v1186 = vpop.permute.xlu0 %1185
    %1187 = vrot.lane.b32.xlu0 %v1182, 64
    %v1188 = vpop.permute.xlu0 %1187
    %v1191 = vmul.f32 %v1167, %v1186
    %v1192 = vmul.f32 %v1168, %v1188
    %1193 = vst.msk [vmem:[#allocation7] sm:$0xff] %vm357, %v1191
    %1194 = vst.msk [vmem:[#allocation7 + $0x8] sm:$0xff] %vm357, %v1192
    // Predicated region
    $region42: #{tpu_custom_call.1} parent=1 // pred_check
      _
    $region43: #{tpu_custom_call.1} parent=1 // pred_check_branch
      %1196 = sbr.rel (0) target = $region45
    $region44: #{tpu_custom_call.1} parent=1 // pred_region
      %s1198 = ssub.s32 256, 256
      %1199 = vsyncadd [#allocation4], %s1198
      %s1200 = sshll.u32 [#allocation7], 4
      %s1201 = int_to_ptr.vmem [resolvable:$true] %s1200
      %1206 = dma.vmem_to_hbm [thread:$0]  %s1201, 256, %s8, [#allocation4], 128, 128, 8
    $region45: #{tpu_custom_call.1} parent=1 // pred_fallthru
      _
    // Predicated region
    $region46: #{tpu_custom_call.1} parent=1 // pred_check
      _
    $region47: #{tpu_custom_call.1} parent=1 // pred_check_branch
      %1208 = sbr.rel (0) target = $region49
    $region48: #{tpu_custom_call.1} parent=1 // pred_region
      %s1210 = ssub.s32 256, 256
      %1211 = vsyncadd [#allocation9], %s1210
      %s1212 = sshll.u32 [#allocation8], 4
      %s1213 = int_to_ptr.vmem [resolvable:$true] %s1212
      %1218 = dma.vmem_to_hbm [thread:$0]  %s1213, 256, %s9, [#allocation9], 128, 128, 8
    $region49: #{tpu_custom_call.1} parent=1 // pred_fallthru
      _
    // Predicated region
    $region50: #{tpu_custom_call.1} parent=1 // pred_check
      _
    $region51: #{tpu_custom_call.1} parent=1 // pred_check_branch
      %1220 = sbr.rel (0) target = $region53
    $region52: #{tpu_custom_call.1} parent=1 // pred_region
      %1221 = dma.done [#allocation4], 256
    $region53: #{tpu_custom_call.1} parent=1 // pred_fallthru
      _
    // Predicated region
    $region54: #{tpu_custom_call.1} parent=1 // pred_check
      _
    $region55: #{tpu_custom_call.1} parent=1 // pred_check_branch
      %1223 = sbr.rel (0) target = $region57
    $region56: #{tpu_custom_call.1} parent=1 // pred_region
      %1224 = dma.done [#allocation9], 256
    $region57: #{tpu_custom_call.1} parent=1 // pred_fallthru
      _
    %1225 = vsyncpa [#allocation3], 1
    %1226 = vsyncpa [#allocation6], 1
    %1227 = vsyncpa [#allocation4], 1
    %1228 = vsyncpa [#allocation9], 1

// kernel: tpu_custom_call.1
$region0: #{tpu_custom_call.1}
  #allocation0 [shape = 'u32[]', space=smem, size = 0x4, offset = 0x4, fixed_abs, tag = 'smem constant byte address 0x4 - core index']
  #allocation1 [shape = 'u32[144,128]{1,0:T(1,128)}', space=vmem, size = 0x12000, scoped, tag = 'internal scratch']
  %s0 = inlined_call_operand.hbm [shape: f32[16,24], index: 0, kind: input, shape index: {}]
  %s1 = inlined_call_operand.vmem [shape: f32[32,16], index: 1, kind: input, shape index: {}]
  %s2 = inlined_call_operand.vmem [shape: f32[24,96], index: 2, kind: input, shape index: {}]
  %s3 = inlined_call_operand.vmem [shape: f32[1,96], index: 3, kind: input, shape index: {}]
  %s4 = inlined_call_operand.hbm [shape: f32[16,64], index: 4, kind: input, shape index: {}]
  %s5 = inlined_call_operand.vmem [shape: f32[1,64], index: 5, kind: input, shape index: {}]
  %s6 = inlined_call_operand.vmem [shape: f32[32,64], index: 6, kind: input, shape index: {}]
  %s7 = inlined_call_operand.vmem [shape: f32[8,32], index: 7, kind: input, shape index: {}]
  %s8 = inlined_call_operand.hbm [shape: f32[16,32], index: 8, kind: output, shape index: {0}]
  %s9 = inlined_call_operand.hbm [shape: f32[16,16], index: 9, kind: output, shape index: {1}]
  %10 = xla_tuple %s8, %s9
  %s11 = sld [smem:[#allocation0]]
  $region58: #{tpu_custom_call.1} parent=0
    _
  %s13 = ssub.s32 1, %s11
  %s14 = scalar_select 0, %s13, %s11
  $region1: #{tpu_custom_call.1} parent=0
    #allocation2 [shape = 'u8[8192]{0}', space=vmem, size = 0x2000, scoped, tag = 'input window, operand 0, single buffered']
    #allocation3 [shape = 's32[1]{0}', space=sflag, size = 0x4, scoped, tag = 'scoped memory for tpu_custom_call.1']
    #allocation4 [shape = 's32[1]{0}', space=sflag, size = 0x4, scoped, tag = 'scoped memory for tpu_custom_call.1']
    #allocation5 [shape = 'u8[8192]{0}', space=vmem, size = 0x2000, scoped, tag = 'input window, operand 4, single buffered']
    #allocation6 [shape = 's32[1]{0}', space=sflag, size = 0x4, scoped, tag = 'scoped memory for tpu_custom_call.1']
    #allocation7 [shape = 'u8[8192]{0}', space=vmem, size = 0x2000, scoped, tag = 'output window, operand 0, single buffered']
    #allocation8 [shape = 'u8[8192]{0}', space=vmem, size = 0x2000, scoped, tag = 'output window, operand 1, single buffered']
    #allocation9 [shape = 's32[1]{0}', space=sflag, size = 0x4, scoped, tag = 'scoped memory for tpu_custom_call.1']
    %15 = vsyncpa [#allocation3], 0
    %16 = vsyncpa [#allocation6], 0
    %17 = vsyncpa [#allocation4], 0
    %18 = vsyncpa [#allocation9], 0
    // Predicated region
    $region2: #{tpu_custom_call.1} parent=1 // pred_check
      _
    $region3: #{tpu_custom_call.1} parent=1 // pred_check_branch
      %20 = sbr.rel (0) target = $region5
    $region4: #{tpu_custom_call.1} parent=1 // pred_region
      %s22 = ssub.s32 256, 256
      %23 = vsyncadd [#allocation3], %s22
      %s24 = sshll.u32 [#allocation2], 4
      %s25 = int_to_ptr.vmem [resolvable:$true] %s24
      %30 = dma.hbm_to_vmem [thread:$0]  %s0, 256, %s25, [#allocation3], 128, 128, 8
    $region5: #{tpu_custom_call.1} parent=1 // pred_fallthru
      _
    // Predicated region
    $region6: #{tpu_custom_call.1} parent=1 // pred_check
      _
    $region7: #{tpu_custom_call.1} parent=1 // pred_check_branch
      %32 = sbr.rel (0) target = $region9
    $region8: #{tpu_custom_call.1} parent=1 // pred_region
      _
    $region9: #{tpu_custom_call.1} parent=1 // pred_fallthru
      _
    // Predicated region
    $region10: #{tpu_custom_call.1} parent=1 // pred_check
      _
    $region11: #{tpu_custom_call.1} parent=1 // pred_check_branch
      %34 = sbr.rel (0) target = $region13
    $region12: #{tpu_custom_call.1} parent=1 // pred_region
      _
    $region13: #{tpu_custom_call.1} parent=1 // pred_fallthru
      _
    // Predicated region
    $region14: #{tpu_custom_call.1} parent=1 // pred_check
      _
    $region15: #{tpu_custom_call.1} parent=1 // pred_check_branch
      %36 = sbr.rel (0) target = $region17
    $region16: #{tpu_custom_call.1} parent=1 // pred_region
      _
    $region17: #{tpu_custom_call.1} parent=1 // pred_fallthru
      _
    // Predicated region
    $region18: #{tpu_custom_call.1} parent=1 // pred_check
      _
    $region19: #{tpu_custom_call.1} parent=1 // pred_check_branch
      %38 = sbr.rel (0) target = $region21
    $region20: #{tpu_custom_call.1} parent=1 // pred_region
      %s40 = ssub.s32 256, 256
      %41 = vsyncadd [#allocation6], %s40
      %s42 = sshll.u32 [#allocation5], 4
      %s43 = int_to_ptr.vmem [resolvable:$true] %s42
      %48 = dma.hbm_to_vmem [thread:$0]  %s4, 256, %s43, [#allocation6], 128, 128, 8
    $region21: #{tpu_custom_call.1} parent=1 // pred_fallthru
      _
    // Predicated region
    $region22: #{tpu_custom_call.1} parent=1 // pred_check
      _
    $region23: #{tpu_custom_call.1} parent=1 // pred_check_branch
      %50 = sbr.rel (0) target = $region25
    $region24: #{tpu_custom_call.1} parent=1 // pred_region
      _
    $region25: #{tpu_custom_call.1} parent=1 // pred_fallthru
      _
    // Predicated region
    $region26: #{tpu_custom_call.1} parent=1 // pred_check
      _
    $region27: #{tpu_custom_call.1} parent=1 // pred_check_branch
      %52 = sbr.rel (0) target = $region29
    $region28: #{tpu_custom_call.1} parent=1 // pred_region
      _
    $region29: #{tpu_custom_call.1} parent=1 // pred_fallthru
      _
    // Predicated region
    $region30: #{tpu_custom_call.1} parent=1 // pred_check
      _
    $region31: #{tpu_custom_call.1} parent=1 // pred_check_branch
      %54 = sbr.rel (0) target = $region33
    $region32: #{tpu_custom_call.1} parent=1 // pred_region
      _
    $region33: #{tpu_custom_call.1} parent=1 // pred_fallthru
      _
    // Predicated region
    $region34: #{tpu_custom_call.1} parent=1 // pred_check
      _
    $region35: #{tpu_custom_call.1} parent=1 // pred_check_branch
      %56 = sbr.rel (0) target = $region37
    $region36: #{tpu_custom_call.1} parent=1 // pred_region
      %57 = dma.done [#allocation3], 256
    $region37: #{tpu_custom_call.1} parent=1 // pred_fallthru
      _
    // Predicated region
    $region38: #{tpu_custom_call.1} parent=1 // pred_check
      _
    $region39: #{tpu_custom_call.1} parent=1 // pred_check_branch
      %59 = sbr.rel (0) target = $region41
    $region40: #{tpu_custom_call.1} parent=1 // pred_region
      %60 = dma.done [#allocation6], 256
    $region41: #{tpu_custom_call.1} parent=1 // pred_fallthru
      _
    %v61 = vld [vmem:[#allocation2] sm:$0xff]
    %v62 = vld [vmem:[#allocation2 + $0x8] sm:$0xff]
    %v63 = vld [vmem:[%s1] sm:$0xff]
    %v64 = vld [vmem:[%s1 + $0x8] sm:$0xff]
    %v65 = vld [vmem:[%s1 + $0x10] sm:$0xff]
    %v66 = vld [vmem:[%s1 + $0x18] sm:$0xff]
    %v67 = vld [vmem:[%s2] sm:$0xff]
    %v68 = vld [vmem:[%s2 + $0x8] sm:$0xff]
    %v69 = vld [vmem:[%s2 + $0x10] sm:$0xff]
    %v70 = vld [vmem:[%s3] sm:$0x1]
    %v72 = vlaneseq
    %v73 = vshrl.u32 %v72, 7
    %v74 = vsub.s32 0, %v73
    %v75 = vrot.slane %v70, %v74
    %vm77 = vcmask 195584
    %v79 = vsel %vm77, %v61, 0
    %v82 = vsel %vm77, %v62, 0
    %84 = vmatprep.subr.mxu0 0.0
    %85 = vmatpush1.msra.mxu0 %v67
    %86 = vmatprep.subr.mxu0 0.0
    %87 = vmatpush1.msra.mxu0 %v68
    %88 = vmatprep.subr.mxu0 0.0
    %89 = vmatpush1.msra.mxu0 %v69
    %90 = vmatprep.subr.mxu0 0.0
    %91 = vmatpush1.msra.mxu0 0.0
    %92 = vmatprep.subr.mxu0 0.0
    %93 = vmatpush1.msra.mxu0 0.0
    %94 = vmatprep.subr.mxu0 0.0
    %95 = vmatpush1.msra.mxu0 0.0
    %96 = vmatprep.subr.mxu0 0.0
    %97 = vmatpush1.msra.mxu0 0.0
    %98 = vmatprep.subr.mxu0 0.0
    %99 = vmatpush1.msra.mxu0 0.0
    %100 = vmatprep.subr.mxu0 0.0
    %101 = vmatpush1.msra.mxu0 0.0
    %102 = vmatprep.subr.mxu0 0.0
    %103 = vmatpush1.msra.mxu0 0.0
    %104 = vmatprep.subr.mxu0 0.0
    %105 = vmatpush1.msra.mxu0 0.0
    %106 = vmatprep.subr.mxu0 0.0
    %107 = vmatpush1.msra.mxu0 0.0
    %108 = vmatprep.subr.mxu0 0.0
    %109 = vmatpush1.msra.mxu0 0.0
    %110 = vmatprep.subr.mxu0 0.0
    %111 = vmatpush1.msra.mxu0 0.0
    %112 = vmatprep.subr.mxu0 0.0
    %113 = vmatpush1.msra.mxu0 0.0
    %114 = vmatprep.subr.mxu0 0.0
    %115 = vmatpush1.msra.mxu0 0.0
    %116 = vmatprep.subr.mxu0 0.0
    %117 = vmatpush1.msra.mxu0 0.0
    %118 = vmatprep.subr.mxu0 0.0
    %119 = vmatpush1.msra.mxu0 0.0
    %120 = vmatprep.subr.mxu0 0.0
    %121 = vmatpush1.msra.mxu0 0.0
    %122 = vmatprep.subr.mxu0 0.0
    %123 = vmatpush1.msra.mxu0 0.0
    %124 = vmatprep.subr.mxu0 0.0
    %125 = vmatpush1.msra.mxu0 0.0
    %126 = vmatprep.subr.mxu0 0.0
    %127 = vmatpush1.msra.mxu0 0.0
    %128 = vmatprep.subr.mxu0 0.0
    %129 = vmatpush1.msra.mxu0 0.0
    %130 = vmatprep.subr.mxu0 0.0
    %131 = vmatpush1.msra.mxu0 0.0
    %132 = vmatprep.subr.mxu0 0.0
    %133 = vmatpush1.msra.mxu0 0.0
    %134 = vmatprep.subr.mxu0 0.0
    %135 = vmatpush1.msra.mxu0 0.0
    %136 = vmatprep.subr.mxu0 0.0
    %137 = vmatpush1.msra.mxu0 0.0
    %138 = vmatprep.subr.mxu0 0.0
    %139 = vmatpush1.msra.mxu0 0.0
    %140 = vmatprep.subr.mxu0 0.0
    %141 = vmatpush1.msra.mxu0 0.0
    %142 = vmatprep.subr.mxu0 0.0
    %143 = vmatpush1.msra.mxu0 0.0
    %144 = vmatprep.subr.mxu0 0.0
    %145 = vmatpush1.msra.mxu0 0.0
    %146 = vmatprep.subr.mxu0 0.0
    %147 = vmatpush1.msra.mxu0 0.0
    %148 = vmatprep.mubr.f32.mxu0 0.0
    %149 = vmatmul.mubr.f32.gmra.mrb[0].mxu0 %v79
    %v150 = vpop.f32.mrb[0].mxu0
    %v151 = vadd.f32 %v75, %v150
    %v152 = vpop.f32.mrb[0].mxu0
    %153 = vmatprep.mubr.f32.mxu0 0.0
    %154 = vmatmul.mubr.f32.gmra.mrb[0].mxu0 %v82
    %v155 = vpop.f32.mrb[0].mxu0
    %v156 = vadd.f32 %v75, %v155
    %v157 = vpop.f32.mrb[0].mxu0
    %158 = vdwg.mxu0
    %v159 = vld [vmem:[#allocation5] sm:$0xff]
    %v160 = vld [vmem:[#allocation5 + $0x8] sm:$0xff]
    %v161 = vld [vmem:[%s5] sm:$0x1]
    %v163 = vlaneseq
    %v164 = vshrl.u32 %v163, 7
    %v165 = vsub.s32 0, %v164
    %v166 = vrot.slane %v161, %v165
    %vm168 = vcmask 130048
    %v170 = vsel %vm168, %v63, 0
    %v173 = vsel %vm168, %v64, 0
    %v176 = vsel %vm168, %v65, 0
    %v179 = vsel %vm168, %v66, 0
    %181 = vmatprep.subr.mxu0 0.0
    %182 = vmatpush1.msra.mxu0 %v159
    %183 = vmatprep.subr.mxu0 0.0
    %184 = vmatpush1.msra.mxu0 %v160
    %185 = vmatprep.subr.mxu0 0.0
    %186 = vmatpush1.msra.mxu0 0.0
    %187 = vmatprep.subr.mxu0 0.0
    %188 = vmatpush1.msra.mxu0 0.0
    %189 = vmatprep.subr.mxu0 0.0
    %190 = vmatpush1.msra.mxu0 0.0
    %191 = vmatprep.subr.mxu0 0.0
    %192 = vmatpush1.msra.mxu0 0.0
    %193 = vmatprep.subr.mxu0 0.0
    %194 = vmatpush1.msra.mxu0 0.0
    %195 = vmatprep.subr.mxu0 0.0
    %196 = vmatpush1.msra.mxu0 0.0
    %197 = vmatprep.subr.mxu0 0.0
    %198 = vmatpush1.msra.mxu0 0.0
    %199 = vmatprep.subr.mxu0 0.0
    %200 = vmatpush1.msra.mxu0 0.0
    %201 = vmatprep.subr.mxu0 0.0
    %202 = vmatpush1.msra.mxu0 0.0
    %203 = vmatprep.subr.mxu0 0.0
    %204 = vmatpush1.msra.mxu0 0.0
    %205 = vmatprep.subr.mxu0 0.0
    %206 = vmatpush1.msra.mxu0 0.0
    %207 = vmatprep.subr.mxu0 0.0
    %208 = vmatpush1.msra.mxu0 0.0
    %209 = vmatprep.subr.mxu0 0.0
    %210 = vmatpush1.msra.mxu0 0.0
    %211 = vmatprep.subr.mxu0 0.0
    %212 = vmatpush1.msra.mxu0 0.0
    %213 = vmatprep.subr.mxu0 0.0
    %214 = vmatpush1.msra.mxu0 0.0
    %215 = vmatprep.subr.mxu0 0.0
    %216 = vmatpush1.msra.mxu0 0.0
    %217 = vmatprep.subr.mxu0 0.0
    %218 = vmatpush1.msra.mxu0 0.0
    %219 = vmatprep.subr.mxu0 0.0
    %220 = vmatpush1.msra.mxu0 0.0
    %221 = vmatprep.subr.mxu0 0.0
    %222 = vmatpush1.msra.mxu0 0.0
    %223 = vmatprep.subr.mxu0 0.0
    %224 = vmatpush1.msra.mxu0 0.0
    %225 = vmatprep.subr.mxu0 0.0
    %226 = vmatpush1.msra.mxu0 0.0
    %227 = vmatprep.subr.mxu0 0.0
    %228 = vmatpush1.msra.mxu0 0.0
    %229 = vmatprep.subr.mxu0 0.0
    %230 = vmatpush1.msra.mxu0 0.0
    %231 = vmatprep.subr.mxu0 0.0
    %232 = vmatpush1.msra.mxu0 0.0
    %233 = vmatprep.subr.mxu0 0.0
    %234 = vmatpush1.msra.mxu0 0.0
    %235 = vmatprep.subr.mxu0 0.0
    %236 = vmatpush1.msra.mxu0 0.0
    %237 = vmatprep.subr.mxu0 0.0
    %238 = vmatpush1.msra.mxu0 0.0
    %239 = vmatprep.subr.mxu0 0.0
    %240 = vmatpush1.msra.mxu0 0.0
    %241 = vmatprep.subr.mxu0 0.0
    %242 = vmatpush1.msra.mxu0 0.0
    %243 = vmatprep.subr.mxu0 0.0
    %244 = vmatpush1.msra.mxu0 0.0
    %245 = vmatprep.mubr.f32.mxu0 0.0
    %246 = vmatmul.mubr.f32.gmra.mrb[0].mxu0 %v170
    %v247 = vpop.f32.mrb[0].mxu0
    %v248 = vadd.f32 %v166, %v247
    %v249 = vpop.f32.mrb[0].mxu0
    %250 = vmatprep.mubr.f32.mxu0 0.0
    %251 = vmatmul.mubr.f32.gmra.mrb[0].mxu0 %v173
    %v252 = vpop.f32.mrb[0].mxu0
    %v253 = vadd.f32 %v166, %v252
    %v254 = vpop.f32.mrb[0].mxu0
    %255 = vmatprep.mubr.f32.mxu0 0.0
    %256 = vmatmul.mubr.f32.gmra.mrb[0].mxu0 %v176
    %v257 = vpop.f32.mrb[0].mxu0
    %v258 = vadd.f32 %v166, %v257
    %v259 = vpop.f32.mrb[0].mxu0
    %260 = vmatprep.mubr.f32.mxu0 0.0
    %261 = vmatmul.mubr.f32.gmra.mrb[0].mxu0 %v179
    %v262 = vpop.f32.mrb[0].mxu0
    %v263 = vadd.f32 %v166, %v262
    %v264 = vpop.f32.mrb[0].mxu0
    %265 = vdwg.mxu0
    %v266 = vlaneseq
    %v267 = vand.u32 %v266, 127
    %v268 = vlaneseq
    %v269 = vshrl.u32 %v268, 7
    %v270 = vadd.s32 %v269, 8
    %v271 = vadd.s32 %v269, 16
    %v272 = vadd.s32 %v269, 24
    %vm273 = vcmp.ge.s32.totalorder %v267, 8
    %v274 = vsel %vm273, 1, 0
    %vm275 = vcmp.ge.s32.totalorder %v267, 16
    %v276 = vsel %vm275, 1, 0
    %v277 = vadd.s32 %v274, %v276
    %vm278 = vcmp.ge.s32.totalorder %v267, 24
    %v279 = vsel %vm278, 1, 0
    %v280 = vadd.s32 %v277, %v279
    %vm281 = vcmp.ge.s32.totalorder %v269, 8
    %vm282 = vcmp.ge.s32.totalorder %v270, 8
    %vm283 = vcmp.ge.s32.totalorder %v271, 8
    %vm284 = vcmp.ge.s32.totalorder %v272, 8
    %v285 = vsel %vm281, 1, 0
    %v286 = vsel %vm282, 1, 0
    %v287 = vsel %vm283, 1, 0
    %v288 = vsel %vm284, 1, 0
    %vm289 = vcmp.ge.s32.totalorder %v269, 16
    %vm290 = vcmp.ge.s32.totalorder %v270, 16
    %vm291 = vcmp.ge.s32.totalorder %v271, 16
    %vm292 = vcmp.ge.s32.totalorder %v272, 16
    %v293 = vsel %vm289, 1, 0
    %v294 = vsel %vm290, 1, 0
    %v295 = vsel %vm291, 1, 0
    %v296 = vsel %vm292, 1, 0
    %v297 = vadd.s32 %v285, %v293
    %v298 = vadd.s32 %v286, %v294
    %v299 = vadd.s32 %v287, %v295
    %v300 = vadd.s32 %v288, %v296
    %vm301 = vcmp.ge.s32.totalorder %v269, 24
    %vm302 = vcmp.ge.s32.totalorder %v270, 24
    %vm303 = vcmp.ge.s32.totalorder %v271, 24
    %vm304 = vcmp.ge.s32.totalorder %v272, 24
    %v305 = vsel %vm301, 1, 0
    %v306 = vsel %vm302, 1, 0
    %v307 = vsel %vm303, 1, 0
    %v308 = vsel %vm304, 1, 0
    %v309 = vadd.s32 %v297, %v305
    %v310 = vadd.s32 %v298, %v306
    %v311 = vadd.s32 %v299, %v307
    %v312 = vadd.s32 %v300, %v308
    %vm313 = vcmp.eq.s32.totalorder %v280, %v309
    %vm314 = vcmp.eq.s32.totalorder %v280, %v310
    %vm315 = vcmp.eq.s32.totalorder %v280, %v311
    %vm316 = vcmp.eq.s32.totalorder %v280, %v312
    %v317 = vsel %vm313, 1, 0
    %v318 = vsel %vm314, 1, 0
    %v319 = vsel %vm315, 1, 0
    %v320 = vsel %vm316, 1, 0
    %v321 = vcvt.s32.f32 %v317
    %v322 = vcvt.s32.f32 %v318
    %v323 = vcvt.s32.f32 %v319
    %v324 = vcvt.s32.f32 %v320
    %329 = vrot.lane.b32.xlu0 %v321, 32
    %v330 = vpop.permute.xlu0 %329
    %331 = vrot.lane.b32.xlu0 %v322, 32
    %v332 = vpop.permute.xlu0 %331
    %333 = vrot.lane.b32.xlu0 %v323, 32
    %v334 = vpop.permute.xlu0 %333
    %335 = vrot.lane.b32.xlu0 %v324, 32
    %v336 = vpop.permute.xlu0 %335
    %v341 = vmul.f32 %v151, %v330
    %v342 = vmul.f32 %v151, %v332
    %v343 = vmul.f32 %v151, %v334
    %v344 = vmul.f32 %v151, %v336
    %349 = vrot.lane.b32.xlu0 %v341, 96
    %v350 = vpop.permute.xlu0 %349
    %351 = vrot.lane.b32.xlu0 %v342, 96
    %v352 = vpop.permute.xlu0 %351
    %353 = vrot.lane.b32.xlu0 %v343, 96
    %v354 = vpop.permute.xlu0 %353
    %355 = vrot.lane.b32.xlu0 %v344, 96
    %v356 = vpop.permute.xlu0 %355
    %vm357 = vcmask 261120
    %v358 = vsel %vm357, %v350, 0
    %v360 = vsel %vm357, %v352, 0
    %v362 = vsel %vm357, %v354, 0
    %v364 = vsel %vm357, %v356, 0
    %v367 = vsel %vm357, %v248, 0
    %v370 = vsel %vm357, %v253, 0
    %372 = vmatprep.subr.mxu0 0.0
    %373 = vmatpush1.xpose.msra.mxu0 %v367
    %374 = vmatprep.subr.mxu0 0.0
    %375 = vmatpush1.xpose.msra.mxu0 %v370
    %376 = vmatprep.subr.mxu0 0.0
    %377 = vmatpush1.xpose.msra.mxu0 0.0
    %378 = vmatprep.subr.mxu0 0.0
    %379 = vmatpush1.xpose.msra.mxu0 0.0
    %380 = vmatprep.subr.mxu0 0.0
    %381 = vmatpush1.xpose.msra.mxu0 0.0
    %382 = vmatprep.subr.mxu0 0.0
    %383 = vmatpush1.xpose.msra.mxu0 0.0
    %384 = vmatprep.subr.mxu0 0.0
    %385 = vmatpush1.xpose.msra.mxu0 0.0
    %386 = vmatprep.subr.mxu0 0.0
    %387 = vmatpush1.xpose.msra.mxu0 0.0
    %388 = vmatprep.subr.mxu0 0.0
    %389 = vmatpush1.xpose.msra.mxu0 0.0
    %390 = vmatprep.subr.mxu0 0.0
    %391 = vmatpush1.xpose.msra.mxu0 0.0
    %392 = vmatprep.subr.mxu0 0.0
    %393 = vmatpush1.xpose.msra.mxu0 0.0
    %394 = vmatprep.subr.mxu0 0.0
    %395 = vmatpush1.xpose.msra.mxu0 0.0
    %396 = vmatprep.subr.mxu0 0.0
    %397 = vmatpush1.xpose.msra.mxu0 0.0
    %398 = vmatprep.subr.mxu0 0.0
    %399 = vmatpush1.xpose.msra.mxu0 0.0
    %400 = vmatprep.subr.mxu0 0.0
    %401 = vmatpush1.xpose.msra.mxu0 0.0
    %402 = vmatprep.subr.mxu0 0.0
    %403 = vmatpush1.xpose.msra.mxu0 0.0
    %404 = vmatprep.subr.mxu0 0.0
    %405 = vmatpush1.xpose.msra.mxu0 0.0
    %406 = vmatprep.subr.mxu0 0.0
    %407 = vmatpush1.xpose.msra.mxu0 0.0
    %408 = vmatprep.subr.mxu0 0.0
    %409 = vmatpush1.xpose.msra.mxu0 0.0
    %410 = vmatprep.subr.mxu0 0.0
    %411 = vmatpush1.xpose.msra.mxu0 0.0
    %412 = vmatprep.subr.mxu0 0.0
    %413 = vmatpush1.xpose.msra.mxu0 0.0
    %414 = vmatprep.subr.mxu0 0.0
    %415 = vmatpush1.xpose.msra.mxu0 0.0
    %416 = vmatprep.subr.mxu0 0.0
    %417 = vmatpush1.xpose.msra.mxu0 0.0
    %418 = vmatprep.subr.mxu0 0.0
    %419 = vmatpush1.xpose.msra.mxu0 0.0
    %420 = vmatprep.subr.mxu0 0.0
    %421 = vmatpush1.xpose.msra.mxu0 0.0
    %422 = vmatprep.subr.mxu0 0.0
    %423 = vmatpush1.xpose.msra.mxu0 0.0
    %424 = vmatprep.subr.mxu0 0.0
    %425 = vmatpush1.xpose.msra.mxu0 0.0
    %426 = vmatprep.subr.mxu0 0.0
    %427 = vmatpush1.xpose.msra.mxu0 0.0
    %428 = vmatprep.subr.mxu0 0.0
    %429 = vmatpush1.xpose.msra.mxu0 0.0
    %430 = vmatprep.subr.mxu0 0.0
    %431 = vmatpush1.xpose.msra.mxu0 0.0
    %432 = vmatprep.subr.mxu0 0.0
    %433 = vmatpush1.xpose.msra.mxu0 0.0
    %434 = vmatprep.subr.mxu0 0.0
    %435 = vmatpush1.xpose.msra.mxu0 0.0
    %436 = vmatprep.mubr.f32.mxu0 0.0
    %437 = vmatmul.mubr.f32.gmra.mrb[0].mxu0 %v358
    %v438 = vpop.f32.mrb[0].mxu0
    %v439 = vadd.f32 0.0, %v438
    %v440 = vpop.f32.mrb[0].mxu0
    %441 = vmatprep.mubr.f32.mxu0 0.0
    %442 = vmatmul.mubr.f32.gmra.mrb[0].mxu0 %v360
    %v443 = vpop.f32.mrb[0].mxu0
    %v444 = vadd.f32 0.0, %v443
    %v445 = vpop.f32.mrb[0].mxu0
    %446 = vmatprep.mubr.f32.mxu0 0.0
    %447 = vmatmul.mubr.f32.gmra.mrb[0].mxu0 %v362
    %v448 = vpop.f32.mrb[0].mxu0
    %v449 = vadd.f32 0.0, %v448
    %v450 = vpop.f32.mrb[0].mxu0
    %451 = vmatprep.mubr.f32.mxu0 0.0
    %452 = vmatmul.mubr.f32.gmra.mrb[0].mxu0 %v364
    %v453 = vpop.f32.mrb[0].mxu0
    %v454 = vadd.f32 0.0, %v453
    %v455 = vpop.f32.mrb[0].mxu0
    %456 = vdwg.mxu0
    %v457 = vmul.f32 %v156, %v330
    %v458 = vmul.f32 %v156, %v332
    %v459 = vmul.f32 %v156, %v334
    %v460 = vmul.f32 %v156, %v336
    %465 = vrot.lane.b32.xlu0 %v457, 96
    %v466 = vpop.permute.xlu0 %465
    %467 = vrot.lane.b32.xlu0 %v458, 96
    %v468 = vpop.permute.xlu0 %467
    %469 = vrot.lane.b32.xlu0 %v459, 96
    %v470 = vpop.permute.xlu0 %469
    %471 = vrot.lane.b32.xlu0 %v460, 96
    %v472 = vpop.permute.xlu0 %471
    %v473 = vsel %vm357, %v466, 0
    %v475 = vsel %vm357, %v468, 0
    %v477 = vsel %vm357, %v470, 0
    %v479 = vsel %vm357, %v472, 0
    %v482 = vsel %vm357, %v258, 0
    %v485 = vsel %vm357, %v263, 0
    %487 = vmatprep.subr.mxu0 0.0
    %488 = vmatpush1.xpose.msra.mxu0 %v482
    %489 = vmatprep.subr.mxu0 0.0
    %490 = vmatpush1.xpose.msra.mxu0 %v485
    %491 = vmatprep.subr.mxu0 0.0
    %492 = vmatpush1.xpose.msra.mxu0 0.0
    %493 = vmatprep.subr.mxu0 0.0
    %494 = vmatpush1.xpose.msra.mxu0 0.0
    %495 = vmatprep.subr.mxu0 0.0
    %496 = vmatpush1.xpose.msra.mxu0 0.0
    %497 = vmatprep.subr.mxu0 0.0
    %498 = vmatpush1.xpose.msra.mxu0 0.0
    %499 = vmatprep.subr.mxu0 0.0
    %500 = vmatpush1.xpose.msra.mxu0 0.0
    %501 = vmatprep.subr.mxu0 0.0
    %502 = vmatpush1.xpose.msra.mxu0 0.0
    %503 = vmatprep.subr.mxu0 0.0
    %504 = vmatpush1.xpose.msra.mxu0 0.0
    %505 = vmatprep.subr.mxu0 0.0
    %506 = vmatpush1.xpose.msra.mxu0 0.0
    %507 = vmatprep.subr.mxu0 0.0
    %508 = vmatpush1.xpose.msra.mxu0 0.0
    %509 = vmatprep.subr.mxu0 0.0
    %510 = vmatpush1.xpose.msra.mxu0 0.0
    %511 = vmatprep.subr.mxu0 0.0
    %512 = vmatpush1.xpose.msra.mxu0 0.0
    %513 = vmatprep.subr.mxu0 0.0
    %514 = vmatpush1.xpose.msra.mxu0 0.0
    %515 = vmatprep.subr.mxu0 0.0
    %516 = vmatpush1.xpose.msra.mxu0 0.0
    %517 = vmatprep.subr.mxu0 0.0
    %518 = vmatpush1.xpose.msra.mxu0 0.0
    %519 = vmatprep.subr.mxu0 0.0
    %520 = vmatpush1.xpose.msra.mxu0 0.0
    %521 = vmatprep.subr.mxu0 0.0
    %522 = vmatpush1.xpose.msra.mxu0 0.0
    %523 = vmatprep.subr.mxu0 0.0
    %524 = vmatpush1.xpose.msra.mxu0 0.0
    %525 = vmatprep.subr.mxu0 0.0
    %526 = vmatpush1.xpose.msra.mxu0 0.0
    %527 = vmatprep.subr.mxu0 0.0
    %528 = vmatpush1.xpose.msra.mxu0 0.0
    %529 = vmatprep.subr.mxu0 0.0
    %530 = vmatpush1.xpose.msra.mxu0 0.0
    %531 = vmatprep.subr.mxu0 0.0
    %532 = vmatpush1.xpose.msra.mxu0 0.0
    %533 = vmatprep.subr.mxu0 0.0
    %534 = vmatpush1.xpose.msra.mxu0 0.0
    %535 = vmatprep.subr.mxu0 0.0
    %536 = vmatpush1.xpose.msra.mxu0 0.0
    %537 = vmatprep.subr.mxu0 0.0
    %538 = vmatpush1.xpose.msra.mxu0 0.0
    %539 = vmatprep.subr.mxu0 0.0
    %540 = vmatpush1.xpose.msra.mxu0 0.0
    %541 = vmatprep.subr.mxu0 0.0
    %542 = vmatpush1.xpose.msra.mxu0 0.0
    %543 = vmatprep.subr.mxu0 0.0
    %544 = vmatpush1.xpose.msra.mxu0 0.0
    %545 = vmatprep.subr.mxu0 0.0
    %546 = vmatpush1.xpose.msra.mxu0 0.0
    %547 = vmatprep.subr.mxu0 0.0
    %548 = vmatpush1.xpose.msra.mxu0 0.0
    %549 = vmatprep.subr.mxu0 0.0
    %550 = vmatpush1.xpose.msra.mxu0 0.0
    %551 = vmatprep.mubr.f32.mxu0 0.0
    %552 = vmatmul.mubr.f32.gmra.mrb[0].mxu0 %v473
    %v553 = vpop.f32.mrb[0].mxu0
    %v554 = vadd.f32 0.0, %v553
    %v555 = vpop.f32.mrb[0].mxu0
    %556 = vmatprep.mubr.f32.mxu0 0.0
    %557 = vmatmul.mubr.f32.gmra.mrb[0].mxu0 %v475
    %v558 = vpop.f32.mrb[0].mxu0
    %v559 = vadd.f32 0.0, %v558
    %v560 = vpop.f32.mrb[0].mxu0
    %561 = vmatprep.mubr.f32.mxu0 0.0
    %562 = vmatmul.mubr.f32.gmra.mrb[0].mxu0 %v477
    %v563 = vpop.f32.mrb[0].mxu0
    %v564 = vadd.f32 0.0, %v563
    %v565 = vpop.f32.mrb[0].mxu0
    %566 = vmatprep.mubr.f32.mxu0 0.0
    %567 = vmatmul.mubr.f32.gmra.mrb[0].mxu0 %v479
    %v568 = vpop.f32.mrb[0].mxu0
    %v569 = vadd.f32 0.0, %v568
    %v570 = vpop.f32.mrb[0].mxu0
    %571 = vdwg.mxu0
    %v572 = vsel %vm168, %v439, -inf
    %573 = vmax.xlane.f32.xlu0 %v572
    %v574 = vpop.xlane.xlu0 %573
    %v575 = vsel %vm168, %v444, -inf
    %576 = vmax.xlane.f32.xlu0 %v575
    %v577 = vpop.xlane.xlu0 %576
    %v578 = vsel %vm168, %v449, -inf
    %579 = vmax.xlane.f32.xlu0 %v578
    %v580 = vpop.xlane.xlu0 %579
    %v581 = vsel %vm168, %v454, -inf
    %582 = vmax.xlane.f32.xlu0 %v581
    %v583 = vpop.xlane.xlu0 %582
    %v584 = vsel %vm168, %v554, -inf
    %585 = vmax.xlane.f32.xlu0 %v584
    %v586 = vpop.xlane.xlu0 %585
    %v587 = vsel %vm168, %v559, -inf
    %588 = vmax.xlane.f32.xlu0 %v587
    %v589 = vpop.xlane.xlu0 %588
    %v590 = vsel %vm168, %v564, -inf
    %591 = vmax.xlane.f32.xlu0 %v590
    %v592 = vpop.xlane.xlu0 %591
    %v593 = vsel %vm168, %v569, -inf
    %594 = vmax.xlane.f32.xlu0 %v593
    %v595 = vpop.xlane.xlu0 %594
    %v596 = vsub.f32 %v439, %v574
    %v597 = vsub.f32 %v444, %v577
    %v598 = vsub.f32 %v449, %v580
    %v599 = vsub.f32 %v454, %v583
    %v600 = vsub.f32 %v554, %v586
    %v601 = vsub.f32 %v559, %v589
    %v602 = vsub.f32 %v564, %v592
    %v603 = vsub.f32 %v569, %v595
    %v604 = vmul.f32 %v596, 1.442695
    %v605 = vpow.pop %v604
    %v606 = vmul.f32 %v597, 1.442695
    %v607 = vpow.pop %v606
    %v608 = vmul.f32 %v598, 1.442695
    %v609 = vpow.pop %v608
    %v610 = vmul.f32 %v599, 1.442695
    %v611 = vpow.pop %v610
    %v612 = vmul.f32 %v600, 1.442695
    %v613 = vpow.pop %v612
    %v614 = vmul.f32 %v601, 1.442695
    %v615 = vpow.pop %v614
    %v616 = vmul.f32 %v602, 1.442695
    %v617 = vpow.pop %v616
    %v618 = vmul.f32 %v603, 1.442695
    %v619 = vpow.pop %v618
    %v620 = vsel %vm168, %v605, 0.0
    %621 = vadd.xlane.f32.xlu0 %v620
    %v622 = vpop.xlane.xlu0 %621
    %v623 = vsel %vm168, %v607, 0.0
    %624 = vadd.xlane.f32.xlu0 %v623
    %v625 = vpop.xlane.xlu0 %624
    %v626 = vsel %vm168, %v609, 0.0
    %627 = vadd.xlane.f32.xlu0 %v626
    %v628 = vpop.xlane.xlu0 %627
    %v629 = vsel %vm168, %v611, 0.0
    %630 = vadd.xlane.f32.xlu0 %v629
    %v631 = vpop.xlane.xlu0 %630
    %v632 = vsel %vm168, %v613, 0.0
    %633 = vadd.xlane.f32.xlu0 %v632
    %v634 = vpop.xlane.xlu0 %633
    %v635 = vsel %vm168, %v615, 0.0
    %636 = vadd.xlane.f32.xlu0 %v635
    %v637 = vpop.xlane.xlu0 %636
    %v638 = vsel %vm168, %v617, 0.0
    %639 = vadd.xlane.f32.xlu0 %v638
    %v640 = vpop.xlane.xlu0 %639
    %v641 = vsel %vm168, %v619, 0.0
    %642 = vadd.xlane.f32.xlu0 %v641
    %v643 = vpop.xlane.xlu0 %642
    %v644 = vrcp.pop %v622
    %v645 = vmul.f32 %v605, %v644
    %v646 = vrcp.pop %v625
    %v647 = vmul.f32 %v607, %v646
    %v648 = vrcp.pop %v628
    %v649 = vmul.f32 %v609, %v648
    %v650 = vrcp.pop %v631
    %v651 = vmul.f32 %v611, %v650
    %v652 = vrcp.pop %v634
    %v653 = vmul.f32 %v613, %v652
    %v654 = vrcp.pop %v637
    %v655 = vmul.f32 %v615, %v654
    %v656 = vrcp.pop %v640
    %v657 = vmul.f32 %v617, %v656
    %v658 = vrcp.pop %v643
    %v659 = vmul.f32 %v619, %v658
    %660 = vrot.lane.b32.xlu0 %v248, 96
    %v661 = vpop.permute.xlu0 %660
    %662 = vrot.lane.b32.xlu0 %v253, 96
    %v663 = vpop.permute.xlu0 %662
    %v667 = vsel %vm168, %v645, 0
    %v670 = vsel %vm168, %v647, 0
    %v673 = vsel %vm168, %v649, 0
    %v676 = vsel %vm168, %v651, 0
    %678 = vmatprep.subr.mxu0 0.0
    %679 = vmatpush1.msra.mxu0 %v661
    %680 = vmatprep.subr.mxu0 0.0
    %681 = vmatpush1.msra.mxu0 %v663
    %682 = vmatprep.subr.mxu0 0.0
    %683 = vmatpush1.msra.mxu0 0.0
    %684 = vmatprep.subr.mxu0 0.0
    %685 = vmatpush1.msra.mxu0 0.0
    %686 = vmatprep.subr.mxu0 0.0
    %687 = vmatpush1.msra.mxu0 0.0
    %688 = vmatprep.subr.mxu0 0.0
    %689 = vmatpush1.msra.mxu0 0.0
    %690 = vmatprep.subr.mxu0 0.0
    %691 = vmatpush1.msra.mxu0 0.0
    %692 = vmatprep.subr.mxu0 0.0
    %693 = vmatpush1.msra.mxu0 0.0
    %694 = vmatprep.subr.mxu0 0.0
    %695 = vmatpush1.msra.mxu0 0.0
    %696 = vmatprep.subr.mxu0 0.0
    %697 = vmatpush1.msra.mxu0 0.0
    %698 = vmatprep.subr.mxu0 0.0
    %699 = vmatpush1.msra.mxu0 0.0
    %700 = vmatprep.subr.mxu0 0.0
    %701 = vmatpush1.msra.mxu0 0.0
    %702 = vmatprep.subr.mxu0 0.0
    %703 = vmatpush1.msra.mxu0 0.0
    %704 = vmatprep.subr.mxu0 0.0
    %705 = vmatpush1.msra.mxu0 0.0
    %706 = vmatprep.subr.mxu0 0.0
    %707 = vmatpush1.msra.mxu0 0.0
    %708 = vmatprep.subr.mxu0 0.0
    %709 = vmatpush1.msra.mxu0 0.0
    %710 = vmatprep.subr.mxu0 0.0
    %711 = vmatpush1.msra.mxu0 0.0
    %712 = vmatprep.subr.mxu0 0.0
    %713 = vmatpush1.msra.mxu0 0.0
    %714 = vmatprep.subr.mxu0 0.0
    %715 = vmatpush1.msra.mxu0 0.0
    %716 = vmatprep.subr.mxu0 0.0
    %717 = vmatpush1.msra.mxu0 0.0
    %718 = vmatprep.subr.mxu0 0.0
    %719 = vmatpush1.msra.mxu0 0.0
    %720 = vmatprep.subr.mxu0 0.0
    %721 = vmatpush1.msra.mxu0 0.0
    %722 = vmatprep.subr.mxu0 0.0
    %723 = vmatpush1.msra.mxu0 0.0
    %724 = vmatprep.subr.mxu0 0.0
    %725 = vmatpush1.msra.mxu0 0.0
    %726 = vmatprep.subr.mxu0 0.0
    %727 = vmatpush1.msra.mxu0 0.0
    %728 = vmatprep.subr.mxu0 0.0
    %729 = vmatpush1.msra.mxu0 0.0
    %730 = vmatprep.subr.mxu0 0.0
    %731 = vmatpush1.msra.mxu0 0.0
    %732 = vmatprep.subr.mxu0 0.0
    %733 = vmatpush1.msra.mxu0 0.0
    %734 = vmatprep.subr.mxu0 0.0
    %735 = vmatpush1.msra.mxu0 0.0
    %736 = vmatprep.subr.mxu0 0.0
    %737 = vmatpush1.msra.mxu0 0.0
    %738 = vmatprep.subr.mxu0 0.0
    %739 = vmatpush1.msra.mxu0 0.0
    %740 = vmatprep.subr.mxu0 0.0
    %741 = vmatpush1.msra.mxu0 0.0
    %742 = vmatprep.mubr.f32.mxu0 0.0
    %743 = vmatmul.mubr.f32.gmra.mrb[0].mxu0 %v667
    %v744 = vpop.f32.mrb[0].mxu0
    %v745 = vadd.f32 0.0, %v744
    %v746 = vpop.f32.mrb[0].mxu0
    %747 = vmatprep.mubr.f32.mxu0 0.0
    %748 = vmatmul.mubr.f32.gmra.mrb[0].mxu0 %v670
    %v749 = vpop.f32.mrb[0].mxu0
    %v750 = vadd.f32 0.0, %v749
    %v751 = vpop.f32.mrb[0].mxu0
    %752 = vmatprep.mubr.f32.mxu0 0.0
    %753 = vmatmul.mubr.f32.gmra.mrb[0].mxu0 %v673
    %v754 = vpop.f32.mrb[0].mxu0
    %v755 = vadd.f32 0.0, %v754
    %v756 = vpop.f32.mrb[0].mxu0
    %757 = vmatprep.mubr.f32.mxu0 0.0
    %758 = vmatmul.mubr.f32.gmra.mrb[0].mxu0 %v676
    %v759 = vpop.f32.mrb[0].mxu0
    %v760 = vadd.f32 0.0, %v759
    %v761 = vpop.f32.mrb[0].mxu0
    %762 = vdwg.mxu0
    %v763 = vmul.f32 %v745, %v321
    %v764 = vmul.f32 %v750, %v322
    %v765 = vmul.f32 %v755, %v323
    %v766 = vmul.f32 %v760, %v324
    %v767 = vadd.f32 %v763, %v764
    %v768 = vadd.f32 %v645, %v647
    %v769 = vadd.f32 %v767, %v765
    %v770 = vadd.f32 %v768, %v649
    %v771 = vadd.f32 %v769, %v766
    %v772 = vadd.f32 %v770, %v651
    %v773 = vmul.f32 %v772, 0.25
    %774 = vrot.lane.b32.xlu0 %v258, 96
    %v775 = vpop.permute.xlu0 %774
    %776 = vrot.lane.b32.xlu0 %v263, 96
    %v777 = vpop.permute.xlu0 %776
    %v781 = vsel %vm168, %v653, 0
    %v784 = vsel %vm168, %v655, 0
    %v787 = vsel %vm168, %v657, 0
    %v790 = vsel %vm168, %v659, 0
    %792 = vmatprep.subr.mxu0 0.0
    %793 = vmatpush1.msra.mxu0 %v775
    %794 = vmatprep.subr.mxu0 0.0
    %795 = vmatpush1.msra.mxu0 %v777
    %796 = vmatprep.subr.mxu0 0.0
    %797 = vmatpush1.msra.mxu0 0.0
    %798 = vmatprep.subr.mxu0 0.0
    %799 = vmatpush1.msra.mxu0 0.0
    %800 = vmatprep.subr.mxu0 0.0
    %801 = vmatpush1.msra.mxu0 0.0
    %802 = vmatprep.subr.mxu0 0.0
    %803 = vmatpush1.msra.mxu0 0.0
    %804 = vmatprep.subr.mxu0 0.0
    %805 = vmatpush1.msra.mxu0 0.0
    %806 = vmatprep.subr.mxu0 0.0
    %807 = vmatpush1.msra.mxu0 0.0
    %808 = vmatprep.subr.mxu0 0.0
    %809 = vmatpush1.msra.mxu0 0.0
    %810 = vmatprep.subr.mxu0 0.0
    %811 = vmatpush1.msra.mxu0 0.0
    %812 = vmatprep.subr.mxu0 0.0
    %813 = vmatpush1.msra.mxu0 0.0
    %814 = vmatprep.subr.mxu0 0.0
    %815 = vmatpush1.msra.mxu0 0.0
    %816 = vmatprep.subr.mxu0 0.0
    %817 = vmatpush1.msra.mxu0 0.0
    %818 = vmatprep.subr.mxu0 0.0
    %819 = vmatpush1.msra.mxu0 0.0
    %820 = vmatprep.subr.mxu0 0.0
    %821 = vmatpush1.msra.mxu0 0.0
    %822 = vmatprep.subr.mxu0 0.0
    %823 = vmatpush1.msra.mxu0 0.0
    %824 = vmatprep.subr.mxu0 0.0
    %825 = vmatpush1.msra.mxu0 0.0
    %826 = vmatprep.subr.mxu0 0.0
    %827 = vmatpush1.msra.mxu0 0.0
    %828 = vmatprep.subr.mxu0 0.0
    %829 = vmatpush1.msra.mxu0 0.0
    %830 = vmatprep.subr.mxu0 0.0
    %831 = vmatpush1.msra.mxu0 0.0
    %832 = vmatprep.subr.mxu0 0.0
    %833 = vmatpush1.msra.mxu0 0.0
    %834 = vmatprep.subr.mxu0 0.0
    %835 = vmatpush1.msra.mxu0 0.0
    %836 = vmatprep.subr.mxu0 0.0
    %837 = vmatpush1.msra.mxu0 0.0
    %838 = vmatprep.subr.mxu0 0.0
    %839 = vmatpush1.msra.mxu0 0.0
    %840 = vmatprep.subr.mxu0 0.0
    %841 = vmatpush1.msra.mxu0 0.0
    %842 = vmatprep.subr.mxu0 0.0
    %843 = vmatpush1.msra.mxu0 0.0
    %844 = vmatprep.subr.mxu0 0.0
    %845 = vmatpush1.msra.mxu0 0.0
    %846 = vmatprep.subr.mxu0 0.0
    %847 = vmatpush1.msra.mxu0 0.0
    %848 = vmatprep.subr.mxu0 0.0
    %849 = vmatpush1.msra.mxu0 0.0
    %850 = vmatprep.subr.mxu0 0.0
    %851 = vmatpush1.msra.mxu0 0.0
    %852 = vmatprep.subr.mxu0 0.0
    %853 = vmatpush1.msra.mxu0 0.0
    %854 = vmatprep.subr.mxu0 0.0
    %855 = vmatpush1.msra.mxu0 0.0
    %856 = vmatprep.mubr.f32.mxu0 0.0
    %857 = vmatmul.mubr.f32.gmra.mrb[0].mxu0 %v781
    %v858 = vpop.f32.mrb[0].mxu0
    %v859 = vadd.f32 0.0, %v858
    %v860 = vpop.f32.mrb[0].mxu0
    %861 = vmatprep.mubr.f32.mxu0 0.0
    %862 = vmatmul.mubr.f32.gmra.mrb[0].mxu0 %v784
    %v863 = vpop.f32.mrb[0].mxu0
    %v864 = vadd.f32 0.0, %v863
    %v865 = vpop.f32.mrb[0].mxu0
    %866 = vmatprep.mubr.f32.mxu0 0.0
    %867 = vmatmul.mubr.f32.gmra.mrb[0].mxu0 %v787
    %v868 = vpop.f32.mrb[0].mxu0
    %v869 = vadd.f32 0.0, %v868
    %v870 = vpop.f32.mrb[0].mxu0
    %871 = vmatprep.mubr.f32.mxu0 0.0
    %872 = vmatmul.mubr.f32.gmra.mrb[0].mxu0 %v790
    %v873 = vpop.f32.mrb[0].mxu0
    %v874 = vadd.f32 0.0, %v873
    %v875 = vpop.f32.mrb[0].mxu0
    %876 = vdwg.mxu0
    %v877 = vmul.f32 %v859, %v321
    %v878 = vmul.f32 %v864, %v322
    %v879 = vmul.f32 %v869, %v323
    %v880 = vmul.f32 %v874, %v324
    %v881 = vadd.f32 %v877, %v878
    %v882 = vadd.f32 %v653, %v655
    %v883 = vadd.f32 %v881, %v879
    %v884 = vadd.f32 %v882, %v657
    %v885 = vadd.f32 %v883, %v880
    %v886 = vadd.f32 %v884, %v659
    %v887 = vmul.f32 %v886, 0.25
    %888 = vst.msk [vmem:[#allocation8] sm:$0xff] %vm168, %v773
    %889 = vst.msk [vmem:[#allocation8 + $0x8] sm:$0xff] %vm168, %v887
    %v890 = vld [vmem:[%s6] sm:$0xff]
    %v891 = vld [vmem:[%s6 + $0x8] sm:$0xff]
    %v892 = vld [vmem:[%s6 + $0x10] sm:$0xff]
    %v893 = vld [vmem:[%s6 + $0x18] sm:$0xff]
    %v894 = vld [vmem:[%s7] sm:$0x1]
    %v895 = vld [vmem:[%s7 + $0x1] sm:$0x1]
    %v896 = vlaneseq
    %v897 = vshrl.u32 %v896, 7
    %v898 = vsub.s32 0, %v897
    %v899 = vrot.slane %v894, %v898
    %v901 = vsel %vm357, %v771, 0
    %v904 = vsel %vm357, %v885, 0
    %906 = vmatprep.subr.mxu0 0.0
    %907 = vmatpush1.msra.mxu0 %v890
    %908 = vmatprep.subr.mxu0 0.0
    %909 = vmatpush1.msra.mxu0 %v891
    %910 = vmatprep.subr.mxu0 0.0
    %911 = vmatpush1.msra.mxu0 %v892
    %912 = vmatprep.subr.mxu0 0.0
    %913 = vmatpush1.msra.mxu0 %v893
    %914 = vmatprep.subr.mxu0 0.0
    %915 = vmatpush1.msra.mxu0 0.0
    %916 = vmatprep.subr.mxu0 0.0
    %917 = vmatpush1.msra.mxu0 0.0
    %918 = vmatprep.subr.mxu0 0.0
    %919 = vmatpush1.msra.mxu0 0.0
    %920 = vmatprep.subr.mxu0 0.0
    %921 = vmatpush1.msra.mxu0 0.0
    %922 = vmatprep.subr.mxu0 0.0
    %923 = vmatpush1.msra.mxu0 0.0
    %924 = vmatprep.subr.mxu0 0.0
    %925 = vmatpush1.msra.mxu0 0.0
    %926 = vmatprep.subr.mxu0 0.0
    %927 = vmatpush1.msra.mxu0 0.0
    %928 = vmatprep.subr.mxu0 0.0
    %929 = vmatpush1.msra.mxu0 0.0
    %930 = vmatprep.subr.mxu0 0.0
    %931 = vmatpush1.msra.mxu0 0.0
    %932 = vmatprep.subr.mxu0 0.0
    %933 = vmatpush1.msra.mxu0 0.0
    %934 = vmatprep.subr.mxu0 0.0
    %935 = vmatpush1.msra.mxu0 0.0
    %936 = vmatprep.subr.mxu0 0.0
    %937 = vmatpush1.msra.mxu0 0.0
    %938 = vmatprep.subr.mxu0 0.0
    %939 = vmatpush1.msra.mxu0 0.0
    %940 = vmatprep.subr.mxu0 0.0
    %941 = vmatpush1.msra.mxu0 0.0
    %942 = vmatprep.subr.mxu0 0.0
    %943 = vmatpush1.msra.mxu0 0.0
    %944 = vmatprep.subr.mxu0 0.0
    %945 = vmatpush1.msra.mxu0 0.0
    %946 = vmatprep.subr.mxu0 0.0
    %947 = vmatpush1.msra.mxu0 0.0
    %948 = vmatprep.subr.mxu0 0.0
    %949 = vmatpush1.msra.mxu0 0.0
    %950 = vmatprep.subr.mxu0 0.0
    %951 = vmatpush1.msra.mxu0 0.0
    %952 = vmatprep.subr.mxu0 0.0
    %953 = vmatpush1.msra.mxu0 0.0
    %954 = vmatprep.subr.mxu0 0.0
    %955 = vmatpush1.msra.mxu0 0.0
    %956 = vmatprep.subr.mxu0 0.0
    %957 = vmatpush1.msra.mxu0 0.0
    %958 = vmatprep.subr.mxu0 0.0
    %959 = vmatpush1.msra.mxu0 0.0
    %960 = vmatprep.subr.mxu0 0.0
    %961 = vmatpush1.msra.mxu0 0.0
    %962 = vmatprep.subr.mxu0 0.0
    %963 = vmatpush1.msra.mxu0 0.0
    %964 = vmatprep.subr.mxu0 0.0
    %965 = vmatpush1.msra.mxu0 0.0
    %966 = vmatprep.subr.mxu0 0.0
    %967 = vmatpush1.msra.mxu0 0.0
    %968 = vmatprep.subr.mxu0 0.0
    %969 = vmatpush1.msra.mxu0 0.0
    %970 = vmatprep.mubr.f32.mxu0 0.0
    %971 = vmatmul.mubr.f32.gmra.mrb[0].mxu0 %v901
    %v972 = vpop.f32.mrb[0].mxu0
    %v973 = vadd.f32 %v899, %v972
    %v974 = vpop.f32.mrb[0].mxu0
    %975 = vmatprep.mubr.f32.mxu0 0.0
    %976 = vmatmul.mubr.f32.gmra.mrb[0].mxu0 %v904
    %v977 = vpop.f32.mrb[0].mxu0
    %v978 = vadd.f32 %v899, %v977
    %v979 = vpop.f32.mrb[0].mxu0
    %980 = vdwg.mxu0
    %v981 = vadd.f32 %v151, %v973
    %v982 = vadd.f32 %v156, %v978
    %v983 = vld [vmem:[%s7 + $0x2] sm:$0x1]
    %v984 = vld [vmem:[%s7 + $0x3] sm:$0x1]
    %v985 = vsel %vm357, %v981, 0.0
    %986 = vadd.xlane.f32.xlu0 %v985
    %v987 = vpop.xlane.xlu0 %986
    %v988 = vsel %vm357, %v982, 0.0
    %989 = vadd.xlane.f32.xlu0 %v988
    %v990 = vpop.xlane.xlu0 %989
    %v991 = vrcp.pop 32.0
    %v992 = vmul.f32 %v987, %v991
    %v993 = vmul.f32 %v990, %v991
    %v994 = vsub.f32 %v981, %v992
    %v995 = vsub.f32 %v982, %v993
    %v996 = vmul.f32 %v994, %v994
    %v997 = vmul.f32 %v995, %v995
    %v998 = vsel %vm357, %v996, 0.0
    %999 = vadd.xlane.f32.xlu0 %v998
    %v1000 = vpop.xlane.xlu0 %999
    %v1001 = vsel %vm357, %v997, 0.0
    %1002 = vadd.xlane.f32.xlu0 %v1001
    %v1003 = vpop.xlane.xlu0 %1002
    %v1004 = vmul.f32 %v1000, %v991
    %v1005 = vmul.f32 %v1003, %v991
    %v1006 = vadd.f32 %v1004, 1e-05
    %v1007 = vadd.f32 %v1005, 1e-05
    %v1008 = vrsqrt.pop %v1006
    %v1009 = vrsqrt.pop %v1007
    %v1010 = vmul.f32 %v994, %v1008
    %v1011 = vmul.f32 %v995, %v1009
    %v1012 = vlaneseq
    %v1013 = vshrl.u32 %v1012, 7
    %v1014 = vsub.s32 0, %v1013
    %v1015 = vrot.slane %v983, %v1014
    %v1016 = vmul.f32 %v1010, %v1015
    %v1017 = vmul.f32 %v1011, %v1015
    %v1018 = vlaneseq
    %v1019 = vshrl.u32 %v1018, 7
    %v1020 = vsub.s32 0, %v1019
    %v1021 = vrot.slane %v984, %v1020
    %v1022 = vadd.f32 %v1016, %v1021
    %v1023 = vadd.f32 %v1017, %v1021
    %v1024 = vlaneseq
    %v1025 = vshrl.u32 %v1024, 7
    %v1026 = vsub.s32 0, %v1025
    %v1027 = vrot.slane %v895, %v1026
    %1032 = vrot.lane.b32.xlu0 %v890, 96
    %v1033 = vpop.permute.xlu0 %1032
    %1034 = vrot.lane.b32.xlu0 %v891, 96
    %v1035 = vpop.permute.xlu0 %1034
    %1036 = vrot.lane.b32.xlu0 %v892, 96
    %v1037 = vpop.permute.xlu0 %1036
    %1038 = vrot.lane.b32.xlu0 %v893, 96
    %v1039 = vpop.permute.xlu0 %1038
    %v1045 = vsel %vm357, %v1022, 0
    %v1048 = vsel %vm357, %v1023, 0
    %1050 = vmatprep.subr.mxu0 0.0
    %1051 = vmatpush1.msra.mxu0 %v1033
    %1052 = vmatprep.subr.mxu0 0.0
    %1053 = vmatpush1.msra.mxu0 %v1035
    %1054 = vmatprep.subr.mxu0 0.0
    %1055 = vmatpush1.msra.mxu0 %v1037
    %1056 = vmatprep.subr.mxu0 0.0
    %1057 = vmatpush1.msra.mxu0 %v1039
    %1058 = vmatprep.subr.mxu0 0.0
    %1059 = vmatpush1.msra.mxu0 0.0
    %1060 = vmatprep.subr.mxu0 0.0
    %1061 = vmatpush1.msra.mxu0 0.0
    %1062 = vmatprep.subr.mxu0 0.0
    %1063 = vmatpush1.msra.mxu0 0.0
    %1064 = vmatprep.subr.mxu0 0.0
    %1065 = vmatpush1.msra.mxu0 0.0
    %1066 = vmatprep.subr.mxu0 0.0
    %1067 = vmatpush1.msra.mxu0 0.0
    %1068 = vmatprep.subr.mxu0 0.0
    %1069 = vmatpush1.msra.mxu0 0.0
    %1070 = vmatprep.subr.mxu0 0.0
    %1071 = vmatpush1.msra.mxu0 0.0
    %1072 = vmatprep.subr.mxu0 0.0
    %1073 = vmatpush1.msra.mxu0 0.0
    %1074 = vmatprep.subr.mxu0 0.0
    %1075 = vmatpush1.msra.mxu0 0.0
    %1076 = vmatprep.subr.mxu0 0.0
    %1077 = vmatpush1.msra.mxu0 0.0
    %1078 = vmatprep.subr.mxu0 0.0
    %1079 = vmatpush1.msra.mxu0 0.0
    %1080 = vmatprep.subr.mxu0 0.0
    %1081 = vmatpush1.msra.mxu0 0.0
    %1082 = vmatprep.subr.mxu0 0.0
    %1083 = vmatpush1.msra.mxu0 0.0
    %1084 = vmatprep.subr.mxu0 0.0
    %1085 = vmatpush1.msra.mxu0 0.0
    %1086 = vmatprep.subr.mxu0 0.0
    %1087 = vmatpush1.msra.mxu0 0.0
    %1088 = vmatprep.subr.mxu0 0.0
    %1089 = vmatpush1.msra.mxu0 0.0
    %1090 = vmatprep.subr.mxu0 0.0
    %1091 = vmatpush1.msra.mxu0 0.0
    %1092 = vmatprep.subr.mxu0 0.0
    %1093 = vmatpush1.msra.mxu0 0.0
    %1094 = vmatprep.subr.mxu0 0.0
    %1095 = vmatpush1.msra.mxu0 0.0
    %1096 = vmatprep.subr.mxu0 0.0
    %1097 = vmatpush1.msra.mxu0 0.0
    %1098 = vmatprep.subr.mxu0 0.0
    %1099 = vmatpush1.msra.mxu0 0.0
    %1100 = vmatprep.subr.mxu0 0.0
    %1101 = vmatpush1.msra.mxu0 0.0
    %1102 = vmatprep.subr.mxu0 0.0
    %1103 = vmatpush1.msra.mxu0 0.0
    %1104 = vmatprep.subr.mxu0 0.0
    %1105 = vmatpush1.msra.mxu0 0.0
    %1106 = vmatprep.subr.mxu0 0.0
    %1107 = vmatpush1.msra.mxu0 0.0
    %1108 = vmatprep.subr.mxu0 0.0
    %1109 = vmatpush1.msra.mxu0 0.0
    %1110 = vmatprep.subr.mxu0 0.0
    %1111 = vmatpush1.msra.mxu0 0.0
    %1112 = vmatprep.subr.mxu0 0.0
    %1113 = vmatpush1.msra.mxu0 0.0
    %1114 = vmatprep.mubr.f32.mxu0 0.0
    %1115 = vmatmul.mubr.f32.gmra.mrb[0].mxu0 %v1045
    %v1116 = vpop.f32.mrb[0].mxu0
    %v1117 = vadd.f32 %v1027, %v1116
    %v1118 = vpop.f32.mrb[0].mxu0
    %1119 = vmatprep.mubr.f32.mxu0 0.0
    %1120 = vmatmul.mubr.f32.gmra.mrb[0].mxu0 %v1048
    %v1121 = vpop.f32.mrb[0].mxu0
    %v1122 = vadd.f32 %v1027, %v1121
    %v1123 = vpop.f32.mrb[0].mxu0
    %1124 = vdwg.mxu0
    %v1125 = vmax.f32 %v1117, 0.0
    %v1126 = vmax.f32 %v1122, 0.0
    %v1127 = vadd.f32 %v1022, %v1125
    %v1128 = vadd.f32 %v1023, %v1126
    %v1129 = vld [vmem:[%s7 + $0x4] sm:$0x1]
    %v1130 = vld [vmem:[%s7 + $0x5] sm:$0x1]
    %v1131 = vsel %vm357, %v1127, 0.0
    %1132 = vadd.xlane.f32.xlu0 %v1131
    %v1133 = vpop.xlane.xlu0 %1132
    %v1134 = vsel %vm357, %v1128, 0.0
    %1135 = vadd.xlane.f32.xlu0 %v1134
    %v1136 = vpop.xlane.xlu0 %1135
    %v1137 = vmul.f32 %v1133, %v991
    %v1138 = vmul.f32 %v1136, %v991
    %v1139 = vsub.f32 %v1127, %v1137
    %v1140 = vsub.f32 %v1128, %v1138
    %v1141 = vmul.f32 %v1139, %v1139
    %v1142 = vmul.f32 %v1140, %v1140
    %v1143 = vsel %vm357, %v1141, 0.0
    %1144 = vadd.xlane.f32.xlu0 %v1143
    %v1145 = vpop.xlane.xlu0 %1144
    %v1146 = vsel %vm357, %v1142, 0.0
    %1147 = vadd.xlane.f32.xlu0 %v1146
    %v1148 = vpop.xlane.xlu0 %1147
    %v1149 = vmul.f32 %v1145, %v991
    %v1150 = vmul.f32 %v1148, %v991
    %v1151 = vadd.f32 %v1149, 1e-05
    %v1152 = vadd.f32 %v1150, 1e-05
    %v1153 = vrsqrt.pop %v1151
    %v1154 = vrsqrt.pop %v1152
    %v1155 = vmul.f32 %v1139, %v1153
    %v1156 = vmul.f32 %v1140, %v1154
    %v1157 = vlaneseq
    %v1158 = vshrl.u32 %v1157, 7
    %v1159 = vsub.s32 0, %v1158
    %v1160 = vrot.slane %v1129, %v1159
    %v1161 = vmul.f32 %v1155, %v1160
    %v1162 = vmul.f32 %v1156, %v1160
    %v1163 = vlaneseq
    %v1164 = vshrl.u32 %v1163, 7
    %v1165 = vsub.s32 0, %v1164
    %v1166 = vrot.slane %v1130, %v1165
    %v1167 = vadd.f32 %v1161, %v1166
    %v1168 = vadd.f32 %v1162, %v1166
    %v1169 = vxor.u32 %v151, 2147483648
    %v1170 = vxor.u32 %v156, 2147483648
    %v1171 = vmul.f32 %v1169, 1.442695
    %v1172 = vpow.pop %v1171
    %v1173 = vmul.f32 %v1170, 1.442695
    %v1174 = vpow.pop %v1173
    %v1175 = vadd.f32 %v1172, 1.0
    %v1176 = vadd.f32 %v1174, 1.0
    %v1177 = vrcp.pop %v1175
    %v1178 = vmul.f32 1.0, %v1177
    %v1179 = vrcp.pop %v1176
    %v1180 = vmul.f32 1.0, %v1179
    %v1181 = vmul.f32 %v151, %v1178
    %v1182 = vmul.f32 %v156, %v1180
    %1185 = vrot.lane.b32.xlu0 %v1181, 64
    %v1186 = vpop.permute.xlu0 %1185
    %1187 = vrot.lane.b32.xlu0 %v1182, 64
    %v1188 = vpop.permute.xlu0 %1187
    %v1191 = vmul.f32 %v1167, %v1186
    %v1192 = vmul.f32 %v1168, %v1188
    %1193 = vst.msk [vmem:[#allocation7] sm:$0xff] %vm357, %v1191
    %1194 = vst.msk [vmem:[#allocation7 + $0x8] sm:$0xff] %vm357, %v1192
    // Predicated region
    $region42: #{tpu_custom_call.1} parent=1 // pred_check
      _
    $region43: #{tpu_custom_call.1} parent=1 // pred_check_branch
      %1196 = sbr.rel (0) target = $region45
    $region44: #{tpu_custom_call.1} parent=1 // pred_region
      %s1198 = ssub.s32 256, 256
      %1199 = vsyncadd [#allocation4], %s1198
      %s1200 = sshll.u32 [#allocation7], 4
      %s1201 = int_to_ptr.vmem [resolvable:$true] %s1200
      %1206 = dma.vmem_to_hbm [thread:$0]  %s1201, 256, %s8, [#allocation4], 128, 128, 8
    $region45: #{tpu_custom_call.1} parent=1 // pred_fallthru
      _
    // Predicated region
    $region46: #{tpu_custom_call.1} parent=1 // pred_check
      _
    $region47: #{tpu_custom_call.1} parent=1 // pred_check_branch
      %1208 = sbr.rel (0) target = $region49
    $region48: #{tpu_custom_call.1} parent=1 // pred_region
      %s1210 = ssub.s32 256, 256
      %1211 = vsyncadd [#allocation9], %s1210
      %s1212 = sshll.u32 [#allocation8], 4
      %s1213 = int_to_ptr.vmem [resolvable:$true] %s1212
      %1218 = dma.vmem_to_hbm [thread:$0]  %s1213, 256, %s9, [#allocation9], 128, 128, 8
    $region49: #{tpu_custom_call.1} parent=1 // pred_fallthru
      _
    // Predicated region
    $region50: #{tpu_custom_call.1} parent=1 // pred_check
      _
    $region51: #{tpu_custom_call.1} parent=1 // pred_check_branch
      %1220 = sbr.rel (0) target = $region53
    $region52: #{tpu_custom_call.1} parent=1 // pred_region
      %1221 = dma.done [#allocation4], 256
    $region53: #{tpu_custom_call.1} parent=1 // pred_fallthru
      _
    // Predicated region
    $region54: #{tpu_custom_call.1} parent=1 // pred_check
      _
    $region55: #{tpu_custom_call.1} parent=1 // pred_check_branch
      %1223 = sbr.rel (0) target = $region57
    $region56: #{tpu_custom_call.1} parent=1 // pred_region
      %1224 = dma.done [#allocation9], 256
    $region57: #{tpu_custom_call.1} parent=1 // pred_fallthru
      _
    %1225 = vsyncpa [#allocation3], 1
    %1226 = vsyncpa [#allocation6], 1
    %1227 = vsyncpa [#allocation4], 1
    %1228 = vsyncpa [#allocation9], 1

</llo_original>
